<compile_context>
chip_gen: v6e
topology: v6e:2x2x1
jax: 0.10.0
libtpu: 0.0.40
codegen_flags: <defaults>
</compile_context>

<pallas_src>
import functools
import math

import jax
import jax.numpy as jnp
from jax.experimental import pallas as pl
from jax.experimental.pallas import tpu as pltpu

# ----------------------------- tiling targets --------------------------------
ROW_T = 512       # token tile for weight-streaming matmuls
K_T = 256         # contraction tile over C (fills 256-wide MXU on v6e/v7x)
F_T = 512         # FFN hidden tile
Q_T = 256         # flash-attention query tile
KV_T = 512        # flash-attention key/value tile


def _vmem_limit_bytes():
    """Per-generation VMEM budget: physical capacity minus headroom, <=112MiB."""
    cap = 128 * 1024 * 1024
    try:
        cap = int(getattr(pltpu.get_tpu_info(), "vmem_capacity_bytes", cap) or cap)
    except Exception:
        pass
    return min(cap - 16 * 1024 * 1024, 112 * 1024 * 1024)


_VMEM_LIMIT = _vmem_limit_bytes()


def _cparams(*semantics):
    return pltpu.CompilerParams(dimension_semantics=semantics,
                                vmem_limit_bytes=_VMEM_LIMIT)


def _row_tile(n, target=ROW_T):
    """Tile for a second-minor (sublane) dim: multiple of 16 (bf16-safe) or full."""
    # TODO(synk): real Wan token counts are not always divisible; pad L in the
    # caller (with attention masking) instead of relying on this divisor search.
    if n <= target:
        return n
    t = (target // 16) * 16
    while t >= 16:
        if n % t == 0:
            return t
        t -= 16
    return n


def _lane_tile(n, target=K_T):
    """Tile for a minor (lane) dim: multiple of 128 or full."""
    if n <= target:
        return n
    t = (target // 128) * 128
    while t >= 128:
        if n % t == 0:
            return t
        t -= 128
    return n


def _rotate_half(x):
    half = x.shape[-1] // 2
    return jnp.concatenate([-x[..., half:], x[..., :half]], axis=-1)


# ---------- kernel 1: fused (LN+modulate) -> multi-proj -> RMS/RoPE ----------

def _make_proj_kernel(n_out, rms_flags, rope_flags, scale_flags, ln_mod,
                      num_heads, head_dim, scale, eps, tk, full_k):
    n_rms = sum(rms_flags)
    any_rope = any(rope_flags)

    def kernel(*refs):
        i = 0
        x_ref = refs[i]; i += 1
        if ln_mod:
            sh_ref = refs[i]; sc_ref = refs[i + 1]; i += 2
        w_refs = refs[i:i + n_out]; i += n_out
        b_refs = refs[i:i + n_out]; i += n_out
        g_refs = refs[i:i + n_rms]; i += n_rms
        if any_rope:
            cos_ref = refs[i]; sin_ref = refs[i + 1]; i += 2
        o_refs = refs[i:i + n_out]; i += n_out
        if ln_mod:
            h_ref = refs[i]; i += 1
        acc_refs = refs[i:i + n_out]

        kk = pl.program_id(2)

        @pl.when(kk == 0)
        def _init():
            for a in acc_refs:
                a[...] = jnp.zeros_like(a)
            if ln_mod:
                # LayerNorm (no affine) + modulation, computed once per token
                # tile into a bf16 VMEM scratch that feeds every k-step.
                xv = x_ref[0].astype(jnp.float32)
                mu = jnp.mean(xv, axis=-1, keepdims=True)
                xc = xv - mu
                var = jnp.mean(xc * xc, axis=-1, keepdims=True)
                y = xc * jax.lax.rsqrt(var + eps)
                y = (y * (1.0 + sc_ref[0].astype(jnp.float32))
                     + sh_ref[0].astype(jnp.float32))
                h_ref[...] = y.astype(h_ref.dtype)

        if ln_mod:
            if full_k:
                h = h_ref[...]
            else:
                off = pl.multiple_of(kk * tk, tk)
                h = h_ref[:, pl.ds(off, tk)]
        else:
            h = x_ref[0].astype(jnp.bfloat16)
        for a, w in zip(acc_refs, w_refs):
            a[...] += jnp.dot(h, w[...], preferred_element_type=jnp.float32)

        @pl.when(kk == pl.num_programs(2) - 1)
        def _epilogue():
            gi = 0
            for o_i in range(n_out):
                y = acc_refs[o_i][...] + b_refs[o_i][...].astype(jnp.float32)
                if rms_flags[o_i]:
                    y = y * jax.lax.rsqrt(
                        jnp.mean(y * y, axis=-1, keepdims=True) + eps)
                    y = y * g_refs[gi][...].astype(jnp.float32)
                    gi += 1
                if rope_flags[o_i]:
                    tl_, c_ = y.shape
                    yh = y.reshape(tl_, num_heads, head_dim)
                    cos = cos_ref[...][:, None, :]
                    sin = sin_ref[...][:, None, :]
                    yh = yh * cos + _rotate_half(yh) * sin
                    y = yh.reshape(tl_, c_)
                if scale_flags[o_i]:
                    y = y * scale
                o_refs[o_i][0] = y.astype(o_refs[o_i].dtype)

    return kernel


def fused_proj(x, ws, bs, gains, rms_flags, *, rope_flags=None, scale_flags=None,
               ln_shift=None, ln_scale=None, rope_cos=None, rope_sin=None,
               num_heads=1, scale=1.0, eps=1e-6, out_dtype=jnp.bfloat16):
    """y_i = [scale][RoPE][RMSNorm]( [LN+mod](x) @ W_i + b_i ).

    Reads each activation tile once for all outputs; weights streamed K-tiled
    with f32 VMEM accumulators.
    """
    B, L, C = x.shape
    n_out = len(ws)
    N = ws[0].shape[1]
    rope_flags = tuple(rope_flags) if rope_flags is not None else (False,) * n_out
    scale_flags = tuple(scale_flags) if scale_flags is not None else (False,) * n_out
    ln_mod = ln_shift is not None
    any_rope = any(rope_flags)
    head_dim = C // num_heads

    tl = _row_tile(L, ROW_T)
    tk = _lane_tile(C, K_T)
    full_k = (tk == C)
    grid = (B, L // tl, C // tk)

    in_specs = []
    args = [x]
    if ln_mod:
        in_specs.append(pl.BlockSpec((1, tl, C), lambda b, l, k: (b, l, 0)))
        in_specs.append(pl.BlockSpec((1, 1, C), lambda b, l, k: (b, 0, 0)))
        in_specs.append(pl.BlockSpec((1, 1, C), lambda b, l, k: (b, 0, 0)))
        args += [ln_shift, ln_scale]
    else:
        in_specs.append(pl.BlockSpec((1, tl, tk), lambda b, l, k: (b, l, k)))
    in_specs += [pl.BlockSpec((tk, N), lambda b, l, k: (k, 0))] * n_out
    in_specs += [pl.BlockSpec((1, N), lambda b, l, k: (0, 0))] * n_out
    in_specs += [pl.BlockSpec((1, N), lambda b, l, k: (0, 0))] * sum(rms_flags)
    args += list(ws) + list(bs) + list(gains)
    if any_rope:
        in_specs += [pl.BlockSpec((tl, head_dim), lambda b, l, k: (l, 0))] * 2
        args += [rope_cos, rope_sin]

    out_specs = [pl.BlockSpec((1, tl, N), lambda b, l, k: (b, l, 0))] * n_out
    scratch = []
    if ln_mod:
        scratch.append(pltpu.VMEM((tl, C), jnp.bfloat16))
    # TODO(synk): on v7x (64 MiB VMEM) with C>=5120 add an output-dim grid axis
    # (or split the 3-output call) so the f32 accumulators stay within budget.
    scratch += [pltpu.VMEM((tl, N), jnp.float32)] * n_out

    outs = pl.pallas_call(
        _make_proj_kernel(n_out, tuple(rms_flags), rope_flags, scale_flags,
                          ln_mod, num_heads, head_dim, scale, eps, tk, full_k),
        grid=grid,
        in_specs=in_specs,
        out_specs=out_specs,
        out_shape=[jax.ShapeDtypeStruct((B, L, N), out_dtype)] * n_out,
        scratch_shapes=scratch,
        compiler_params=_cparams("parallel", "parallel", "arbitrary"),
    )(*args)
    return tuple(outs)


# -------------------- kernel 2: per-head flash attention ---------------------

def _sm_step(s, v, m_ref, l_ref, acc_ref, valid=None):
    m_prev = m_ref[...]
    m_new = jnp.maximum(m_prev, jnp.max(s, axis=-1, keepdims=True))
    alpha = jnp.exp(m_prev - m_new)
    p = jnp.exp(s - m_new)
    if valid is not None:
        p = jnp.where(valid, p, 0.0)
    l_ref[...] = alpha * l_ref[...] + jnp.sum(p, axis=-1, keepdims=True)
    acc_ref[...] = alpha * acc_ref[...] + jnp.dot(
        p.astype(jnp.bfloat16), v, preferred_element_type=jnp.float32)
    m_ref[...] = m_new


def _flash_kernel(q_ref, k_ref, v_ref, o_ref, m_ref, l_ref, acc_ref):
    ki = pl.program_id(3)

    @pl.when(ki == 0)
    def _():
        m_ref[...] = jnp.full_like(m_ref, -1e30)
        l_ref[...] = jnp.zeros_like(l_ref)
        acc_ref[...] = jnp.zeros_like(acc_ref)

    q = q_ref[0, :, 0, :]                                   # [tq, d] (pre-scaled)
    k = k_ref[0, :, 0, :]                                   # [tkv, d]
    v = v_ref[0, :, 0, :]
    s = jax.lax.dot_general(q, k, (((1,), (1,)), ((), ())),
                            preferred_element_type=jnp.float32)   # [tq, tkv]
    _sm_step(s, v, m_ref, l_ref, acc_ref)

    @pl.when(ki == pl.num_programs(3) - 1)
    def _():
        o_ref[0, :, 0, :] = (acc_ref[...] / l_ref[...]).astype(o_ref.dtype)


def _flash_masked_kernel(lens_ref, q_ref, k_ref, v_ref, o_ref,
                         m_ref, l_ref, acc_ref):
    b = pl.program_id(0)
    ki = pl.program_id(3)
    tkv = k_ref.shape[1]

    @pl.when(ki == 0)
    def _():
        m_ref[...] = jnp.full_like(m_ref, -1e30)
        l_ref[...] = jnp.zeros_like(l_ref)
        acc_ref[...] = jnp.zeros_like(acc_ref)

    q = q_ref[0, :, 0, :]
    k = k_ref[0, :, 0, :]
    v = v_ref[0, :, 0, :]
    s = jax.lax.dot_general(q, k, (((1,), (1,)), ((), ())),
                            preferred_element_type=jnp.float32)
    col = ki * tkv + jax.lax.broadcasted_iota(jnp.int32, (1, tkv), 1)
    valid = col < lens_ref[b]
    s = jnp.where(valid, s, -1e30)
    _sm_step(s, v, m_ref, l_ref, acc_ref, valid=valid)

    @pl.when(ki == pl.num_programs(3) - 1)
    def _():
        # safe divide: fully-masked rows (context_lens == 0) produce zeros
        inv = 1.0 / jnp.maximum(l_ref[...], 1e-20)
        o_ref[0, :, 0, :] = (acc_ref[...] * inv).astype(o_ref.dtype)


def flash_attention(q, k, v, k_lens=None, *, q_target=Q_T, kv_target=KV_T):
    """q/k/v: [B, L, n, d] (q pre-scaled & RoPE'd).  Returns [B, Lq, n, d] bf16."""
    B, Lq, n, d = q.shape
    Lk = k.shape[1]
    tq = _row_tile(Lq, q_target)
    tkv = _row_tile(Lk, kv_target)
    grid = (B, n, Lq // tq, Lk // tkv)

    q_map = lambda b, h, qi, ki, *_: (b, qi, h, 0)
    kv_map = lambda b, h, qi, ki, *_: (b, ki, h, 0)
    in_specs = [pl.BlockSpec((1, tq, 1, d), q_map),
                pl.BlockSpec((1, tkv, 1, d), kv_map),
                pl.BlockSpec((1, tkv, 1, d), kv_map)]
    out_specs = pl.BlockSpec((1, tq, 1, d), q_map)
    scratch = [pltpu.VMEM((tq, 1), jnp.float32),
               pltpu.VMEM((tq, 1), jnp.float32),
               pltpu.VMEM((tq, d), jnp.float32)]
    cparams = _cparams("parallel", "parallel", "parallel", "arbitrary")
    out_shape = jax.ShapeDtypeStruct((B, Lq, n, d), jnp.bfloat16)

    if k_lens is None:
        return pl.pallas_call(
            _flash_kernel, grid=grid, in_specs=in_specs, out_specs=out_specs,
            out_shape=out_shape, scratch_shapes=scratch,
            compiler_params=cparams)(q, k, v)

    return pl.pallas_call(
        _flash_masked_kernel,
        grid_spec=pltpu.PrefetchScalarGridSpec(
            num_scalar_prefetch=1, grid=grid,
            in_specs=in_specs, out_specs=out_specs, scratch_shapes=scratch),
        out_shape=out_shape,
        compiler_params=cparams,
    )(k_lens.astype(jnp.int32), q, k, v)


# ------- kernels 3/4: o-projection (C-contraction) + residual + next norm ----

def _oproj_self_kernel(attn_ref, wo_ref, bo_ref, x_ref, e2_ref, n3w_ref, n3b_ref,
                       xo_ref, h3_ref, acc_ref, *, eps):
    kk = pl.program_id(2)

    @pl.when(kk == 0)
    def _():
        acc_ref[...] = jnp.zeros_like(acc_ref)

    acc_ref[...] += jnp.dot(attn_ref[0], wo_ref[...],
                            preferred_element_type=jnp.float32)

    @pl.when(kk == pl.num_programs(2) - 1)
    def _():
        y = acc_ref[...] + bo_ref[...].astype(jnp.float32)
        xn = x_ref[0].astype(jnp.float32) + y * e2_ref[0].astype(jnp.float32)
        xo_ref[0] = xn.astype(xo_ref.dtype)
        # fused norm3 (affine LayerNorm) of the updated residual
        mu = jnp.mean(xn, axis=-1, keepdims=True)
        xc = xn - mu
        var = jnp.mean(xc * xc, axis=-1, keepdims=True)
        h3 = xc * jax.lax.rsqrt(var + eps)
        h3 = h3 * n3w_ref[...].astype(jnp.float32) + n3b_ref[...].astype(jnp.float32)
        h3_ref[0] = h3.astype(h3_ref.dtype)


def _oproj_cross_kernel(attn_ref, wo_ref, bo_ref, x_ref, sh_ref, sc_ref,
                        xo_ref, hf_ref, acc_ref, *, eps):
    kk = pl.program_id(2)

    @pl.when(kk == 0)
    def _():
        acc_ref[...] = jnp.zeros_like(acc_ref)

    acc_ref[...] += jnp.dot(attn_ref[0], wo_ref[...],
                            preferred_element_type=jnp.float32)

    @pl.when(kk == pl.num_programs(2) - 1)
    def _():
        y = acc_ref[...] + bo_ref[...].astype(jnp.float32)
        xn = x_ref[0].astype(jnp.float32) + y
        xo_ref[0] = xn.astype(xo_ref.dtype)
        # fused norm2 (no affine) + modulation for the FFN input
        mu = jnp.mean(xn, axis=-1, keepdims=True)
        xc = xn - mu
        var = jnp.mean(xc * xc, axis=-1, keepdims=True)
        hf = xc * jax.lax.rsqrt(var + eps)
        hf = (hf * (1.0 + sc_ref[0].astype(jnp.float32))
              + sh_ref[0].astype(jnp.float32))
        hf_ref[0] = hf.astype(hf_ref.dtype)


def _oproj_call(kernel_fn, attn_flat, wo, bo, x, extra1, extra2, extra3=None,
                *, eps):
    B, L, C = x.shape
    tl = _row_tile(L, ROW_T)
    tk = _lane_tile(C, K_T)
    grid = (B, L // tl, C // tk)
    in_specs = [pl.BlockSpec((1, tl, tk), lambda b, l, k: (b, l, k)),
                pl.BlockSpec((tk, C), lambda b, l, k: (k, 0)),
                pl.BlockSpec((1, C), lambda b, l, k: (0, 0)),
                pl.BlockSpec((1, tl, C), lambda b, l, k: (b, l, 0)),
                pl.BlockSpec((1, 1, C), lambda b, l, k: (b, 0, 0))]
    args = [attn_flat, wo, bo, x, extra1, extra2]
    if extra3 is None:
        in_specs.append(pl.BlockSpec((1, 1, C), lambda b, l, k: (b, 0, 0)))
    else:
        in_specs.append(pl.BlockSpec((1, C), lambda b, l, k: (0, 0)))
        in_specs.append(pl.BlockSpec((1, C), lambda b, l, k: (0, 0)))
        args.append(extra3)
    return pl.pallas_call(
        functools.partial(kernel_fn, eps=eps),
        grid=grid,
        in_specs=in_specs,
        out_specs=[pl.BlockSpec((1, tl, C), lambda b, l, k: (b, l, 0)),
                   pl.BlockSpec((1, tl, C), lambda b, l, k: (b, l, 0))],
        out_shape=[jax.ShapeDtypeStruct((B, L, C), x.dtype),
                   jax.ShapeDtypeStruct((B, L, C), jnp.bfloat16)],
        scratch_shapes=[pltpu.VMEM((tl, C), jnp.float32)],
        compiler_params=_cparams("parallel", "parallel", "arbitrary"),
    )(*args)


def oproj_self_residual(attn_flat, wo, bo, x, e2, n3w, n3b, *, eps=1e-6):
    return _oproj_call(_oproj_self_kernel, attn_flat, wo, bo, x,
                       e2, n3w, n3b, eps=eps)


def oproj_cross_residual(attn_flat, wo, bo, x, e_shift, e_scale, *, eps=1e-6):
    return _oproj_call(_oproj_cross_kernel, attn_flat, wo, bo, x,
                       e_shift, e_scale, eps=eps)


# ------------- kernel 5: FFN (hidden-tiled) + residual addcmul ---------------

def _ffn_res_kernel(h_ref, w1_ref, b1_ref, w2_ref, b2_ref, x_ref, e5_ref,
                    o_ref, acc_ref):
    ff = pl.program_id(2)

    @pl.when(ff == 0)
    def _():
        acc_ref[...] = jnp.zeros_like(acc_ref)

    h = h_ref[0].astype(jnp.bfloat16)                       # [tl, C]
    hid = (jnp.dot(h, w1_ref[...], preferred_element_type=jnp.float32)
           + b1_ref[...].astype(jnp.float32))
    c = 0.7978845608028654                                  # sqrt(2/pi)
    hid = 0.5 * hid * (1.0 + jnp.tanh(c * (hid + 0.044715 * hid * hid * hid)))
    acc_ref[...] += jnp.dot(hid.astype(jnp.bfloat16), w2_ref[...],
                            preferred_element_type=jnp.float32)

    @pl.when(ff == pl.num_programs(2) - 1)
    def _():
        y = acc_ref[...] + b2_ref[...].astype(jnp.float32)
        o_ref[0] = (x_ref[0].astype(jnp.float32)
                    + y * e5_ref[0].astype(jnp.float32)).astype(o_ref.dtype)


def ffn_residual(h, w1, b1, w2, b2, x, e5):
    B, L, C = x.shape
    F = w1.shape[1]
    tl = _row_tile(L, ROW_T)
    tf = _lane_tile(F, F_T)
    grid = (B, L // tl, F // tf)
    return pl.pallas_call(
        _ffn_res_kernel,
        grid=grid,
        in_specs=[
            pl.BlockSpec((1, tl, C), lambda b, l, f: (b, l, 0)),
            pl.BlockSpec((C, tf), lambda b, l, f: (0, f)),
            pl.BlockSpec((1, tf), lambda b, l, f: (0, f)),
            pl.BlockSpec((tf, C), lambda b, l, f: (f, 0)),
            pl.BlockSpec((1, C), lambda b, l, f: (0, 0)),
            pl.BlockSpec((1, tl, C), lambda b, l, f: (b, l, 0)),
            pl.BlockSpec((1, 1, C), lambda b, l, f: (b, 0, 0)),
        ],
        out_specs=pl.BlockSpec((1, tl, C), lambda b, l, f: (b, l, 0)),
        out_shape=jax.ShapeDtypeStruct((B, L, C), x.dtype),
        scratch_shapes=[pltpu.VMEM((tl, C), jnp.float32)],
        compiler_params=_cparams("parallel", "parallel", "arbitrary"),
    )(h, w1, b1, w2, b2, x, e5)


# ------------------------------ RoPE tables ----------------------------------
# TODO(synk): rope_apply_/pay_attention are external in the reference source;
# this uses Wan's (F,H,W) frequency split with rotate-half pairing in f32
# (the reference rotates interleaved complex pairs in f64, and supports
# per-sample grid_sizes).

def make_rope_tables(head_dim, max_len=1024, theta=10000.0):
    sub = (head_dim - 4 * (head_dim // 6), 2 * (head_dim // 6), 2 * (head_dim // 6))
    tables = []
    for dd in sub:
        inv = 1.0 / theta ** (jnp.arange(0, dd, 2, dtype=jnp.float32) / dd)
        tables.append(jnp.outer(jnp.arange(max_len, dtype=jnp.float32), inv))
    return tables


def rope_cos_sin(grid_fhw, tables):
    F, H, W = grid_fhw
    a_f = jnp.broadcast_to(tables[0][:F][:, None, None, :],
                           (F, H, W, tables[0].shape[-1]))
    a_h = jnp.broadcast_to(tables[1][:H][None, :, None, :],
                           (F, H, W, tables[1].shape[-1]))
    a_w = jnp.broadcast_to(tables[2][:W][None, None, :, :],
                           (F, H, W, tables[2].shape[-1]))
    ang = jnp.concatenate([a_f, a_h, a_w], axis=-1).reshape(F * H * W, -1)  # [L, d/2]
    cos = jnp.concatenate([jnp.cos(ang), jnp.cos(ang)], axis=-1)            # [L, d]
    sin = jnp.concatenate([jnp.sin(ang), jnp.sin(ang)], axis=-1)            # [L, d]
    return cos, sin


# ------------------------------- parameters ----------------------------------

def init_params(key, dim, ffn_dim, num_heads):
    keys = jax.random.split(key, 16)

    def lin(k, din, dout, scale=0.02):
        k1, k2 = jax.random.split(k)
        return {'w': (jax.random.normal(k1, (din, dout), jnp.float32)
                      * scale).astype(jnp.bfloat16),
                'b': jax.random.normal(k2, (1, dout), jnp.float32) * scale}

    return {
        'modulation': jax.random.normal(keys[0], (1, 6, dim), jnp.float32)
                      / math.sqrt(dim),
        'norm3_w': jnp.ones((1, dim), jnp.float32),
        'norm3_b': jnp.zeros((1, dim), jnp.float32),
        'self_attn': {
            'q': lin(keys[1], dim, dim), 'k': lin(keys[2], dim, dim),
            'v': lin(keys[3], dim, dim), 'o': lin(keys[4], dim, dim),
            'norm_q': jnp.ones((1, dim), jnp.float32),
            'norm_k': jnp.ones((1, dim), jnp.float32),
        },
        'cross_attn': {  # t2v_cross_attn
            'q': lin(keys[5], dim, dim), 'k': lin(keys[6], dim, dim),
            'v': lin(keys[7], dim, dim), 'o': lin(keys[8], dim, dim),
            'norm_q': jnp.ones((1, dim), jnp.float32),
            'norm_k': jnp.ones((1, dim), jnp.float32),
        },
        'ffn': {
            'w1': (jax.random.normal(keys[9], (dim, ffn_dim), jnp.float32)
                   * 0.02).astype(jnp.bfloat16),
            'b1': jax.random.normal(keys[10], (1, ffn_dim), jnp.float32) * 0.02,
            'w2': (jax.random.normal(keys[11], (ffn_dim, dim), jnp.float32)
                   * 0.02).astype(jnp.bfloat16),
            'b2': jax.random.normal(keys[12], (1, dim), jnp.float32) * 0.02,
        },
    }


# ------------------------------- forward pass --------------------------------

def wan_attention_block(params, x, e, seq_lens, grid_fhw, rope_tables,
                        context, context_lens, *, num_heads, eps=1e-6):
    """cross_attn_type='t2v_cross_attn', qk_norm=True, cross_attn_norm=True."""
    # TODO(synk): reference self-attn path (pay_attention without k_lens)
    # ignores seq_lens, so we do too.
    del seq_lens
    B, L, C = x.shape
    Lk = context.shape[1]
    n = num_heads
    d = C // n
    scale = 1.0 / math.sqrt(d)

    e_mod = params['modulation'] + e                        # [B, 6, C] (tiny)
    e_c = [e_mod[:, i:i + 1, :] for i in range(6)]          # 6 x [B, 1, C]
    cos, sin = rope_cos_sin(grid_fhw, rope_tables)          # [L, d] each

    # ----- self attention: (LN*(1+e1)+e0 fused) -> QKV + RMSNorm + RoPE +
    #       q-scale -> per-head flash -> o-proj fused with (x += y*e2) + norm3
    sa = params['self_attn']
    q, k, v = fused_proj(
        x, [sa['q']['w'], sa['k']['w'], sa['v']['w']],
        [sa['q']['b'], sa['k']['b'], sa['v']['b']],
        [sa['norm_q'], sa['norm_k']], (True, True, False),
        rope_flags=(True, True, False), scale_flags=(True, False, False),
        ln_shift=e_c[0], ln_scale=e_c[1],
        rope_cos=cos, rope_sin=sin, num_heads=n, scale=scale, eps=eps)
    attn = flash_attention(q.reshape(B, L, n, d), k.reshape(B, L, n, d),
                           v.reshape(B, L, n, d))           # [B, L, n, d]
    x, h3 = oproj_self_residual(attn.reshape(B, L, C), sa['o']['w'], sa['o']['b'],
                                x, e_c[2], params['norm3_w'], params['norm3_b'],
                                eps=eps)

    # ----- cross attention (t2v): q from norm3(x) (already fused above);
    #       k/v from context; o-proj fused with (x += y) and norm2*(1+e4)+e3
    ca = params['cross_attn']
    (qc,) = fused_proj(h3, [ca['q']['w']], [ca['q']['b']], [ca['norm_q']],
                       (True,), scale_flags=(True,), num_heads=n, scale=scale,
                       eps=eps)
    kc, vc = fused_proj(context, [ca['k']['w'], ca['v']['w']],
                        [ca['k']['b'], ca['v']['b']], [ca['norm_k']],
                        (True, False), eps=eps)
    attn_c = flash_attention(qc.reshape(B, L, n, d), kc.reshape(B, Lk, n, d),
                             vc.reshape(B, Lk, n, d), k_lens=context_lens)
    x, hf = oproj_cross_residual(attn_c.reshape(B, L, C), ca['o']['w'],
                                 ca['o']['b'], x, e_c[3], e_c[4], eps=eps)

    # ----- FFN (hidden-tiled) fused with (x += y*e5) -----
    fp = params['ffn']
    x = ffn_residual(hf, fp['w1'], fp['b1'], fp['w2'], fp['b2'], x, e_c[5])
    return x


# ----------------------------------- main -------------------------------------

if __name__ == "__main__":
    B, Fr, Hr, Wr = 2, 2, 4, 4
    L = Fr * Hr * Wr                  # 32 video tokens
    dim, ffn_dim, num_heads = 64, 128, 4
    L2 = 16                           # context length

    key = jax.random.PRNGKey(0)
    kp, kx, ke, kc = jax.random.split(key, 4)
    params = init_params(kp, dim, ffn_dim, num_heads)

    x = jax.random.normal(kx, (B, L, dim), jnp.float32)
    e = jax.random.normal(ke, (B, 6, dim), jnp.float32)
    context = jax.random.normal(kc, (B, L2, dim), jnp.float32)
    seq_lens = jnp.full((B,), L, jnp.int32)
    context_lens = jnp.array([L2, 9], jnp.int32)
    rope_tables = make_rope_tables(dim // num_heads)

    out = wan_attention_block(params, x, e, seq_lens, (Fr, Hr, Wr), rope_tables,
                              context, context_lens, num_heads=num_heads)
    out = jax.block_until_ready(out)
    assert out.shape == (B, L, dim)
    assert bool(jnp.all(jnp.isfinite(out)))
    print("KERNEL_OK")
</pallas_src>

<mosaic_0001>
module attributes {stable_mosaic.version = 11 : i64} {
  func.func @kernel(%arg0: i32, %arg1: i32, %arg2: i32, %arg3: memref<1x32x64xf32, #tpu.memory_space<vmem>>, %arg4: memref<1x1x64xf32, #tpu.memory_space<vmem>>, %arg5: memref<1x1x64xf32, #tpu.memory_space<vmem>>, %arg6: memref<64x64xbf16, #tpu.memory_space<vmem>>, %arg7: memref<64x64xbf16, #tpu.memory_space<vmem>>, %arg8: memref<64x64xbf16, #tpu.memory_space<vmem>>, %arg9: memref<1x64xf32, #tpu.memory_space<vmem>>, %arg10: memref<1x64xf32, #tpu.memory_space<vmem>>, %arg11: memref<1x64xf32, #tpu.memory_space<vmem>>, %arg12: memref<1x64xf32, #tpu.memory_space<vmem>>, %arg13: memref<1x64xf32, #tpu.memory_space<vmem>>, %arg14: memref<32x16xf32, #tpu.memory_space<vmem>>, %arg15: memref<32x16xf32, #tpu.memory_space<vmem>>, %arg16: memref<1x32x64xbf16, #tpu.memory_space<vmem>>, %arg17: memref<1x32x64xbf16, #tpu.memory_space<vmem>>, %arg18: memref<1x32x64xbf16, #tpu.memory_space<vmem>>, %arg19: memref<32x64xbf16, #tpu.memory_space<vmem>>, %arg20: memref<32x64xf32, #tpu.memory_space<vmem>>, %arg21: memref<32x64xf32, #tpu.memory_space<vmem>>, %arg22: memref<32x64xf32, #tpu.memory_space<vmem>>) attributes {dimension_semantics = [#tpu.dimension_semantics<parallel>, #tpu.dimension_semantics<parallel>, #tpu.dimension_semantics<arbitrary>], iteration_bounds = array<i64: 2, 1, 1>, scalar_prefetch = 0 : i64, scratch_operands = 4 : i64, tpu.core_type = #tpu.core_type<tc>, window_params = [{transform_indices = @transform_0, window_bounds = array<i64: 1, 32, 64>}, {transform_indices = @transform_1, window_bounds = array<i64: 1, 1, 64>}, {transform_indices = @transform_2, window_bounds = array<i64: 1, 1, 64>}, {transform_indices = @transform_3, window_bounds = array<i64: 64, 64>}, {transform_indices = @transform_4, window_bounds = array<i64: 64, 64>}, {transform_indices = @transform_5, window_bounds = array<i64: 64, 64>}, {pipeline_mode = #tpu.pipeline_mode<synchronous>, transform_indices = @transform_6, window_bounds = array<i64: 1, 64>}, {pipeline_mode = #tpu.pipeline_mode<synchronous>, transform_indices = @transform_7, window_bounds = array<i64: 1, 64>}, {pipeline_mode = #tpu.pipeline_mode<synchronous>, transform_indices = @transform_8, window_bounds = array<i64: 1, 64>}, {pipeline_mode = #tpu.pipeline_mode<synchronous>, transform_indices = @transform_9, window_bounds = array<i64: 1, 64>}, {pipeline_mode = #tpu.pipeline_mode<synchronous>, transform_indices = @transform_10, window_bounds = array<i64: 1, 64>}, {transform_indices = @transform_11, window_bounds = array<i64: 32, 16>}, {transform_indices = @transform_12, window_bounds = array<i64: 32, 16>}, {transform_indices = @transform_13, window_bounds = array<i64: 1, 32, 64>}, {transform_indices = @transform_14, window_bounds = array<i64: 1, 32, 64>}, {transform_indices = @transform_15, window_bounds = array<i64: 1, 32, 64>}]} {
    %c0_i32 = arith.constant 0 : i32
    %0 = arith.cmpi eq, %arg2, %c0_i32 : i32
    %1 = arith.extui %0 : i1 to i32
    %c0_i32_0 = arith.constant 0 : i32
    %2 = arith.cmpi ne, %1, %c0_i32_0 : i32
    scf.if %2 {
      %cst_24 = arith.constant 0.000000e+00 : f32
      %22 = vector.broadcast %cst_24 : f32 to vector<32x64xf32>
      %c0_25 = arith.constant 0 : index
      %c0_26 = arith.constant 0 : index
      %23 = vector.load %arg20[%c0_25, %c0_26] : memref<32x64xf32, #tpu.memory_space<vmem>>, vector<32x64xf32>
      tpu.vector_store %arg20[%c0_25, %c0_26], %22 {strides = array<i32>} : memref<32x64xf32, #tpu.memory_space<vmem>>, vector<32x64xf32>,
      %cst_27 = arith.constant 0.000000e+00 : f32
      %24 = vector.broadcast %cst_27 : f32 to vector<32x64xf32>
      %c0_28 = arith.constant 0 : index
      %c0_29 = arith.constant 0 : index
      %25 = vector.load %arg21[%c0_28, %c0_29] : memref<32x64xf32, #tpu.memory_space<vmem>>, vector<32x64xf32>
      tpu.vector_store %arg21[%c0_28, %c0_29], %24 {strides = array<i32>} : memref<32x64xf32, #tpu.memory_space<vmem>>, vector<32x64xf32>,
      %cst_30 = arith.constant 0.000000e+00 : f32
      %26 = vector.broadcast %cst_30 : f32 to vector<32x64xf32>
      %c0_31 = arith.constant 0 : index
      %c0_32 = arith.constant 0 : index
      %27 = vector.load %arg22[%c0_31, %c0_32] : memref<32x64xf32, #tpu.memory_space<vmem>>, vector<32x64xf32>
      tpu.vector_store %arg22[%c0_31, %c0_32], %26 {strides = array<i32>} : memref<32x64xf32, #tpu.memory_space<vmem>>, vector<32x64xf32>,
      %c0_33 = arith.constant 0 : index
      %c0_34 = arith.constant 0 : index
      %c0_35 = arith.constant 0 : index
      %28 = vector.load %arg3[%c0_33, %c0_34, %c0_35] : memref<1x32x64xf32, #tpu.memory_space<vmem>>, vector<1x32x64xf32>
      %29 = vector.shape_cast %28 : vector<1x32x64xf32> to vector<32x64xf32>
      %cst_36 = arith.constant dense<0.000000e+00> : vector<32xf32>
      %30 = vector.multi_reduction <add>, %29, %cst_36 [1] : vector<32x64xf32> to vector<32xf32>
      %31 = vector.shape_cast %30 : vector<32xf32> to vector<32x1xf32>
      %cst_37 = arith.constant 6.400000e+01 : f32
      %32 = vector.broadcast %cst_37 : f32 to vector<32x1xf32>
      %33 = arith.divf %31, %32 : vector<32x1xf32>
      %34 = vector.broadcast %33 : vector<32x1xf32> to vector<32x64xf32>
      %35 = arith.subf %29, %34 : vector<32x64xf32>
      %36 = arith.mulf %35, %35 : vector<32x64xf32>
      %cst_38 = arith.constant dense<0.000000e+00> : vector<32xf32>
      %37 = vector.multi_reduction <add>, %36, %cst_38 [1] : vector<32x64xf32> to vector<32xf32>
      %38 = vector.shape_cast %37 : vector<32xf32> to vector<32x1xf32>
      %cst_39 = arith.constant 6.400000e+01 : f32
      %39 = vector.broadcast %cst_39 : f32 to vector<32x1xf32>
      %40 = arith.divf %38, %39 : vector<32x1xf32>
      %cst_40 = arith.constant 9.99999997E-7 : f32
      %41 = vector.broadcast %cst_40 : f32 to vector<32x1xf32>
      %42 = arith.addf %40, %41 : vector<32x1xf32>
      %43 = math.rsqrt %42 : vector<32x1xf32>
      %44 = vector.broadcast %43 : vector<32x1xf32> to vector<32x64xf32>
      %45 = arith.mulf %35, %44 : vector<32x64xf32>
      %c0_41 = arith.constant 0 : index
      %c0_42 = arith.constant 0 : index
      %c0_43 = arith.constant 0 : index
      %46 = vector.load %arg5[%c0_41, %c0_42, %c0_43] : memref<1x1x64xf32, #tpu.memory_space<vmem>>, vector<1x1x64xf32>
      %47 = vector.shape_cast %46 : vector<1x1x64xf32> to vector<1x64xf32>
      %cst_44 = arith.constant 1.000000e+00 : f32
      %48 = vector.broadcast %cst_44 : f32 to vector<1x64xf32>
      %49 = arith.addf %48, %47 : vector<1x64xf32>
      %50 = vector.broadcast %49 : vector<1x64xf32> to vector<32x64xf32>
      %51 = arith.mulf %45, %50 : vector<32x64xf32>
      %c0_45 = arith.constant 0 : index
      %c0_46 = arith.constant 0 : index
      %c0_47 = arith.constant 0 : index
      %52 = vector.load %arg4[%c0_45, %c0_46, %c0_47] : memref<1x1x64xf32, #tpu.memory_space<vmem>>, vector<1x1x64xf32>
      %53 = vector.shape_cast %52 : vector<1x1x64xf32> to vector<1x64xf32>
      %54 = vector.broadcast %53 : vector<1x64xf32> to vector<32x64xf32>
      %55 = arith.addf %51, %54 : vector<32x64xf32>
      %56 = arith.truncf %55 : vector<32x64xf32> to vector<32x64xbf16>
      %c0_48 = arith.constant 0 : index
      %c0_49 = arith.constant 0 : index
      %57 = vector.load %arg19[%c0_48, %c0_49] : memref<32x64xbf16, #tpu.memory_space<vmem>>, vector<32x64xbf16>
      tpu.vector_store %arg19[%c0_48, %c0_49], %56 {strides = array<i32>} : memref<32x64xbf16, #tpu.memory_space<vmem>>, vector<32x64xbf16>,
    } else {
    }
    %c0 = arith.constant 0 : index
    %c0_1 = arith.constant 0 : index
    %3 = vector.load %arg19[%c0, %c0_1] : memref<32x64xbf16, #tpu.memory_space<vmem>>, vector<32x64xbf16>
    %c0_2 = arith.constant 0 : index
    %c0_3 = arith.constant 0 : index
    %4 = vector.load %arg20[%c0_2, %c0_3] : memref<32x64xf32, #tpu.memory_space<vmem>>, vector<32x64xf32>
    %c0_4 = arith.constant 0 : index
    %c0_5 = arith.constant 0 : index
    %5 = vector.load %arg6[%c0_4, %c0_5] : memref<64x64xbf16, #tpu.memory_space<vmem>>, vector<64x64xbf16>
    %cst = arith.constant dense<0.000000e+00> : vector<32x64xf32>
    %6 = tpu.matmul %3, %5, %cst {dimension_numbers = #tpu.dot_dimension_numbers<[1], [0], [0], [1], [0, 0, 1, 1], [], []>} : vector<32x64xbf16>, vector<64x64xbf16>, vector<32x64xf32> -> vector<32x64xf32>
    %7 = arith.addf %4, %6 : vector<32x64xf32>
    %c0_6 = arith.constant 0 : index
    %c0_7 = arith.constant 0 : index
    %8 = vector.load %arg20[%c0_6, %c0_7] : memref<32x64xf32, #tpu.memory_space<vmem>>, vector<32x64xf32>
    tpu.vector_store %arg20[%c0_6, %c0_7], %7 {strides = array<i32>} : memref<32x64xf32, #tpu.memory_space<vmem>>, vector<32x64xf32>,
    %c0_8 = arith.constant 0 : index
    %c0_9 = arith.constant 0 : index
    %9 = vector.load %arg21[%c0_8, %c0_9] : memref<32x64xf32, #tpu.memory_space<vmem>>, vector<32x64xf32>
    %c0_10 = arith.constant 0 : index
    %c0_11 = arith.constant 0 : index
    %10 = vector.load %arg7[%c0_10, %c0_11] : memref<64x64xbf16, #tpu.memory_space<vmem>>, vector<64x64xbf16>
    %cst_12 = arith.constant dense<0.000000e+00> : vector<32x64xf32>
    %11 = tpu.matmul %3, %10, %cst_12 {dimension_numbers = #tpu.dot_dimension_numbers<[1], [0], [0], [1], [0, 0, 1, 1], [], []>} : vector<32x64xbf16>, vector<64x64xbf16>, vector<32x64xf32> -> vector<32x64xf32>
    %12 = arith.addf %9, %11 : vector<32x64xf32>
    %c0_13 = arith.constant 0 : index
    %c0_14 = arith.constant 0 : index
    %13 = vector.load %arg21[%c0_13, %c0_14] : memref<32x64xf32, #tpu.memory_space<vmem>>, vector<32x64xf32>
    tpu.vector_store %arg21[%c0_13, %c0_14], %12 {strides = array<i32>} : memref<32x64xf32, #tpu.memory_space<vmem>>, vector<32x64xf32>,
    %c0_15 = arith.constant 0 : index
    %c0_16 = arith.constant 0 : index
    %14 = vector.load %arg22[%c0_15, %c0_16] : memref<32x64xf32, #tpu.memory_space<vmem>>, vector<32x64xf32>
    %c0_17 = arith.constant 0 : index
    %c0_18 = arith.constant 0 : index
    %15 = vector.load %arg8[%c0_17, %c0_18] : memref<64x64xbf16, #tpu.memory_space<vmem>>, vector<64x64xbf16>
    %cst_19 = arith.constant dense<0.000000e+00> : vector<32x64xf32>
    %16 = tpu.matmul %3, %15, %cst_19 {dimension_numbers = #tpu.dot_dimension_numbers<[1], [0], [0], [1], [0, 0, 1, 1], [], []>} : vector<32x64xbf16>, vector<64x64xbf16>, vector<32x64xf32> -> vector<32x64xf32>
    %17 = arith.addf %14, %16 : vector<32x64xf32>
    %c0_20 = arith.constant 0 : index
    %c0_21 = arith.constant 0 : index
    %18 = vector.load %arg22[%c0_20, %c0_21] : memref<32x64xf32, #tpu.memory_space<vmem>>, vector<32x64xf32>
    tpu.vector_store %arg22[%c0_20, %c0_21], %17 {strides = array<i32>} : memref<32x64xf32, #tpu.memory_space<vmem>>, vector<32x64xf32>,
    %c0_i32_22 = arith.constant 0 : i32
    %19 = arith.cmpi eq, %arg2, %c0_i32_22 : i32
    %20 = arith.extui %19 : i1 to i32
    %c0_i32_23 = arith.constant 0 : i32
    %21 = arith.cmpi ne, %20, %c0_i32_23 : i32
    scf.if %21 {
      %c0_24 = arith.constant 0 : index
      %c0_25 = arith.constant 0 : index
      %22 = vector.load %arg20[%c0_24, %c0_25] : memref<32x64xf32, #tpu.memory_space<vmem>>, vector<32x64xf32>
      %c0_26 = arith.constant 0 : index
      %c0_27 = arith.constant 0 : index
      %23 = vector.load %arg9[%c0_26, %c0_27] : memref<1x64xf32, #tpu.memory_space<vmem>>, vector<1x64xf32>
      %24 = vector.broadcast %23 : vector<1x64xf32> to vector<32x64xf32>
      %25 = arith.addf %22, %24 : vector<32x64xf32>
      %26 = arith.mulf %25, %25 : vector<32x64xf32>
      %cst_28 = arith.constant dense<0.000000e+00> : vector<32xf32>
      %27 = vector.multi_reduction <add>, %26, %cst_28 [1] : vector<32x64xf32> to vector<32xf32>
      %28 = vector.shape_cast %27 : vector<32xf32> to vector<32x1xf32>
      %cst_29 = arith.constant 6.400000e+01 : f32
      %29 = vector.broadcast %cst_29 : f32 to vector<32x1xf32>
      %30 = arith.divf %28, %29 : vector<32x1xf32>
      %cst_30 = arith.constant 9.99999997E-7 : f32
      %31 = vector.broadcast %cst_30 : f32 to vector<32x1xf32>
      %32 = arith.addf %30, %31 : vector<32x1xf32>
      %33 = math.rsqrt %32 : vector<32x1xf32>
      %34 = vector.broadcast %33 : vector<32x1xf32> to vector<32x64xf32>
      %35 = arith.mulf %25, %34 : vector<32x64xf32>
      %c0_31 = arith.constant 0 : index
      %c0_32 = arith.constant 0 : index
      %36 = vector.load %arg12[%c0_31, %c0_32] : memref<1x64xf32, #tpu.memory_space<vmem>>, vector<1x64xf32>
      %37 = vector.broadcast %36 : vector<1x64xf32> to vector<32x64xf32>
      %38 = arith.mulf %35, %37 : vector<32x64xf32>
      %39 = vector.shape_cast %38 : vector<32x64xf32> to vector<32x4x16xf32>
      %c0_33 = arith.constant 0 : index
      %c0_34 = arith.constant 0 : index
      %40 = vector.load %arg14[%c0_33, %c0_34] : memref<32x16xf32, #tpu.memory_space<vmem>>, vector<32x16xf32>
      %41 = vector.shape_cast %40 : vector<32x16xf32> to vector<32x1x16xf32>
      %c0_35 = arith.constant 0 : index
      %c0_36 = arith.constant 0 : index
      %42 = vector.load %arg15[%c0_35, %c0_36] : memref<32x16xf32, #tpu.memory_space<vmem>>, vector<32x16xf32>
      %43 = vector.shape_cast %42 : vector<32x16xf32> to vector<32x1x16xf32>
      %44 = vector.broadcast %41 : vector<32x1x16xf32> to vector<32x4x16xf32>
      %45 = arith.mulf %39, %44 : vector<32x4x16xf32>
      %46 = vector.extract_strided_slice %39 {offsets = [0, 0, 8], sizes = [32, 4, 8], strides = [1, 1, 1]} : vector<32x4x16xf32> to vector<32x4x8xf32>
      %cst_37 = arith.constant 0.000000e+00 : f32
      %47 = vector.broadcast %cst_37 : f32 to vector<32x4x8xf32>
      %48 = arith.subf %47, %46 : vector<32x4x8xf32>
      %49 = vector.extract_strided_slice %39 {offsets = [0, 0, 0], sizes = [32, 4, 8], strides = [1, 1, 1]} : vector<32x4x16xf32> to vector<32x4x8xf32>
      %50 = tpu.concatenate %48, %49 in 2 : vector<32x4x8xf32>, vector<32x4x8xf32> -> vector<32x4x16xf32>
      %51 = vector.broadcast %43 : vector<32x1x16xf32> to vector<32x4x16xf32>
      %52 = arith.mulf %50, %51 : vector<32x4x16xf32>
      %53 = arith.addf %45, %52 : vector<32x4x16xf32>
      %54 = vector.shape_cast %53 : vector<32x4x16xf32> to vector<32x64xf32>
      %cst_38 = arith.constant 2.500000e-01 : f32
      %55 = vector.broadcast %cst_38 : f32 to vector<32x64xf32>
      %56 = arith.mulf %54, %55 : vector<32x64xf32>
      %57 = arith.truncf %56 : vector<32x64xf32> to vector<32x64xbf16>
      %c0_39 = arith.constant 0 : index
      %c0_40 = arith.constant 0 : index
      %c0_41 = arith.constant 0 : index
      %58 = vector.load %arg16[%c0_39, %c0_40, %c0_41] : memref<1x32x64xbf16, #tpu.memory_space<vmem>>, vector<1x32x64xbf16>
      %59 = vector.shape_cast %58 : vector<1x32x64xbf16> to vector<32x64xbf16>
      %60 = vector.shape_cast %57 : vector<32x64xbf16> to vector<1x32x64xbf16>
      tpu.vector_store %arg16[%c0_39, %c0_40, %c0_41], %60 {strides = array<i32>} : memref<1x32x64xbf16, #tpu.memory_space<vmem>>, vector<1x32x64xbf16>,
      %c0_42 = arith.constant 0 : index
      %c0_43 = arith.constant 0 : index
      %61 = vector.load %arg21[%c0_42, %c0_43] : memref<32x64xf32, #tpu.memory_space<vmem>>, vector<32x64xf32>
      %c0_44 = arith.constant 0 : index
      %c0_45 = arith.constant 0 : index
      %62 = vector.load %arg10[%c0_44, %c0_45] : memref<1x64xf32, #tpu.memory_space<vmem>>, vector<1x64xf32>
      %63 = vector.broadcast %62 : vector<1x64xf32> to vector<32x64xf32>
      %64 = arith.addf %61, %63 : vector<32x64xf32>
      %65 = arith.mulf %64, %64 : vector<32x64xf32>
      %cst_46 = arith.constant dense<0.000000e+00> : vector<32xf32>
      %66 = vector.multi_reduction <add>, %65, %cst_46 [1] : vector<32x64xf32> to vector<32xf32>
      %67 = vector.shape_cast %66 : vector<32xf32> to vector<32x1xf32>
      %cst_47 = arith.constant 6.400000e+01 : f32
      %68 = vector.broadcast %cst_47 : f32 to vector<32x1xf32>
      %69 = arith.divf %67, %68 : vector<32x1xf32>
      %cst_48 = arith.constant 9.99999997E-7 : f32
      %70 = vector.broadcast %cst_48 : f32 to vector<32x1xf32>
      %71 = arith.addf %69, %70 : vector<32x1xf32>
      %72 = math.rsqrt %71 : vector<32x1xf32>
      %73 = vector.broadcast %72 : vector<32x1xf32> to vector<32x64xf32>
      %74 = arith.mulf %64, %73 : vector<32x64xf32>
      %c0_49 = arith.constant 0 : index
      %c0_50 = arith.constant 0 : index
      %75 = vector.load %arg13[%c0_49, %c0_50] : memref<1x64xf32, #tpu.memory_space<vmem>>, vector<1x64xf32>
      %76 = vector.broadcast %75 : vector<1x64xf32> to vector<32x64xf32>
      %77 = arith.mulf %74, %76 : vector<32x64xf32>
      %78 = vector.shape_cast %77 : vector<32x64xf32> to vector<32x4x16xf32>
      %c0_51 = arith.constant 0 : index
      %c0_52 = arith.constant 0 : index
      %79 = vector.load %arg14[%c0_51, %c0_52] : memref<32x16xf32, #tpu.memory_space<vmem>>, vector<32x16xf32>
      %80 = vector.shape_cast %79 : vector<32x16xf32> to vector<32x1x16xf32>
      %c0_53 = arith.constant 0 : index
      %c0_54 = arith.constant 0 : index
      %81 = vector.load %arg15[%c0_53, %c0_54] : memref<32x16xf32, #tpu.memory_space<vmem>>, vector<32x16xf32>
      %82 = vector.shape_cast %81 : vector<32x16xf32> to vector<32x1x16xf32>
      %83 = vector.broadcast %80 : vector<32x1x16xf32> to vector<32x4x16xf32>
      %84 = arith.mulf %78, %83 : vector<32x4x16xf32>
      %85 = vector.extract_strided_slice %78 {offsets = [0, 0, 8], sizes = [32, 4, 8], strides = [1, 1, 1]} : vector<32x4x16xf32> to vector<32x4x8xf32>
      %cst_55 = arith.constant 0.000000e+00 : f32
      %86 = vector.broadcast %cst_55 : f32 to vector<32x4x8xf32>
      %87 = arith.subf %86, %85 : vector<32x4x8xf32>
      %88 = vector.extract_strided_slice %78 {offsets = [0, 0, 0], sizes = [32, 4, 8], strides = [1, 1, 1]} : vector<32x4x16xf32> to vector<32x4x8xf32>
      %89 = tpu.concatenate %87, %88 in 2 : vector<32x4x8xf32>, vector<32x4x8xf32> -> vector<32x4x16xf32>
      %90 = vector.broadcast %82 : vector<32x1x16xf32> to vector<32x4x16xf32>
      %91 = arith.mulf %89, %90 : vector<32x4x16xf32>
      %92 = arith.addf %84, %91 : vector<32x4x16xf32>
      %93 = vector.shape_cast %92 : vector<32x4x16xf32> to vector<32x64xf32>
      %94 = arith.truncf %93 : vector<32x64xf32> to vector<32x64xbf16>
      %c0_56 = arith.constant 0 : index
      %c0_57 = arith.constant 0 : index
      %c0_58 = arith.constant 0 : index
      %95 = vector.load %arg17[%c0_56, %c0_57, %c0_58] : memref<1x32x64xbf16, #tpu.memory_space<vmem>>, vector<1x32x64xbf16>
      %96 = vector.shape_cast %95 : vector<1x32x64xbf16> to vector<32x64xbf16>
      %97 = vector.shape_cast %94 : vector<32x64xbf16> to vector<1x32x64xbf16>
      tpu.vector_store %arg17[%c0_56, %c0_57, %c0_58], %97 {strides = array<i32>} : memref<1x32x64xbf16, #tpu.memory_space<vmem>>, vector<1x32x64xbf16>,
      %c0_59 = arith.constant 0 : index
      %c0_60 = arith.constant 0 : index
      %98 = vector.load %arg22[%c0_59, %c0_60] : memref<32x64xf32, #tpu.memory_space<vmem>>, vector<32x64xf32>
      %c0_61 = arith.constant 0 : index
      %c0_62 = arith.constant 0 : index
      %99 = vector.load %arg11[%c0_61, %c0_62] : memref<1x64xf32, #tpu.memory_space<vmem>>, vector<1x64xf32>
      %100 = vector.broadcast %99 : vector<1x64xf32> to vector<32x64xf32>
      %101 = arith.addf %98, %100 : vector<32x64xf32>
      %102 = arith.truncf %101 : vector<32x64xf32> to vector<32x64xbf16>
      %c0_63 = arith.constant 0 : index
      %c0_64 = arith.constant 0 : index
      %c0_65 = arith.constant 0 : index
      %103 = vector.load %arg18[%c0_63, %c0_64, %c0_65] : memref<1x32x64xbf16, #tpu.memory_space<vmem>>, vector<1x32x64xbf16>
      %104 = vector.shape_cast %103 : vector<1x32x64xbf16> to vector<32x64xbf16>
      %105 = vector.shape_cast %102 : vector<32x64xbf16> to vector<1x32x64xbf16>
      tpu.vector_store %arg18[%c0_63, %c0_64, %c0_65], %105 {strides = array<i32>} : memref<1x32x64xbf16, #tpu.memory_space<vmem>>, vector<1x32x64xbf16>,
    } else {
    }
    return
  }
  func.func @transform_0(%arg0: i32, %arg1: i32, %arg2: i32) -> (i32, i32, i32) {
    %c0_i32 = arith.constant 0 : i32
    %c0_i32_0 = arith.constant 0 : i32
    return %arg0, %arg1, %c0_i32 : i32, i32, i32
  }
  func.func @transform_1(%arg0: i32, %arg1: i32, %arg2: i32) -> (i32, i32, i32) {
    %c0_i32 = arith.constant 0 : i32
    %c0_i32_0 = arith.constant 0 : i32
    %c0_i32_1 = arith.constant 0 : i32
    return %arg0, %c0_i32, %c0_i32_0 : i32, i32, i32
  }
  func.func @transform_2(%arg0: i32, %arg1: i32, %arg2: i32) -> (i32, i32, i32) {
    %c0_i32 = arith.constant 0 : i32
    %c0_i32_0 = arith.constant 0 : i32
    %c0_i32_1 = arith.constant 0 : i32
    return %arg0, %c0_i32, %c0_i32_0 : i32, i32, i32
  }
  func.func @transform_3(%arg0: i32, %arg1: i32, %arg2: i32) -> (i32, i32) {
    %c0_i32 = arith.constant 0 : i32
    %c0_i32_0 = arith.constant 0 : i32
    return %arg2, %c0_i32 : i32, i32
  }
  func.func @transform_4(%arg0: i32, %arg1: i32, %arg2: i32) -> (i32, i32) {
    %c0_i32 = arith.constant 0 : i32
    %c0_i32_0 = arith.constant 0 : i32
    return %arg2, %c0_i32 : i32, i32
  }
  func.func @transform_5(%arg0: i32, %arg1: i32, %arg2: i32) -> (i32, i32) {
    %c0_i32 = arith.constant 0 : i32
    %c0_i32_0 = arith.constant 0 : i32
    return %arg2, %c0_i32 : i32, i32
  }
  func.func @transform_6(%arg0: i32, %arg1: i32, %arg2: i32) -> (i32, i32) {
    %c0_i32 = arith.constant 0 : i32
    %c0_i32_0 = arith.constant 0 : i32
    %c0_i32_1 = arith.constant 0 : i32
    return %c0_i32, %c0_i32_0 : i32, i32
  }
  func.func @transform_7(%arg0: i32, %arg1: i32, %arg2: i32) -> (i32, i32) {
    %c0_i32 = arith.constant 0 : i32
    %c0_i32_0 = arith.constant 0 : i32
    %c0_i32_1 = arith.constant 0 : i32
    return %c0_i32, %c0_i32_0 : i32, i32
  }
  func.func @transform_8(%arg0: i32, %arg1: i32, %arg2: i32) -> (i32, i32) {
    %c0_i32 = arith.constant 0 : i32
    %c0_i32_0 = arith.constant 0 : i32
    %c0_i32_1 = arith.constant 0 : i32
    return %c0_i32, %c0_i32_0 : i32, i32
  }
  func.func @transform_9(%arg0: i32, %arg1: i32, %arg2: i32) -> (i32, i32) {
    %c0_i32 = arith.constant 0 : i32
    %c0_i32_0 = arith.constant 0 : i32
    %c0_i32_1 = arith.constant 0 : i32
    return %c0_i32, %c0_i32_0 : i32, i32
  }
  func.func @transform_10(%arg0: i32, %arg1: i32, %arg2: i32) -> (i32, i32) {
    %c0_i32 = arith.constant 0 : i32
    %c0_i32_0 = arith.constant 0 : i32
    %c0_i32_1 = arith.constant 0 : i32
    return %c0_i32, %c0_i32_0 : i32, i32
  }
  func.func @transform_11(%arg0: i32, %arg1: i32, %arg2: i32) -> (i32, i32) {
    %c0_i32 = arith.constant 0 : i32
    %c0_i32_0 = arith.constant 0 : i32
    return %arg1, %c0_i32 : i32, i32
  }
  func.func @transform_12(%arg0: i32, %arg1: i32, %arg2: i32) -> (i32, i32) {
    %c0_i32 = arith.constant 0 : i32
    %c0_i32_0 = arith.constant 0 : i32
    return %arg1, %c0_i32 : i32, i32
  }
  func.func @transform_13(%arg0: i32, %arg1: i32, %arg2: i32) -> (i32, i32, i32) {
    %c0_i32 = arith.constant 0 : i32
    %c0_i32_0 = arith.constant 0 : i32
    return %arg0, %arg1, %c0_i32 : i32, i32, i32
  }
  func.func @transform_14(%arg0: i32, %arg1: i32, %arg2: i32) -> (i32, i32, i32) {
    %c0_i32 = arith.constant 0 : i32
    %c0_i32_0 = arith.constant 0 : i32
    return %arg0, %arg1, %c0_i32 : i32, i32, i32
  }
  func.func @transform_15(%arg0: i32, %arg1: i32, %arg2: i32) -> (i32, i32, i32) {
    %c0_i32 = arith.constant 0 : i32
    %c0_i32_0 = arith.constant 0 : i32
    return %arg0, %arg1, %c0_i32 : i32, i32, i32
  }
}

</mosaic_0001>

<llo_original>
// kernel: tpu_custom_call.1
$region0: #{tpu_custom_call.1}
  #allocation0 [shape = 'u32[]', space=smem, size = 0x4, offset = 0x4, fixed_abs, tag = 'smem constant byte address 0x4 - core index']
  #allocation1 [shape = 'u32[144,128]{1,0:T(1,128)}', space=vmem, size = 0x12000, scoped, tag = 'internal scratch']
  #allocation2 [shape = 'bf16[32,64]{1,0:T(8,128)(2,1)}', space=vmem, size = 0x2000, scoped, tag = 'scratch operand']
  #allocation3 [shape = 'f32[32,64]{1,0:T(8,128)}', space=vmem, size = 0x4000, scoped, tag = 'scratch operand']
  #allocation4 [shape = 'f32[32,64]{1,0:T(8,128)}', space=vmem, size = 0x4000, scoped, tag = 'scratch operand']
  #allocation5 [shape = 'f32[32,64]{1,0:T(8,128)}', space=vmem, size = 0x4000, scoped, tag = 'scratch operand']
  %s0 = inlined_call_operand.vmem [shape: f32[2,32,64], index: 0, kind: input, shape index: {}]
  %s1 = inlined_call_operand.hbm [shape: f32[2,1,64], index: 1, kind: input, shape index: {}]
  %s2 = inlined_call_operand.vmem [shape: f32[2,1,64], index: 2, kind: input, shape index: {}]
  %s3 = inlined_call_operand.vmem [shape: bf16[64,64], index: 3, kind: input, shape index: {}]
  %s4 = inlined_call_operand.hbm [shape: bf16[64,64], index: 4, kind: input, shape index: {}]
  %s5 = inlined_call_operand.hbm [shape: bf16[64,64], index: 5, kind: input, shape index: {}]
  %s6 = inlined_call_operand.vmem [shape: f32[1,64], index: 6, kind: input, shape index: {}]
  %s7 = inlined_call_operand.vmem [shape: f32[1,64], index: 7, kind: input, shape index: {}]
  %s8 = inlined_call_operand.hbm [shape: f32[1,64], index: 8, kind: input, shape index: {}]
  %s9 = inlined_call_operand.hbm [shape: f32[1,64], index: 9, kind: input, shape index: {}]
  %s10 = inlined_call_operand.hbm [shape: f32[1,64], index: 10, kind: input, shape index: {}]
  %s11 = inlined_call_operand.vmem [shape: f32[32,16], index: 11, kind: input, shape index: {}]
  %s12 = inlined_call_operand.vmem [shape: f32[32,16], index: 12, kind: input, shape index: {}]
  %s13 = inlined_call_operand.hbm [shape: bf16[2,32,64], index: 13, kind: output, shape index: {0}]
  %s14 = inlined_call_operand.hbm [shape: bf16[2,32,64], index: 14, kind: output, shape index: {1}]
  %s15 = inlined_call_operand.hbm [shape: bf16[2,32,64], index: 15, kind: output, shape index: {2}]
  %16 = xla_tuple %s13, %s14, %s15
  %s17 = sld [smem:[#allocation0]]
  $region133: #{tpu_custom_call.1} parent=0
    _
  %s19 = ssub.s32 1, %s17
  %s20 = scalar_select 0, %s19, %s17
  $region1: #{tpu_custom_call.1} parent=0
    #allocation6 [shape = 'u8[1024]{0}', space=vmem, size = 0x400, scoped, tag = 'input window, operand 1']
    #allocation7 [shape = 's32[2]{0}', space=sflag, size = 0x8, scoped, tag = 'scoped memory for tpu_custom_call.1']
    #allocation8 [shape = 's32[2]{0}', space=sflag, size = 0x8, scoped, tag = 'scoped memory for tpu_custom_call.1']
    #allocation9 [shape = 'u8[16384]{0}', space=vmem, size = 0x4000, scoped, tag = 'input window, operand 4, single buffered']
    #allocation10 [shape = 's32[1]{0}', space=sflag, size = 0x4, scoped, tag = 'scoped memory for tpu_custom_call.1']
    #allocation11 [shape = 'u8[16384]{0}', space=vmem, size = 0x4000, scoped, tag = 'input window, operand 5, single buffered']
    #allocation12 [shape = 'u8[512]{0}', space=vmem, size = 0x400, scoped, tag = 'input window, operand 8, single buffered']
    #allocation13 [shape = 's32[1]{0}', space=sflag, size = 0x4, scoped, tag = 'scoped memory for tpu_custom_call.1']
    #allocation14 [shape = 'u8[512]{0}', space=vmem, size = 0x400, scoped, tag = 'input window, operand 9, single buffered']
    #allocation15 [shape = 'u8[512]{0}', space=vmem, size = 0x400, scoped, tag = 'input window, operand 10, single buffered']
    #allocation16 [shape = 's32[1]{0}', space=sflag, size = 0x4, scoped, tag = 'scoped memory for tpu_custom_call.1']
    #allocation17 [shape = 'u8[16384]{0}', space=vmem, size = 0x4000, scoped, tag = 'output window, operand 0']
    #allocation18 [shape = 'u8[16384]{0}', space=vmem, size = 0x4000, scoped, tag = 'output window, operand 1']
    #allocation19 [shape = 's32[2]{0}', space=sflag, size = 0x8, scoped, tag = 'scoped memory for tpu_custom_call.1']
    #allocation20 [shape = 'u8[16384]{0}', space=vmem, size = 0x4000, scoped, tag = 'output window, operand 2']
    %21 = vsyncpa [#allocation7], 0
    %s22 = scalar_lea.sflag [#allocation7], 1
    %23 = vsyncpa %s22, 0
    %24 = vsyncpa [#allocation10], 0
    %25 = vsyncpa [#allocation13], 0
    %26 = vsyncpa [#allocation16], 0
    %27 = vsyncpa [#allocation8], 0
    %s28 = scalar_lea.sflag [#allocation8], 1
    %29 = vsyncpa %s28, 0
    %30 = vsyncpa [#allocation19], 0
    %s31 = scalar_lea.sflag [#allocation19], 1
    %32 = vsyncpa %s31, 0
    loop: start=0, step=1, limit=4
    $region2: #{tpu_custom_call.1} parent=1 // loop_pre_header
      _
    $region3: #{tpu_custom_call.1} parent=1 // loop_header
      %s34 = sphi 0, %s38
      %p35 = scmp.ge.s32.totalorder %s34, 4
      %s41 = sphi 0, %s60
      %s42 = sphi 0, %s56
      %s43 = sphi 0, %s52
      %s44 = sphi 0, %s41
      %s45 = sphi 0, %s42
      %s46 = sphi 0, %s43
      %s47 = sphi 0, %s44
      %s48 = sphi 0, %s45
      %s49 = sphi 0, %s46
      %s65 = sphi 0, %s67
      %s68 = sphi 0, %s65
      %s69 = sphi 0, %s68
      %s85 = sphi 0, %s69
      %s91 = sphi 0, %s93
      %s94 = sphi 0, %s91
      %s95 = sphi 0, %s94
      %s111 = sphi 0, %s95
      %s117 = sphi 0, %s119
      %s120 = sphi 0, %s117
      %s121 = sphi 0, %s120
      %s137 = sphi 0, %s121
      %s143 = sphi 0, %s145
      %s146 = sphi 0, %s143
      %s147 = sphi 0, %s146
      %s163 = sphi 0, %s147
      %s169 = sphi 0, %s171
      %s172 = sphi 0, %s169
      %s173 = sphi 0, %s172
      %s189 = sphi 0, %s173
      %s195 = sphi 0, %s197
      %s198 = sphi 0, %s195
      %s199 = sphi 0, %s198
      %s215 = sphi 0, %s199
      %s219 = sphi 0, %s219
      %s221 = sphi 0, %s219
      %s222 = sphi 0, %s221
      %s236 = sphi 0, %s222
      %s240 = sphi 0, %s240
      %s242 = sphi 0, %s240
      %s243 = sphi 0, %s242
      %s257 = sphi 0, %s243
      %s261 = sphi 0, %s261
      %s263 = sphi 0, %s261
      %s264 = sphi 0, %s263
      %s278 = sphi 0, %s264
      %s282 = sphi 0, %s282
      %s284 = sphi 0, %s282
      %s285 = sphi 0, %s284
      %s299 = sphi 0, %s285
      %s303 = sphi 0, %s303
      %s305 = sphi 0, %s303
      %s306 = sphi 0, %s305
      %s320 = sphi 0, %s306
      %s326 = sphi 0, %s328
      %s329 = sphi 0, %s326
      %s330 = sphi 0, %s329
      %s346 = sphi 0, %s330
      %s352 = sphi 0, %s354
      %s355 = sphi 0, %s352
      %s356 = sphi 0, %s355
      %s372 = sphi 0, %s356
      %s380 = sphi 0, %s382
      %s383 = sphi 0, %s380
      %s384 = sphi 0, %s383
      %s400 = sphi 0, %s384
      %s408 = sphi 0, %s410
      %s411 = sphi 0, %s408
      %s412 = sphi 0, %s411
      %s428 = sphi 0, %s412
      %s436 = sphi 0, %s438
      %s439 = sphi 0, %s436
      %s440 = sphi 0, %s439
      %s456 = sphi 0, %s440
    $region4: #{tpu_custom_call.1} parent=1 // loop_header_branch
      %37 = sbr.rel (%p35) target = $region8
    $region5: #{tpu_custom_call.1} parent=1 // loop_body
      %s39 = ssub.s32 %s34, 1
      %s40 = ssub.s32 %s34, 2
      %s50 = sadd.s32 1, %s43
      %p51 = scmp.ge.s32.totalorder %s50, 1
      %s52 = scalar_select %p51, 0, %s50
      %s53 = sadd.s32 1, %s42
      %s54 = scalar_select %p51, %s53, %s42
      %p55 = scmp.ge.s32.totalorder %s54, 1
      %s56 = scalar_select %p55, 0, %s54
      %s57 = sadd.s32 1, %s41
      %s58 = scalar_select %p55, %s57, %s41
      %p59 = scmp.ge.s32.totalorder %s58, 2
      %s60 = scalar_select %p59, 0, %s58
      %s61 = ssub.s32 %s41, %s60
      %s62 = ssub.s32 %s42, %s56
      %s63 = sor.u32 %s61, %s62
      %p64 = scmp.eq.s32.totalorder %s63, 0
      %s66 = sadd.s32 %s65, 1
      %s67 = scalar_select %p64, %s65, %s66
      %p70 = pneg %p64
      %p71 = scmp.eq.s32.totalorder %s34, 1
      %p72 = por %p70, %p71
      %p73 = scmp.ne.s32.totalorder %s65, %s68
      %p74 = scmp.eq.s32.totalorder %s34, 0
      %p75 = por %p73, %p74
      %p76 = scmp.ne.s32.totalorder %s65, %s68
      %p77 = scmp.eq.s32.totalorder %s39, 1
      %p78 = por %p76, %p77
      %p79 = scmp.ne.s32.totalorder %s68, %s69
      %p80 = scmp.eq.s32.totalorder %s39, 0
      %p81 = por %p79, %p80
      %p82 = scmp.ne.s32.totalorder %s68, %s69
      %p83 = scmp.eq.s32.totalorder %s40, 1
      %p84 = por %p82, %p83
      %p86 = scmp.ne.s32.totalorder %s69, %s85
      %p87 = scmp.eq.s32.totalorder %s40, 0
      %p88 = por %p86, %p87
      %s89 = ssub.s32 %s41, %s60
      %p90 = scmp.eq.s32.totalorder %s89, 0
      %s92 = sadd.s32 %s91, 1
      %s93 = scalar_select %p90, %s91, %s92
      %p96 = pneg %p90
      %p97 = scmp.eq.s32.totalorder %s34, 1
      %p98 = por %p96, %p97
      %p99 = scmp.ne.s32.totalorder %s91, %s94
      %p100 = scmp.eq.s32.totalorder %s34, 0
      %p101 = por %p99, %p100
      %p102 = scmp.ne.s32.totalorder %s91, %s94
      %p103 = scmp.eq.s32.totalorder %s39, 1
      %p104 = por %p102, %p103
      %p105 = scmp.ne.s32.totalorder %s94, %s95
      %p106 = scmp.eq.s32.totalorder %s39, 0
      %p107 = por %p105, %p106
      %p108 = scmp.ne.s32.totalorder %s94, %s95
      %p109 = scmp.eq.s32.totalorder %s40, 1
      %p110 = por %p108, %p109
      %p112 = scmp.ne.s32.totalorder %s95, %s111
      %p113 = scmp.eq.s32.totalorder %s40, 0
      %p114 = por %p112, %p113
      %s115 = ssub.s32 %s41, %s60
      %p116 = scmp.eq.s32.totalorder %s115, 0
      %s118 = sadd.s32 %s117, 1
      %s119 = scalar_select %p116, %s117, %s118
      %p122 = pneg %p116
      %p123 = scmp.eq.s32.totalorder %s34, 1
      %p124 = por %p122, %p123
      %p125 = scmp.ne.s32.totalorder %s117, %s120
      %p126 = scmp.eq.s32.totalorder %s34, 0
      %p127 = por %p125, %p126
      %p128 = scmp.ne.s32.totalorder %s117, %s120
      %p129 = scmp.eq.s32.totalorder %s39, 1
      %p130 = por %p128, %p129
      %p131 = scmp.ne.s32.totalorder %s120, %s121
      %p132 = scmp.eq.s32.totalorder %s39, 0
      %p133 = por %p131, %p132
      %p134 = scmp.ne.s32.totalorder %s120, %s121
      %p135 = scmp.eq.s32.totalorder %s40, 1
      %p136 = por %p134, %p135
      %p138 = scmp.ne.s32.totalorder %s121, %s137
      %p139 = scmp.eq.s32.totalorder %s40, 0
      %p140 = por %p138, %p139
      %s141 = ssub.s32 %s43, %s52
      %p142 = scmp.eq.s32.totalorder %s141, 0
      %s144 = sadd.s32 %s143, 1
      %s145 = scalar_select %p142, %s143, %s144
      %p148 = pneg %p142
      %p149 = scmp.eq.s32.totalorder %s34, 1
      %p150 = por %p148, %p149
      %p151 = scmp.ne.s32.totalorder %s143, %s146
      %p152 = scmp.eq.s32.totalorder %s34, 0
      %p153 = por %p151, %p152
      %p154 = scmp.ne.s32.totalorder %s143, %s146
      %p155 = scmp.eq.s32.totalorder %s39, 1
      %p156 = por %p154, %p155
      %p157 = scmp.ne.s32.totalorder %s146, %s147
      %p158 = scmp.eq.s32.totalorder %s39, 0
      %p159 = por %p157, %p158
      %p160 = scmp.ne.s32.totalorder %s146, %s147
      %p161 = scmp.eq.s32.totalorder %s40, 1
      %p162 = por %p160, %p161
      %p164 = scmp.ne.s32.totalorder %s147, %s163
      %p165 = scmp.eq.s32.totalorder %s40, 0
      %p166 = por %p164, %p165
      %s167 = ssub.s32 %s43, %s52
      %p168 = scmp.eq.s32.totalorder %s167, 0
      %s170 = sadd.s32 %s169, 1
      %s171 = scalar_select %p168, %s169, %s170
      %p174 = pneg %p168
      %p175 = scmp.eq.s32.totalorder %s34, 1
      %p176 = por %p174, %p175
      %p177 = scmp.ne.s32.totalorder %s169, %s172
      %p178 = scmp.eq.s32.totalorder %s34, 0
      %p179 = por %p177, %p178
      %p180 = scmp.ne.s32.totalorder %s169, %s172
      %p181 = scmp.eq.s32.totalorder %s39, 1
      %p182 = por %p180, %p181
      %p183 = scmp.ne.s32.totalorder %s172, %s173
      %p184 = scmp.eq.s32.totalorder %s39, 0
      %p185 = por %p183, %p184
      %p186 = scmp.ne.s32.totalorder %s172, %s173
      %p187 = scmp.eq.s32.totalorder %s40, 1
      %p188 = por %p186, %p187
      %p190 = scmp.ne.s32.totalorder %s173, %s189
      %p191 = scmp.eq.s32.totalorder %s40, 0
      %p192 = por %p190, %p191
      %s193 = ssub.s32 %s43, %s52
      %p194 = scmp.eq.s32.totalorder %s193, 0
      %s196 = sadd.s32 %s195, 1
      %s197 = scalar_select %p194, %s195, %s196
      %p200 = pneg %p194
      %p201 = scmp.eq.s32.totalorder %s34, 1
      %p202 = por %p200, %p201
      %p203 = scmp.ne.s32.totalorder %s195, %s198
      %p204 = scmp.eq.s32.totalorder %s34, 0
      %p205 = por %p203, %p204
      %p206 = scmp.ne.s32.totalorder %s195, %s198
      %p207 = scmp.eq.s32.totalorder %s39, 1
      %p208 = por %p206, %p207
      %p209 = scmp.ne.s32.totalorder %s198, %s199
      %p210 = scmp.eq.s32.totalorder %s39, 0
      %p211 = por %p209, %p210
      %p212 = scmp.ne.s32.totalorder %s198, %s199
      %p213 = scmp.eq.s32.totalorder %s40, 1
      %p214 = por %p212, %p213
      %p216 = scmp.ne.s32.totalorder %s199, %s215
      %p217 = scmp.eq.s32.totalorder %s40, 0
      %p218 = por %p216, %p217
      %s220 = sadd.s32 %s219, 1
      %p223 = scmp.eq.s32.totalorder %s34, 1
      %p224 = scmp.ne.s32.totalorder %s219, %s221
      %p225 = scmp.eq.s32.totalorder %s34, 0
      %p226 = por %p224, %p225
      %p227 = scmp.ne.s32.totalorder %s219, %s221
      %p228 = scmp.eq.s32.totalorder %s39, 1
      %p229 = por %p227, %p228
      %p230 = scmp.ne.s32.totalorder %s221, %s222
      %p231 = scmp.eq.s32.totalorder %s39, 0
      %p232 = por %p230, %p231
      %p233 = scmp.ne.s32.totalorder %s221, %s222
      %p234 = scmp.eq.s32.totalorder %s40, 1
      %p235 = por %p233, %p234
      %p237 = scmp.ne.s32.totalorder %s222, %s236
      %p238 = scmp.eq.s32.totalorder %s40, 0
      %p239 = por %p237, %p238
      %s241 = sadd.s32 %s240, 1
      %p244 = scmp.eq.s32.totalorder %s34, 1
      %p245 = scmp.ne.s32.totalorder %s240, %s242
      %p246 = scmp.eq.s32.totalorder %s34, 0
      %p247 = por %p245, %p246
      %p248 = scmp.ne.s32.totalorder %s240, %s242
      %p249 = scmp.eq.s32.totalorder %s39, 1
      %p250 = por %p248, %p249
      %p251 = scmp.ne.s32.totalorder %s242, %s243
      %p252 = scmp.eq.s32.totalorder %s39, 0
      %p253 = por %p251, %p252
      %p254 = scmp.ne.s32.totalorder %s242, %s243
      %p255 = scmp.eq.s32.totalorder %s40, 1
      %p256 = por %p254, %p255
      %p258 = scmp.ne.s32.totalorder %s243, %s257
      %p259 = scmp.eq.s32.totalorder %s40, 0
      %p260 = por %p258, %p259
      %s262 = sadd.s32 %s261, 1
      %p265 = scmp.eq.s32.totalorder %s34, 1
      %p266 = scmp.ne.s32.totalorder %s261, %s263
      %p267 = scmp.eq.s32.totalorder %s34, 0
      %p268 = por %p266, %p267
      %p269 = scmp.ne.s32.totalorder %s261, %s263
      %p270 = scmp.eq.s32.totalorder %s39, 1
      %p271 = por %p269, %p270
      %p272 = scmp.ne.s32.totalorder %s263, %s264
      %p273 = scmp.eq.s32.totalorder %s39, 0
      %p274 = por %p272, %p273
      %p275 = scmp.ne.s32.totalorder %s263, %s264
      %p276 = scmp.eq.s32.totalorder %s40, 1
      %p277 = por %p275, %p276
      %p279 = scmp.ne.s32.totalorder %s264, %s278
      %p280 = scmp.eq.s32.totalorder %s40, 0
      %p281 = por %p279, %p280
      %s283 = sadd.s32 %s282, 1
      %p286 = scmp.eq.s32.totalorder %s34, 1
      %p287 = scmp.ne.s32.totalorder %s282, %s284
      %p288 = scmp.eq.s32.totalorder %s34, 0
      %p289 = por %p287, %p288
      %p290 = scmp.ne.s32.totalorder %s282, %s284
      %p291 = scmp.eq.s32.totalorder %s39, 1
      %p292 = por %p290, %p291
      %p293 = scmp.ne.s32.totalorder %s284, %s285
      %p294 = scmp.eq.s32.totalorder %s39, 0
      %p295 = por %p293, %p294
      %p296 = scmp.ne.s32.totalorder %s284, %s285
      %p297 = scmp.eq.s32.totalorder %s40, 1
      %p298 = por %p296, %p297
      %p300 = scmp.ne.s32.totalorder %s285, %s299
      %p301 = scmp.eq.s32.totalorder %s40, 0
      %p302 = por %p300, %p301
      %s304 = sadd.s32 %s303, 1
      %p307 = scmp.eq.s32.totalorder %s34, 1
      %p308 = scmp.ne.s32.totalorder %s303, %s305
      %p309 = scmp.eq.s32.totalorder %s34, 0
      %p310 = por %p308, %p309
      %p311 = scmp.ne.s32.totalorder %s303, %s305
      %p312 = scmp.eq.s32.totalorder %s39, 1
      %p313 = por %p311, %p312
      %p314 = scmp.ne.s32.totalorder %s305, %s306
      %p315 = scmp.eq.s32.totalorder %s39, 0
      %p316 = por %p314, %p315
      %p317 = scmp.ne.s32.totalorder %s305, %s306
      %p318 = scmp.eq.s32.totalorder %s40, 1
      %p319 = por %p317, %p318
      %p321 = scmp.ne.s32.totalorder %s306, %s320
      %p322 = scmp.eq.s32.totalorder %s40, 0
      %p323 = por %p321, %p322
      %s324 = ssub.s32 %s42, %s56
      %p325 = scmp.eq.s32.totalorder %s324, 0
      %s327 = sadd.s32 %s326, 1
      %s328 = scalar_select %p325, %s326, %s327
      %p331 = pneg %p325
      %p332 = scmp.eq.s32.totalorder %s34, 1
      %p333 = por %p331, %p332
      %p334 = scmp.ne.s32.totalorder %s326, %s329
      %p335 = scmp.eq.s32.totalorder %s34, 0
      %p336 = por %p334, %p335
      %p337 = scmp.ne.s32.totalorder %s326, %s329
      %p338 = scmp.eq.s32.totalorder %s39, 1
      %p339 = por %p337, %p338
      %p340 = scmp.ne.s32.totalorder %s329, %s330
      %p341 = scmp.eq.s32.totalorder %s39, 0
      %p342 = por %p340, %p341
      %p343 = scmp.ne.s32.totalorder %s329, %s330
      %p344 = scmp.eq.s32.totalorder %s40, 1
      %p345 = por %p343, %p344
      %p347 = scmp.ne.s32.totalorder %s330, %s346
      %p348 = scmp.eq.s32.totalorder %s40, 0
      %p349 = por %p347, %p348
      %s350 = ssub.s32 %s42, %s56
      %p351 = scmp.eq.s32.totalorder %s350, 0
      %s353 = sadd.s32 %s352, 1
      %s354 = scalar_select %p351, %s352, %s353
      %p357 = pneg %p351
      %p358 = scmp.eq.s32.totalorder %s34, 1
      %p359 = por %p357, %p358
      %p360 = scmp.ne.s32.totalorder %s352, %s355
      %p361 = scmp.eq.s32.totalorder %s34, 0
      %p362 = por %p360, %p361
      %p363 = scmp.ne.s32.totalorder %s352, %s355
      %p364 = scmp.eq.s32.totalorder %s39, 1
      %p365 = por %p363, %p364
      %p366 = scmp.ne.s32.totalorder %s355, %s356
      %p367 = scmp.eq.s32.totalorder %s39, 0
      %p368 = por %p366, %p367
      %p369 = scmp.ne.s32.totalorder %s355, %s356
      %p370 = scmp.eq.s32.totalorder %s40, 1
      %p371 = por %p369, %p370
      %p373 = scmp.ne.s32.totalorder %s356, %s372
      %p374 = scmp.eq.s32.totalorder %s40, 0
      %p375 = por %p373, %p374
      %s376 = ssub.s32 %s41, %s60
      %s377 = ssub.s32 %s42, %s56
      %s378 = sor.u32 %s376, %s377
      %p379 = scmp.eq.s32.totalorder %s378, 0
      %s381 = sadd.s32 %s380, 1
      %s382 = scalar_select %p379, %s380, %s381
      %p385 = pneg %p379
      %p386 = scmp.eq.s32.totalorder %s34, 1
      %p387 = por %p385, %p386
      %p388 = scmp.ne.s32.totalorder %s380, %s383
      %p389 = scmp.eq.s32.totalorder %s34, 0
      %p390 = por %p388, %p389
      %p391 = scmp.ne.s32.totalorder %s380, %s383
      %p392 = scmp.eq.s32.totalorder %s39, 1
      %p393 = por %p391, %p392
      %p394 = scmp.ne.s32.totalorder %s383, %s384
      %p395 = scmp.eq.s32.totalorder %s39, 0
      %p396 = por %p394, %p395
      %p397 = scmp.ne.s32.totalorder %s383, %s384
      %p398 = scmp.eq.s32.totalorder %s40, 1
      %p399 = por %p397, %p398
      %p401 = scmp.ne.s32.totalorder %s384, %s400
      %p402 = scmp.eq.s32.totalorder %s40, 0
      %p403 = por %p401, %p402
      %s404 = ssub.s32 %s41, %s60
      %s405 = ssub.s32 %s42, %s56
      %s406 = sor.u32 %s404, %s405
      %p407 = scmp.eq.s32.totalorder %s406, 0
      %s409 = sadd.s32 %s408, 1
      %s410 = scalar_select %p407, %s408, %s409
      %p413 = pneg %p407
      %p414 = scmp.eq.s32.totalorder %s34, 1
      %p415 = por %p413, %p414
      %p416 = scmp.ne.s32.totalorder %s408, %s411
      %p417 = scmp.eq.s32.totalorder %s34, 0
      %p418 = por %p416, %p417
      %p419 = scmp.ne.s32.totalorder %s408, %s411
      %p420 = scmp.eq.s32.totalorder %s39, 1
      %p421 = por %p419, %p420
      %p422 = scmp.ne.s32.totalorder %s411, %s412
      %p423 = scmp.eq.s32.totalorder %s39, 0
      %p424 = por %p422, %p423
      %p425 = scmp.ne.s32.totalorder %s411, %s412
      %p426 = scmp.eq.s32.totalorder %s40, 1
      %p427 = por %p425, %p426
      %p429 = scmp.ne.s32.totalorder %s412, %s428
      %p430 = scmp.eq.s32.totalorder %s40, 0
      %p431 = por %p429, %p430
      %s432 = ssub.s32 %s41, %s60
      %s433 = ssub.s32 %s42, %s56
      %s434 = sor.u32 %s432, %s433
      %p435 = scmp.eq.s32.totalorder %s434, 0
      %s437 = sadd.s32 %s436, 1
      %s438 = scalar_select %p435, %s436, %s437
      %p441 = pneg %p435
      %p442 = scmp.eq.s32.totalorder %s34, 1
      %p443 = por %p441, %p442
      %p444 = scmp.ne.s32.totalorder %s436, %s439
      %p445 = scmp.eq.s32.totalorder %s34, 0
      %p446 = por %p444, %p445
      %p447 = scmp.ne.s32.totalorder %s436, %s439
      %p448 = scmp.eq.s32.totalorder %s39, 1
      %p449 = por %p447, %p448
      %p450 = scmp.ne.s32.totalorder %s439, %s440
      %p451 = scmp.eq.s32.totalorder %s39, 0
      %p452 = por %p450, %p451
      %p453 = scmp.ne.s32.totalorder %s439, %s440
      %p454 = scmp.eq.s32.totalorder %s40, 1
      %p455 = por %p453, %p454
      %p457 = scmp.ne.s32.totalorder %s440, %s456
      %p458 = scmp.eq.s32.totalorder %s40, 0
      %p459 = por %p457, %p458
      %p460 = scmp.le.s32.totalorder 1, %s34
      %p461 = scmp.lt.s32.totalorder %s34, 3
      %p462 = pnand %p460, %p461
      %p463 = pneg %p462
      // Predicated region
      $region9: #{tpu_custom_call.1} parent=5 // pred_check
        _
      $region10: #{tpu_custom_call.1} parent=5 // pred_check_branch
        %465 = sbr.rel (%p462) target = $region12
      $region11: #{tpu_custom_call.1} parent=5 // pred_region
        %s466 = ssub.s32 %s34, 1
        // Predicated region
        $region13: #{tpu_custom_call.1} parent=11 // pred_check
          %p467 = pneg %p159
        $region14: #{tpu_custom_call.1} parent=11 // pred_check_branch
          %469 = sbr.rel (%p467) target = $region16
        $region15: #{tpu_custom_call.1} parent=11 // pred_region
          %s470 = smul.u32 8, %s46
          %p471 = scmp.lt.s32.totalorder %s470, 7
          %s472 = scalar_select %p471, %s470, 7
          %s473 = smul.addr %s472, 4
          %s474 = scalar_lea.vmem %s3, %s473
          %s475 = smul.u32 8, %s46
        $region16: #{tpu_custom_call.1} parent=11 // pred_fallthru
          _
        // Predicated region
        $region17: #{tpu_custom_call.1} parent=11 // pred_check
          %p476 = pneg %p185
        $region18: #{tpu_custom_call.1} parent=11 // pred_check_branch
          %478 = sbr.rel (%p476) target = $region20
        $region19: #{tpu_custom_call.1} parent=11 // pred_region
          %s479 = smul.u32 8, %s46
          %s481 = ssub.s32 512, 512
          %482 = vsyncadd [#allocation10], %s481
          %s483 = smul.addr %s479, 64
          %s484 = scalar_lea.hbm %s4, %s483
          %s485 = sshll.u32 [#allocation9], 4
          %s486 = int_to_ptr.vmem [resolvable:$true] %s485
          %491 = dma.hbm_to_vmem [thread:$0]  %s484, 512, %s486, [#allocation10], 64, 64, 4
        $region20: #{tpu_custom_call.1} parent=11 // pred_fallthru
          _
        // Predicated region
        $region21: #{tpu_custom_call.1} parent=11 // pred_check
          %p492 = pneg %p211
        $region22: #{tpu_custom_call.1} parent=11 // pred_check_branch
          %494 = sbr.rel (%p492) target = $region24
        $region23: #{tpu_custom_call.1} parent=11 // pred_region
          %s495 = smul.u32 8, %s46
          %s497 = ssub.s32 512, 512
          %498 = vsyncadd [#allocation10], %s497
          %s499 = smul.addr %s495, 64
          %s500 = scalar_lea.hbm %s5, %s499
          %s501 = sshll.u32 [#allocation11], 4
          %s502 = int_to_ptr.vmem [resolvable:$true] %s501
          %507 = dma.hbm_to_vmem [thread:$0]  %s500, 512, %s502, [#allocation10], 64, 64, 4
        $region24: #{tpu_custom_call.1} parent=11 // pred_fallthru
          _
        // Predicated region
        $region25: #{tpu_custom_call.1} parent=11 // pred_check
          %p508 = pneg %p232
        $region26: #{tpu_custom_call.1} parent=11 // pred_check_branch
          %510 = sbr.rel (%p508) target = $region28
        $region27: #{tpu_custom_call.1} parent=11 // pred_region
          _
        $region28: #{tpu_custom_call.1} parent=11 // pred_fallthru
          _
        // Predicated region
        $region29: #{tpu_custom_call.1} parent=11 // pred_check
          %p511 = pneg %p253
        $region30: #{tpu_custom_call.1} parent=11 // pred_check_branch
          %513 = sbr.rel (%p511) target = $region32
        $region31: #{tpu_custom_call.1} parent=11 // pred_region
          _
        $region32: #{tpu_custom_call.1} parent=11 // pred_fallthru
          _
        // Predicated region
        $region33: #{tpu_custom_call.1} parent=11 // pred_check
          %p514 = pneg %p274
        $region34: #{tpu_custom_call.1} parent=11 // pred_check_branch
          %516 = sbr.rel (%p514) target = $region36
        $region35: #{tpu_custom_call.1} parent=11 // pred_region
          %s518 = ssub.s32 16, 16
          %519 = vsyncadd [#allocation13], %s518
          %s521 = sshll.u32 [#allocation12], 4
          %s522 = int_to_ptr.vmem [resolvable:$true] %s521
          %524 = dma.hbm_to_vmem [thread:$0]  %s8, 16, %s522, [#allocation13]
        $region36: #{tpu_custom_call.1} parent=11 // pred_fallthru
          _
        // Predicated region
        $region37: #{tpu_custom_call.1} parent=11 // pred_check
          %p525 = pneg %p295
        $region38: #{tpu_custom_call.1} parent=11 // pred_check_branch
          %527 = sbr.rel (%p525) target = $region40
        $region39: #{tpu_custom_call.1} parent=11 // pred_region
          %s529 = ssub.s32 16, 16
          %530 = vsyncadd [#allocation13], %s529
          %s532 = sshll.u32 [#allocation14], 4
          %s533 = int_to_ptr.vmem [resolvable:$true] %s532
          %535 = dma.hbm_to_vmem [thread:$0]  %s9, 16, %s533, [#allocation13]
        $region40: #{tpu_custom_call.1} parent=11 // pred_fallthru
          _
        // Predicated region
        $region41: #{tpu_custom_call.1} parent=11 // pred_check
          %p536 = pneg %p316
        $region42: #{tpu_custom_call.1} parent=11 // pred_check_branch
          %538 = sbr.rel (%p536) target = $region44
        $region43: #{tpu_custom_call.1} parent=11 // pred_region
          %s540 = ssub.s32 16, 16
          %541 = vsyncadd [#allocation16], %s540
          %s543 = sshll.u32 [#allocation15], 4
          %s544 = int_to_ptr.vmem [resolvable:$true] %s543
          %546 = dma.hbm_to_vmem [thread:$0]  %s10, 16, %s544, [#allocation16]
        $region44: #{tpu_custom_call.1} parent=11 // pred_fallthru
          _
        // Predicated region
        $region45: #{tpu_custom_call.1} parent=11 // pred_check
          %p547 = pneg %p342
        $region46: #{tpu_custom_call.1} parent=11 // pred_check_branch
          %549 = sbr.rel (%p547) target = $region48
        $region47: #{tpu_custom_call.1} parent=11 // pred_region
          %s550 = smul.u32 4, %s45
          %p551 = scmp.lt.s32.totalorder %s550, 3
          %s552 = scalar_select %p551, %s550, 3
          %s553 = smul.addr %s552, 8
          %s554 = scalar_lea.vmem %s11, %s553
          %s555 = smul.u32 4, %s45
        $region48: #{tpu_custom_call.1} parent=11 // pred_fallthru
          _
        // Predicated region
        $region49: #{tpu_custom_call.1} parent=11 // pred_check
          %p556 = pneg %p368
        $region50: #{tpu_custom_call.1} parent=11 // pred_check_branch
          %558 = sbr.rel (%p556) target = $region52
        $region51: #{tpu_custom_call.1} parent=11 // pred_region
          %s559 = smul.u32 4, %s45
          %p560 = scmp.lt.s32.totalorder %s559, 3
          %s561 = scalar_select %p560, %s559, 3
          %s562 = smul.addr %s561, 8
          %s563 = scalar_lea.vmem %s12, %s562
          %s564 = smul.u32 4, %s45
        $region52: #{tpu_custom_call.1} parent=11 // pred_fallthru
          _
      $region12: #{tpu_custom_call.1} parent=5 // pred_fallthru
        _
      %p565 = scmp.lt.s32.totalorder %s34, 2
      // Predicated region
      $region53: #{tpu_custom_call.1} parent=5 // pred_check
        %p566 = pneg %p565
      $region54: #{tpu_custom_call.1} parent=5 // pred_check_branch
        %568 = sbr.rel (%p566) target = $region56
      $region55: #{tpu_custom_call.1} parent=5 // pred_region
        // Predicated region
        $region57: #{tpu_custom_call.1} parent=55 // pred_check
          %p569 = pneg %p75
        $region58: #{tpu_custom_call.1} parent=55 // pred_check_branch
          %571 = sbr.rel (%p569) target = $region60
        $region59: #{tpu_custom_call.1} parent=55 // pred_region
          %s572 = smul.u32 4, %s42
          %p573 = scmp.lt.s32.totalorder %s41, 1
          %s574 = scalar_select %p573, %s41, 1
          %p575 = scmp.lt.s32.totalorder %s572, 3
          %s576 = scalar_select %p575, %s572, 3
          %s577 = smul.addr %s574, 4
          %s578 = sadd.s32 %s576, %s577
          %s579 = smul.addr %s578, 8
          %s580 = scalar_lea.vmem %s0, %s579
          %s581 = smul.u32 4, %s42
        $region60: #{tpu_custom_call.1} parent=55 // pred_fallthru
          _
        // Predicated region
        $region61: #{tpu_custom_call.1} parent=55 // pred_check
          %p582 = pneg %p101
        $region62: #{tpu_custom_call.1} parent=55 // pred_check_branch
          %584 = sbr.rel (%p582) target = $region64
        $region63: #{tpu_custom_call.1} parent=55 // pred_region
          %s585 = sand.u32 %s91, 1
          %s586 = scalar_lea.sflag [#allocation7], %s585
          %s587 = sand.u32 %s91, 1
          %s588 = scalar_lea.vmem [#allocation6], %s587
          %s590 = ssub.s32 16, 16
          %591 = vsyncadd %s586, %s590
          %s592 = smul.addr %s41, 16
          %s593 = scalar_lea.hbm %s1, %s592
          %s595 = sshll.u32 %s588, 4
          %s596 = int_to_ptr.vmem [resolvable:$true] %s595
          %598 = dma.hbm_to_vmem [thread:$0]  %s593, 16, %s596, %s586
        $region64: #{tpu_custom_call.1} parent=55 // pred_fallthru
          _
        // Predicated region
        $region65: #{tpu_custom_call.1} parent=55 // pred_check
          %p599 = pneg %p127
        $region66: #{tpu_custom_call.1} parent=55 // pred_check_branch
          %601 = sbr.rel (%p599) target = $region68
        $region67: #{tpu_custom_call.1} parent=55 // pred_region
          %p602 = scmp.lt.s32.totalorder %s41, 1
          %s603 = scalar_select %p602, %s41, 1
          %s604 = scalar_lea.vmem %s2, %s603
        $region68: #{tpu_custom_call.1} parent=55 // pred_fallthru
          _
      $region56: #{tpu_custom_call.1} parent=5 // pred_fallthru
        _
      %p605 = scmp.le.s32.totalorder 1, %s34
      %p606 = scmp.lt.s32.totalorder %s34, 3
      %p607 = pnand %p605, %p606
      %p608 = pneg %p607
      // Predicated region
      $region69: #{tpu_custom_call.1} parent=5 // pred_check
        _
      $region70: #{tpu_custom_call.1} parent=5 // pred_check_branch
        %610 = sbr.rel (%p607) target = $region72
      $region71: #{tpu_custom_call.1} parent=5 // pred_region
        %s611 = ssub.s32 %s34, 1
        %s612 = sand.u32 %s94, 1
        %s613 = scalar_lea.sflag [#allocation7], %s612
        %s614 = sand.u32 %s94, 1
        %s615 = scalar_lea.vmem [#allocation6], %s614
        // Predicated region
        $region73: #{tpu_custom_call.1} parent=71 // pred_check
          %p616 = pneg %p107
        $region74: #{tpu_custom_call.1} parent=71 // pred_check_branch
          %618 = sbr.rel (%p616) target = $region76
        $region75: #{tpu_custom_call.1} parent=71 // pred_region
          %619 = dma.done %s613, 16
        $region76: #{tpu_custom_call.1} parent=71 // pred_fallthru
          _
        // Predicated region
        $region77: #{tpu_custom_call.1} parent=71 // pred_check
          %p620 = pneg %p185
        $region78: #{tpu_custom_call.1} parent=71 // pred_check_branch
          %622 = sbr.rel (%p620) target = $region80
        $region79: #{tpu_custom_call.1} parent=71 // pred_region
          %623 = dma.done [#allocation10], 512
        $region80: #{tpu_custom_call.1} parent=71 // pred_fallthru
          _
        // Predicated region
        $region81: #{tpu_custom_call.1} parent=71 // pred_check
          %p624 = pneg %p211
        $region82: #{tpu_custom_call.1} parent=71 // pred_check_branch
          %626 = sbr.rel (%p624) target = $region84
        $region83: #{tpu_custom_call.1} parent=71 // pred_region
          %627 = dma.done [#allocation10], 512
        $region84: #{tpu_custom_call.1} parent=71 // pred_fallthru
          _
        // Predicated region
        $region85: #{tpu_custom_call.1} parent=71 // pred_check
          %p628 = pneg %p274
        $region86: #{tpu_custom_call.1} parent=71 // pred_check_branch
          %630 = sbr.rel (%p628) target = $region88
        $region87: #{tpu_custom_call.1} parent=71 // pred_region
          %631 = dma.done [#allocation13], 16
        $region88: #{tpu_custom_call.1} parent=71 // pred_fallthru
          _
        // Predicated region
        $region89: #{tpu_custom_call.1} parent=71 // pred_check
          %p632 = pneg %p295
        $region90: #{tpu_custom_call.1} parent=71 // pred_check_branch
          %634 = sbr.rel (%p632) target = $region92
        $region91: #{tpu_custom_call.1} parent=71 // pred_region
          %635 = dma.done [#allocation13], 16
        $region92: #{tpu_custom_call.1} parent=71 // pred_fallthru
          _
        // Predicated region
        $region93: #{tpu_custom_call.1} parent=71 // pred_check
          %p636 = pneg %p316
        $region94: #{tpu_custom_call.1} parent=71 // pred_check_branch
          %638 = sbr.rel (%p636) target = $region96
        $region95: #{tpu_custom_call.1} parent=71 // pred_region
          %639 = dma.done [#allocation16], 16
        $region96: #{tpu_custom_call.1} parent=71 // pred_fallthru
          _
        %s640 = smul.u32 4, %s45
        %p641 = scmp.lt.s32.totalorder %s44, 1
        %s642 = scalar_select %p641, %s44, 1
        %p643 = scmp.lt.s32.totalorder %s640, 3
        %s644 = scalar_select %p643, %s640, 3
        %s645 = smul.addr %s642, 4
        %s646 = sadd.s32 %s644, %s645
        %s647 = smul.addr %s646, 8
        %s648 = scalar_lea.vmem %s0, %s647
        %p649 = pneg %p81
        %p650 = pneg %p78
        %s651 = sand.u32 %s94, 1
        %s652 = scalar_lea.sflag [#allocation7], %s651
        %s653 = sand.u32 %s94, 1
        %s654 = scalar_lea.vmem [#allocation6], %s653
        %p655 = pneg %p107
        %p656 = pneg %p104
        %p657 = scmp.lt.s32.totalorder %s44, 1
        %s658 = scalar_select %p657, %s44, 1
        %s659 = scalar_lea.vmem %s2, %s658
        %p660 = pneg %p133
        %p661 = pneg %p130
        %s662 = smul.u32 8, %s46
        %p663 = scmp.lt.s32.totalorder %s662, 7
        %s664 = scalar_select %p663, %s662, 7
        %s665 = smul.addr %s664, 4
        %s666 = scalar_lea.vmem %s3, %s665
        %p667 = pneg %p159
        %p668 = pneg %p156
        %p669 = pneg %p185
        %p670 = pneg %p182
        %p671 = pneg %p211
        %p672 = pneg %p208
        %p673 = pneg %p232
        %p674 = pneg %p229
        %p675 = pneg %p253
        %p676 = pneg %p250
        %p677 = pneg %p274
        %p678 = pneg %p271
        %p679 = pneg %p295
        %p680 = pneg %p292
        %p681 = pneg %p316
        %p682 = pneg %p313
        %s683 = smul.u32 4, %s45
        %p684 = scmp.lt.s32.totalorder %s683, 3
        %s685 = scalar_select %p684, %s683, 3
        %s686 = smul.addr %s685, 8
        %s687 = scalar_lea.vmem %s11, %s686
        %p688 = pneg %p342
        %p689 = pneg %p339
        %s690 = smul.u32 4, %s45
        %p691 = scmp.lt.s32.totalorder %s690, 3
        %s692 = scalar_select %p691, %s690, 3
        %s693 = smul.addr %s692, 8
        %s694 = scalar_lea.vmem %s12, %s693
        %p695 = pneg %p368
        %p696 = pneg %p365
        %p697 = pneg %p396
        %p698 = pneg %p393
        %s699 = sand.u32 %s383, 1
        %s700 = scalar_lea.sflag [#allocation8], %s699
        %s701 = sand.u32 %s383, 1
        %s702 = smul.addr %s701, 16
        %s703 = scalar_lea.vmem [#allocation17], %s702
        %p704 = pneg %p424
        %p705 = pneg %p421
        %s706 = sand.u32 %s39, 1
        %s707 = scalar_lea.sflag [#allocation19], %s706
        %s708 = sand.u32 %s411, 1
        %s709 = smul.addr %s708, 16
        %s710 = scalar_lea.vmem [#allocation18], %s709
        %p711 = pneg %p452
        %p712 = pneg %p449
        %s713 = sand.u32 %s39, 1
        %s714 = scalar_lea.sflag [#allocation19], %s713
        %s715 = sand.u32 %s439, 1
        %s716 = smul.addr %s715, 16
        %s717 = scalar_lea.vmem [#allocation20], %s716
        %s718 = smul.u32 4, %s45
        %p719 = scmp.lt.s32.totalorder %s44, 1
        %s720 = scalar_select %p719, %s44, 1
        %p721 = scmp.lt.s32.totalorder %s718, 3
        %s722 = scalar_select %p721, %s718, 3
        %s723 = smul.addr %s720, 4
        %s724 = sadd.s32 %s722, %s723
        %s725 = smul.addr %s724, 8
        %s726 = scalar_lea.vmem %s0, %s725
        %s727 = smul.u32 4, %s45
        %p728 = scmp.lt.s32.totalorder %s44, 1
        %s729 = scalar_select %p728, %s44, 1
        %s730 = scalar_lea.vmem %s2, %s729
        %s731 = smul.u32 8, %s46
        %p732 = scmp.lt.s32.totalorder %s731, 7
        %s733 = scalar_select %p732, %s731, 7
        %s734 = smul.addr %s733, 4
        %s735 = scalar_lea.vmem %s3, %s734
        %s736 = smul.u32 8, %s46
        %s737 = smul.u32 8, %s46
        %s738 = smul.u32 8, %s46
        %s739 = smul.u32 4, %s45
        %p740 = scmp.lt.s32.totalorder %s739, 3
        %s741 = scalar_select %p740, %s739, 3
        %s742 = smul.addr %s741, 8
        %s743 = scalar_lea.vmem %s11, %s742
        %s744 = smul.u32 4, %s45
        %s745 = smul.u32 4, %s45
        %p746 = scmp.lt.s32.totalorder %s745, 3
        %s747 = scalar_select %p746, %s745, 3
        %s748 = smul.addr %s747, 8
        %s749 = scalar_lea.vmem %s12, %s748
        %s750 = smul.u32 4, %s45
        %s751 = smul.u32 4, %s45
        %s752 = smul.u32 4, %s45
        %s753 = smul.u32 4, %s45
        %p755 = scmp.eq.s32.totalorder %s46, 0
        // Predicated region
        $region97: #{tpu_custom_call.1} parent=71 // pred_check
          %p756 = pneg %p755
        $region98: #{tpu_custom_call.1} parent=71 // pred_check_branch
          %758 = sbr.rel (%p756) target = $region100
        $region99: #{tpu_custom_call.1} parent=71 // pred_region
          %vm759 = vcmask 523264
          %760 = vst.msk [vmem:[#allocation3] sm:$0xff] %vm759, 0.0
          %761 = vst.msk [vmem:[#allocation3 + $0x8] sm:$0xff] %vm759, 0.0
          %762 = vst.msk [vmem:[#allocation3 + $0x10] sm:$0xff] %vm759, 0.0
          %763 = vst.msk [vmem:[#allocation3 + $0x18] sm:$0xff] %vm759, 0.0
          %764 = vst.msk [vmem:[#allocation4] sm:$0xff] %vm759, 0.0
          %765 = vst.msk [vmem:[#allocation4 + $0x8] sm:$0xff] %vm759, 0.0
          %766 = vst.msk [vmem:[#allocation4 + $0x10] sm:$0xff] %vm759, 0.0
          %767 = vst.msk [vmem:[#allocation4 + $0x18] sm:$0xff] %vm759, 0.0
          %768 = vst.msk [vmem:[#allocation5] sm:$0xff] %vm759, 0.0
          %769 = vst.msk [vmem:[#allocation5 + $0x8] sm:$0xff] %vm759, 0.0
          %770 = vst.msk [vmem:[#allocation5 + $0x10] sm:$0xff] %vm759, 0.0
          %771 = vst.msk [vmem:[#allocation5 + $0x18] sm:$0xff] %vm759, 0.0
          %v772 = vld [vmem:[%s726] sm:$0xff]
          %v773 = vld [vmem:[%s726 + $0x8] sm:$0xff]
          %v774 = vld [vmem:[%s726 + $0x10] sm:$0xff]
          %v775 = vld [vmem:[%s726 + $0x18] sm:$0xff]
          %v776 = vsel %vm759, %v772, 0.0
          %777 = vadd.xlane.f32.xlu0 %v776
          %v778 = vpop.xlane.xlu0 %777
          %v779 = vsel %vm759, %v773, 0.0
          %780 = vadd.xlane.f32.xlu0 %v779
          %v781 = vpop.xlane.xlu0 %780
          %v782 = vsel %vm759, %v774, 0.0
          %783 = vadd.xlane.f32.xlu0 %v782
          %v784 = vpop.xlane.xlu0 %783
          %v785 = vsel %vm759, %v775, 0.0
          %786 = vadd.xlane.f32.xlu0 %v785
          %v787 = vpop.xlane.xlu0 %786
          %v788 = vrcp.pop 64.0
          %v789 = vmul.f32 %v778, %v788
          %v790 = vmul.f32 %v781, %v788
          %v791 = vmul.f32 %v784, %v788
          %v792 = vmul.f32 %v787, %v788
          %v793 = vsub.f32 %v772, %v789
          %v794 = vsub.f32 %v773, %v790
          %v795 = vsub.f32 %v774, %v791
          %v796 = vsub.f32 %v775, %v792
          %v797 = vmul.f32 %v793, %v793
          %v798 = vmul.f32 %v794, %v794
          %v799 = vmul.f32 %v795, %v795
          %v800 = vmul.f32 %v796, %v796
          %v801 = vsel %vm759, %v797, 0.0
          %802 = vadd.xlane.f32.xlu0 %v801
          %v803 = vpop.xlane.xlu0 %802
          %v804 = vsel %vm759, %v798, 0.0
          %805 = vadd.xlane.f32.xlu0 %v804
          %v806 = vpop.xlane.xlu0 %805
          %v807 = vsel %vm759, %v799, 0.0
          %808 = vadd.xlane.f32.xlu0 %v807
          %v809 = vpop.xlane.xlu0 %808
          %v810 = vsel %vm759, %v800, 0.0
          %811 = vadd.xlane.f32.xlu0 %v810
          %v812 = vpop.xlane.xlu0 %811
          %v813 = vmul.f32 %v803, %v788
          %v814 = vmul.f32 %v806, %v788
          %v815 = vmul.f32 %v809, %v788
          %v816 = vmul.f32 %v812, %v788
          %v817 = vadd.f32 %v813, 1e-06
          %v818 = vadd.f32 %v814, 1e-06
          %v819 = vadd.f32 %v815, 1e-06
          %v820 = vadd.f32 %v816, 1e-06
          %v821 = vrsqrt.pop %v817
          %v822 = vrsqrt.pop %v818
          %v823 = vrsqrt.pop %v819
          %v824 = vrsqrt.pop %v820
          %v825 = vmul.f32 %v793, %v821
          %v826 = vmul.f32 %v794, %v822
          %v827 = vmul.f32 %v795, %v823
          %v828 = vmul.f32 %v796, %v824
          %v829 = vld [vmem:[%s730] sm:$0x1]
          %v830 = vadd.f32 %v829, 1.0
          %v832 = vlaneseq
          %v833 = vshrl.u32 %v832, 7
          %v834 = vsub.s32 0, %v833
          %v835 = vrot.slane %v830, %v834
          %v837 = vmul.f32 %v825, %v835
          %v838 = vmul.f32 %v826, %v835
          %v839 = vmul.f32 %v827, %v835
          %v840 = vmul.f32 %v828, %v835
          %v841 = vld [vmem:[%s615] sm:$0x1]
          %v843 = vlaneseq
          %v844 = vshrl.u32 %v843, 7
          %v845 = vsub.s32 0, %v844
          %v846 = vrot.slane %v841, %v845
          %v848 = vadd.f32 %v837, %v846
          %v849 = vadd.f32 %v838, %v846
          %v850 = vadd.f32 %v839, %v846
          %v851 = vadd.f32 %v840, %v846
          %v852 = vpack.c.bf16 %v849, %v848
          %v853 = vpack.c.bf16 %v851, %v850
          %v856 = vunpack.c.l.b16 %v852
          %v857 = vunpack.c.h.b16 %v852
          %v858 = vunpack.c.l.b16 %v853
          %v859 = vunpack.c.h.b16 %v853
          %v860 = vpack.c.b16 %v856, %v856
          %v861 = vpack.c.b16 %v857, %v857
          %v862 = vpack.c.b16 %v858, %v858
          %v863 = vpack.c.b16 %v859, %v859
          %vm868 = vcmask 519168
          %869 = vst.msk [vmem:[#allocation2] sm:$0xf] %vm868, %v860
          %870 = vst.msk [vmem:[#allocation2 + $0x4] sm:$0xf] %vm868, %v861
          %871 = vst.msk [vmem:[#allocation2 + $0x8] sm:$0xf] %vm868, %v862
          %872 = vst.msk [vmem:[#allocation2 + $0xc] sm:$0xf] %vm868, %v863
        $region100: #{tpu_custom_call.1} parent=71 // pred_fallthru
          _
        %v873 = vld [vmem:[#allocation2] sm:$0xf]
        %v874 = vld [vmem:[#allocation2 + $0x4] sm:$0xf]
        %v875 = vld [vmem:[#allocation2 + $0x8] sm:$0xf]
        %v876 = vld [vmem:[#allocation2 + $0xc] sm:$0xf]
        %v877 = vld [vmem:[#allocation3] sm:$0xff]
        %v878 = vld [vmem:[#allocation3 + $0x8] sm:$0xff]
        %v879 = vld [vmem:[#allocation3 + $0x10] sm:$0xff]
        %v880 = vld [vmem:[#allocation3 + $0x18] sm:$0xff]
        %v881 = vld [vmem:[%s735] sm:$0xf]
        %v882 = vld [vmem:[%s735 + $0x4] sm:$0xf]
        %v883 = vld [vmem:[%s735 + $0x8] sm:$0xf]
        %v884 = vld [vmem:[%s735 + $0xc] sm:$0xf]
        %v885 = vld [vmem:[%s735 + $0x10] sm:$0xf]
        %v886 = vld [vmem:[%s735 + $0x14] sm:$0xf]
        %v887 = vld [vmem:[%s735 + $0x18] sm:$0xf]
        %v888 = vld [vmem:[%s735 + $0x1c] sm:$0xf]
        %v893 = vunpack.c.l.b16 %v873
        %v894 = vunpack.c.l.b16 %v874
        %v895 = vunpack.c.l.b16 %v875
        %v896 = vunpack.c.l.b16 %v876
        %v897 = vpack.c.b16 %v894, %v893
        %v898 = vpack.c.b16 %v896, %v895
        %v907 = vunpack.c.l.b16 %v881
        %v908 = vunpack.c.l.b16 %v882
        %v909 = vunpack.c.l.b16 %v883
        %v910 = vunpack.c.l.b16 %v884
        %v911 = vunpack.c.l.b16 %v885
        %v912 = vunpack.c.l.b16 %v886
        %v913 = vunpack.c.l.b16 %v887
        %v914 = vunpack.c.l.b16 %v888
        %v915 = vpack.c.b16 %v908, %v907
        %v916 = vpack.c.b16 %v910, %v909
        %v917 = vpack.c.b16 %v912, %v911
        %v918 = vpack.c.b16 %v914, %v913
        %vm923 = vcmask 523264
        %v925 = vsel %vm923, %v897, 0
        %v928 = vsel %vm923, %v898, 0
        %930 = vmatprep.subr.bf16.mxu0 0
        %931 = vmatpush1.bf16.msra.mxu0 0
        %932 = vmatprep.subr.bf16.mxu0 0
        %933 = vmatpush1.bf16.msra.mxu0 0
        %934 = vmatprep.subr.bf16.mxu0 0
        %935 = vmatpush1.bf16.msra.mxu0 0
        %936 = vmatprep.subr.bf16.mxu0 0
        %937 = vmatpush1.bf16.msra.mxu0 0
        %938 = vmatprep.subr.bf16.mxu0 0
        %939 = vmatpush1.bf16.msra.mxu0 %v918
        %940 = vmatprep.subr.bf16.mxu0 0
        %941 = vmatpush1.bf16.msra.mxu0 %v917
        %942 = vmatprep.subr.bf16.mxu0 0
        %943 = vmatpush1.bf16.msra.mxu0 %v916
        %944 = vmatprep.subr.bf16.mxu0 0
        %945 = vmatpush1.bf16.msra.mxu0 %v915
        %946 = vmatprep.subr.bf16.mxu0 0
        %947 = vmatpush2.bf16.msra.mxu0 0
        %948 = vmatprep.subr.bf16.mxu0 0
        %949 = vmatpush2.bf16.msra.mxu0 0
        %950 = vmatprep.subr.bf16.mxu0 0
        %951 = vmatpush2.bf16.msra.mxu0 0
        %952 = vmatprep.subr.bf16.mxu0 0
        %953 = vmatpush2.bf16.msra.mxu0 0
        %954 = vmatprep.subr.bf16.mxu0 0
        %955 = vmatpush2.bf16.msra.mxu0 0
        %956 = vmatprep.subr.bf16.mxu0 0
        %957 = vmatpush2.bf16.msra.mxu0 0
        %958 = vmatprep.subr.bf16.mxu0 0
        %959 = vmatpush2.bf16.msra.mxu0 0
        %960 = vmatprep.subr.bf16.mxu0 0
        %961 = vmatpush2.bf16.msra.mxu0 0
        %962 = vmatprep.mubr.bf16.mxu0 0
        %963 = vmatmul.mubr.bf16.gmra.mxu0 %v925
        %v964 = vpop.f32.mrf.mxu0
        %v965 = vadd.f32 0.0, %v964
        %v966 = vpop.f32.mrf.mxu0
        %v967 = vpop.f32.mrf.mxu0
        %v968 = vadd.f32 0.0, %v967
        %v969 = vpop.f32.mrf.mxu0
        %970 = vmatprep.mubr.bf16.mxu0 0
        %971 = vmatmul.mubr.bf16.gmra.mxu0 %v928
        %v972 = vpop.f32.mrf.mxu0
        %v973 = vadd.f32 0.0, %v972
        %v974 = vpop.f32.mrf.mxu0
        %v975 = vpop.f32.mrf.mxu0
        %v976 = vadd.f32 0.0, %v975
        %v977 = vpop.f32.mrf.mxu0
        %978 = vdwg.mxu0
        %v979 = vadd.f32 %v877, %v965
        %v980 = vadd.f32 %v878, %v968
        %v981 = vadd.f32 %v879, %v973
        %v982 = vadd.f32 %v880, %v976
        %983 = vst.msk [vmem:[#allocation3] sm:$0xff] %vm923, %v979
        %984 = vst.msk [vmem:[#allocation3 + $0x8] sm:$0xff] %vm923, %v980
        %985 = vst.msk [vmem:[#allocation3 + $0x10] sm:$0xff] %vm923, %v981
        %986 = vst.msk [vmem:[#allocation3 + $0x18] sm:$0xff] %vm923, %v982
        %v987 = vld [vmem:[#allocation4] sm:$0xff]
        %v988 = vld [vmem:[#allocation4 + $0x8] sm:$0xff]
        %v989 = vld [vmem:[#allocation4 + $0x10] sm:$0xff]
        %v990 = vld [vmem:[#allocation4 + $0x18] sm:$0xff]
        %v991 = vld [vmem:[#allocation9] sm:$0xf]
        %v992 = vld [vmem:[#allocation9 + $0x4] sm:$0xf]
        %v993 = vld [vmem:[#allocation9 + $0x8] sm:$0xf]
        %v994 = vld [vmem:[#allocation9 + $0xc] sm:$0xf]
        %v995 = vld [vmem:[#allocation9 + $0x10] sm:$0xf]
        %v996 = vld [vmem:[#allocation9 + $0x14] sm:$0xf]
        %v997 = vld [vmem:[#allocation9 + $0x18] sm:$0xf]
        %v998 = vld [vmem:[#allocation9 + $0x1c] sm:$0xf]
        %v1007 = vunpack.c.l.b16 %v991
        %v1008 = vunpack.c.l.b16 %v992
        %v1009 = vunpack.c.l.b16 %v993
        %v1010 = vunpack.c.l.b16 %v994
        %v1011 = vunpack.c.l.b16 %v995
        %v1012 = vunpack.c.l.b16 %v996
        %v1013 = vunpack.c.l.b16 %v997
        %v1014 = vunpack.c.l.b16 %v998
        %v1015 = vpack.c.b16 %v1008, %v1007
        %v1016 = vpack.c.b16 %v1010, %v1009
        %v1017 = vpack.c.b16 %v1012, %v1011
        %v1018 = vpack.c.b16 %v1014, %v1013
        %1023 = vmatprep.subr.bf16.mxu0 0
        %1024 = vmatpush1.bf16.msra.mxu0 0
        %1025 = vmatprep.subr.bf16.mxu0 0
        %1026 = vmatpush1.bf16.msra.mxu0 0
        %1027 = vmatprep.subr.bf16.mxu0 0
        %1028 = vmatpush1.bf16.msra.mxu0 0
        %1029 = vmatprep.subr.bf16.mxu0 0
        %1030 = vmatpush1.bf16.msra.mxu0 0
        %1031 = vmatprep.subr.bf16.mxu0 0
        %1032 = vmatpush1.bf16.msra.mxu0 %v1018
        %1033 = vmatprep.subr.bf16.mxu0 0
        %1034 = vmatpush1.bf16.msra.mxu0 %v1017
        %1035 = vmatprep.subr.bf16.mxu0 0
        %1036 = vmatpush1.bf16.msra.mxu0 %v1016
        %1037 = vmatprep.subr.bf16.mxu0 0
        %1038 = vmatpush1.bf16.msra.mxu0 %v1015
        %1039 = vmatprep.subr.bf16.mxu0 0
        %1040 = vmatpush2.bf16.msra.mxu0 0
        %1041 = vmatprep.subr.bf16.mxu0 0
        %1042 = vmatpush2.bf16.msra.mxu0 0
        %1043 = vmatprep.subr.bf16.mxu0 0
        %1044 = vmatpush2.bf16.msra.mxu0 0
        %1045 = vmatprep.subr.bf16.mxu0 0
        %1046 = vmatpush2.bf16.msra.mxu0 0
        %1047 = vmatprep.subr.bf16.mxu0 0
        %1048 = vmatpush2.bf16.msra.mxu0 0
        %1049 = vmatprep.subr.bf16.mxu0 0
        %1050 = vmatpush2.bf16.msra.mxu0 0
        %1051 = vmatprep.subr.bf16.mxu0 0
        %1052 = vmatpush2.bf16.msra.mxu0 0
        %1053 = vmatprep.subr.bf16.mxu0 0
        %1054 = vmatpush2.bf16.msra.mxu0 0
        %1055 = vmatprep.mubr.bf16.mxu0 0
        %1056 = vmatmul.mubr.bf16.gmra.mxu0 %v925
        %v1057 = vpop.f32.mrf.mxu0
        %v1058 = vadd.f32 0.0, %v1057
        %v1059 = vpop.f32.mrf.mxu0
        %v1060 = vpop.f32.mrf.mxu0
        %v1061 = vadd.f32 0.0, %v1060
        %v1062 = vpop.f32.mrf.mxu0
        %1063 = vmatprep.mubr.bf16.mxu0 0
        %1064 = vmatmul.mubr.bf16.gmra.mxu0 %v928
        %v1065 = vpop.f32.mrf.mxu0
        %v1066 = vadd.f32 0.0, %v1065
        %v1067 = vpop.f32.mrf.mxu0
        %v1068 = vpop.f32.mrf.mxu0
        %v1069 = vadd.f32 0.0, %v1068
        %v1070 = vpop.f32.mrf.mxu0
        %1071 = vdwg.mxu0
        %v1072 = vadd.f32 %v987, %v1058
        %v1073 = vadd.f32 %v988, %v1061
        %v1074 = vadd.f32 %v989, %v1066
        %v1075 = vadd.f32 %v990, %v1069
        %1076 = vst.msk [vmem:[#allocation4] sm:$0xff] %vm923, %v1072
        %1077 = vst.msk [vmem:[#allocation4 + $0x8] sm:$0xff] %vm923, %v1073
        %1078 = vst.msk [vmem:[#allocation4 + $0x10] sm:$0xff] %vm923, %v1074
        %1079 = vst.msk [vmem:[#allocation4 + $0x18] sm:$0xff] %vm923, %v1075
        %v1080 = vld [vmem:[#allocation5] sm:$0xff]
        %v1081 = vld [vmem:[#allocation5 + $0x8] sm:$0xff]
        %v1082 = vld [vmem:[#allocation5 + $0x10] sm:$0xff]
        %v1083 = vld [vmem:[#allocation5 + $0x18] sm:$0xff]
        %v1084 = vld [vmem:[#allocation11] sm:$0xf]
        %v1085 = vld [vmem:[#allocation11 + $0x4] sm:$0xf]
        %v1086 = vld [vmem:[#allocation11 + $0x8] sm:$0xf]
        %v1087 = vld [vmem:[#allocation11 + $0xc] sm:$0xf]
        %v1088 = vld [vmem:[#allocation11 + $0x10] sm:$0xf]
        %v1089 = vld [vmem:[#allocation11 + $0x14] sm:$0xf]
        %v1090 = vld [vmem:[#allocation11 + $0x18] sm:$0xf]
        %v1091 = vld [vmem:[#allocation11 + $0x1c] sm:$0xf]
        %v1100 = vunpack.c.l.b16 %v1084
        %v1101 = vunpack.c.l.b16 %v1085
        %v1102 = vunpack.c.l.b16 %v1086
        %v1103 = vunpack.c.l.b16 %v1087
        %v1104 = vunpack.c.l.b16 %v1088
        %v1105 = vunpack.c.l.b16 %v1089
        %v1106 = vunpack.c.l.b16 %v1090
        %v1107 = vunpack.c.l.b16 %v1091
        %v1108 = vpack.c.b16 %v1101, %v1100
        %v1109 = vpack.c.b16 %v1103, %v1102
        %v1110 = vpack.c.b16 %v1105, %v1104
        %v1111 = vpack.c.b16 %v1107, %v1106
        %1116 = vmatprep.subr.bf16.mxu0 0
        %1117 = vmatpush1.bf16.msra.mxu0 0
        %1118 = vmatprep.subr.bf16.mxu0 0
        %1119 = vmatpush1.bf16.msra.mxu0 0
        %1120 = vmatprep.subr.bf16.mxu0 0
        %1121 = vmatpush1.bf16.msra.mxu0 0
        %1122 = vmatprep.subr.bf16.mxu0 0
        %1123 = vmatpush1.bf16.msra.mxu0 0
        %1124 = vmatprep.subr.bf16.mxu0 0
        %1125 = vmatpush1.bf16.msra.mxu0 %v1111
        %1126 = vmatprep.subr.bf16.mxu0 0
        %1127 = vmatpush1.bf16.msra.mxu0 %v1110
        %1128 = vmatprep.subr.bf16.mxu0 0
        %1129 = vmatpush1.bf16.msra.mxu0 %v1109
        %1130 = vmatprep.subr.bf16.mxu0 0
        %1131 = vmatpush1.bf16.msra.mxu0 %v1108
        %1132 = vmatprep.subr.bf16.mxu0 0
        %1133 = vmatpush2.bf16.msra.mxu0 0
        %1134 = vmatprep.subr.bf16.mxu0 0
        %1135 = vmatpush2.bf16.msra.mxu0 0
        %1136 = vmatprep.subr.bf16.mxu0 0
        %1137 = vmatpush2.bf16.msra.mxu0 0
        %1138 = vmatprep.subr.bf16.mxu0 0
        %1139 = vmatpush2.bf16.msra.mxu0 0
        %1140 = vmatprep.subr.bf16.mxu0 0
        %1141 = vmatpush2.bf16.msra.mxu0 0
        %1142 = vmatprep.subr.bf16.mxu0 0
        %1143 = vmatpush2.bf16.msra.mxu0 0
        %1144 = vmatprep.subr.bf16.mxu0 0
        %1145 = vmatpush2.bf16.msra.mxu0 0
        %1146 = vmatprep.subr.bf16.mxu0 0
        %1147 = vmatpush2.bf16.msra.mxu0 0
        %1148 = vmatprep.mubr.bf16.mxu0 0
        %1149 = vmatmul.mubr.bf16.gmra.mxu0 %v925
        %v1150 = vpop.f32.mrf.mxu0
        %v1151 = vadd.f32 0.0, %v1150
        %v1152 = vpop.f32.mrf.mxu0
        %v1153 = vpop.f32.mrf.mxu0
        %v1154 = vadd.f32 0.0, %v1153
        %v1155 = vpop.f32.mrf.mxu0
        %1156 = vmatprep.mubr.bf16.mxu0 0
        %1157 = vmatmul.mubr.bf16.gmra.mxu0 %v928
        %v1158 = vpop.f32.mrf.mxu0
        %v1159 = vadd.f32 0.0, %v1158
        %v1160 = vpop.f32.mrf.mxu0
        %v1161 = vpop.f32.mrf.mxu0
        %v1162 = vadd.f32 0.0, %v1161
        %v1163 = vpop.f32.mrf.mxu0
        %1164 = vdwg.mxu0
        %v1165 = vadd.f32 %v1080, %v1151
        %v1166 = vadd.f32 %v1081, %v1154
        %v1167 = vadd.f32 %v1082, %v1159
        %v1168 = vadd.f32 %v1083, %v1162
        %1169 = vst.msk [vmem:[#allocation5] sm:$0xff] %vm923, %v1165
        %1170 = vst.msk [vmem:[#allocation5 + $0x8] sm:$0xff] %vm923, %v1166
        %1171 = vst.msk [vmem:[#allocation5 + $0x10] sm:$0xff] %vm923, %v1167
        %1172 = vst.msk [vmem:[#allocation5 + $0x18] sm:$0xff] %vm923, %v1168
        // Predicated region
        $region101: #{tpu_custom_call.1} parent=71 // pred_check
          %p1173 = pneg %p755
        $region102: #{tpu_custom_call.1} parent=71 // pred_check_branch
          %1175 = sbr.rel (%p1173) target = $region104
        $region103: #{tpu_custom_call.1} parent=71 // pred_region
          %v1176 = vld [vmem:[#allocation3] sm:$0xff]
          %v1177 = vld [vmem:[#allocation3 + $0x8] sm:$0xff]
          %v1178 = vld [vmem:[#allocation3 + $0x10] sm:$0xff]
          %v1179 = vld [vmem:[#allocation3 + $0x18] sm:$0xff]
          %v1180 = vld [vmem:[%s6] sm:$0x1]
          %v1182 = vlaneseq
          %v1183 = vshrl.u32 %v1182, 7
          %v1184 = vsub.s32 0, %v1183
          %v1185 = vrot.slane %v1180, %v1184
          %v1187 = vadd.f32 %v1176, %v1185
          %v1188 = vadd.f32 %v1177, %v1185
          %v1189 = vadd.f32 %v1178, %v1185
          %v1190 = vadd.f32 %v1179, %v1185
          %v1191 = vmul.f32 %v1187, %v1187
          %v1192 = vmul.f32 %v1188, %v1188
          %v1193 = vmul.f32 %v1189, %v1189
          %v1194 = vmul.f32 %v1190, %v1190
          %v1195 = vsel %vm923, %v1191, 0.0
          %1196 = vadd.xlane.f32.xlu0 %v1195
          %v1197 = vpop.xlane.xlu0 %1196
          %v1198 = vsel %vm923, %v1192, 0.0
          %1199 = vadd.xlane.f32.xlu0 %v1198
          %v1200 = vpop.xlane.xlu0 %1199
          %v1201 = vsel %vm923, %v1193, 0.0
          %1202 = vadd.xlane.f32.xlu0 %v1201
          %v1203 = vpop.xlane.xlu0 %1202
          %v1204 = vsel %vm923, %v1194, 0.0
          %1205 = vadd.xlane.f32.xlu0 %v1204
          %v1206 = vpop.xlane.xlu0 %1205
          %v1207 = vrcp.pop 64.0
          %v1208 = vmul.f32 %v1197, %v1207
          %v1209 = vmul.f32 %v1200, %v1207
          %v1210 = vmul.f32 %v1203, %v1207
          %v1211 = vmul.f32 %v1206, %v1207
          %v1212 = vadd.f32 %v1208, 1e-06
          %v1213 = vadd.f32 %v1209, 1e-06
          %v1214 = vadd.f32 %v1210, 1e-06
          %v1215 = vadd.f32 %v1211, 1e-06
          %v1216 = vrsqrt.pop %v1212
          %v1217 = vrsqrt.pop %v1213
          %v1218 = vrsqrt.pop %v1214
          %v1219 = vrsqrt.pop %v1215
          %v1220 = vmul.f32 %v1187, %v1216
          %v1221 = vmul.f32 %v1188, %v1217
          %v1222 = vmul.f32 %v1189, %v1218
          %v1223 = vmul.f32 %v1190, %v1219
          %v1224 = vld [vmem:[#allocation14] sm:$0x1]
          %v1226 = vlaneseq
          %v1227 = vshrl.u32 %v1226, 7
          %v1228 = vsub.s32 0, %v1227
          %v1229 = vrot.slane %v1224, %v1228
          %v1231 = vmul.f32 %v1220, %v1229
          %v1232 = vmul.f32 %v1221, %v1229
          %v1233 = vmul.f32 %v1222, %v1229
          %v1234 = vmul.f32 %v1223, %v1229
          %1239 = vrot.lane.b32.xlu0 %v1231, 112
          %v1240 = vpop.permute.xlu0 %1239
          %1241 = vrot.lane.b32.xlu0 %v1232, 112
          %v1242 = vpop.permute.xlu0 %1241
          %1243 = vrot.lane.b32.xlu0 %v1233, 112
          %v1244 = vpop.permute.xlu0 %1243
          %1245 = vrot.lane.b32.xlu0 %v1234, 112
          %v1246 = vpop.permute.xlu0 %1245
          %1251 = vrot.lane.b32.xlu0 %v1231, 96
          %v1252 = vpop.permute.xlu0 %1251
          %1253 = vrot.lane.b32.xlu0 %v1232, 96
          %v1254 = vpop.permute.xlu0 %1253
          %1255 = vrot.lane.b32.xlu0 %v1233, 96
          %v1256 = vpop.permute.xlu0 %1255
          %1257 = vrot.lane.b32.xlu0 %v1234, 96
          %v1258 = vpop.permute.xlu0 %1257
          %1263 = vrot.lane.b32.xlu0 %v1231, 80
          %v1264 = vpop.permute.xlu0 %1263
          %1265 = vrot.lane.b32.xlu0 %v1232, 80
          %v1266 = vpop.permute.xlu0 %1265
          %1267 = vrot.lane.b32.xlu0 %v1233, 80
          %v1268 = vpop.permute.xlu0 %1267
          %1269 = vrot.lane.b32.xlu0 %v1234, 80
          %v1270 = vpop.permute.xlu0 %1269
          %v1275 = vcombine.low %v1231, %v1252
          %v1276 = vcombine.high %v1231, %v1252
          %v1278 = vunpack.c.l.s4 1983009808
          %v1279 = vunpack.c.0.s8 %v1278
          %v1280 = vlaneseq
          %v1281 = vshrl.u32 %v1280, 7
          %v1282 = vsub.s32 %v1279, %v1281
          %v1283 = vrot.slane %v1275, %v1282
          %v1285 = vunpack.c.l.s4 1983009808
          %v1286 = vunpack.c.0.s8 %v1285
          %v1287 = vlaneseq
          %v1288 = vshrl.u32 %v1287, 7
          %v1289 = vsub.s32 %v1286, %v1288
          %v1290 = vrot.slane %v1276, %v1289
          %v1291 = vcombine.low %v1240, %v1264
          %v1292 = vcombine.high %v1240, %v1264
          %v1294 = vunpack.c.l.s4 1983009808
          %v1295 = vunpack.c.0.s8 %v1294
          %v1296 = vlaneseq
          %v1297 = vshrl.u32 %v1296, 7
          %v1298 = vsub.s32 %v1295, %v1297
          %v1299 = vrot.slane %v1291, %v1298
          %v1301 = vunpack.c.l.s4 1983009808
          %v1302 = vunpack.c.0.s8 %v1301
          %v1303 = vlaneseq
          %v1304 = vshrl.u32 %v1303, 7
          %v1305 = vsub.s32 %v1302, %v1304
          %v1306 = vrot.slane %v1292, %v1305
          %v1307 = vcombine.low %v1283, %v1299
          %v1308 = vcombine.high %v1283, %v1299
          %v1310 = vunpack.c.l.s4 1934713408
          %v1311 = vunpack.c.0.s8 %v1310
          %v1312 = vlaneseq
          %v1313 = vshrl.u32 %v1312, 7
          %v1314 = vsub.s32 %v1311, %v1313
          %v1315 = vrot.slane %v1307, %v1314
          %v1317 = vunpack.c.l.s4 1934713408
          %v1318 = vunpack.c.0.s8 %v1317
          %v1319 = vlaneseq
          %v1320 = vshrl.u32 %v1319, 7
          %v1321 = vsub.s32 %v1318, %v1320
          %v1322 = vrot.slane %v1308, %v1321
          %v1323 = vcombine.low %v1290, %v1306
          %v1324 = vcombine.high %v1290, %v1306
          %v1326 = vunpack.c.l.s4 1934713408
          %v1327 = vunpack.c.0.s8 %v1326
          %v1328 = vlaneseq
          %v1329 = vshrl.u32 %v1328, 7
          %v1330 = vsub.s32 %v1327, %v1329
          %v1331 = vrot.slane %v1323, %v1330
          %v1333 = vunpack.c.l.s4 1934713408
          %v1334 = vunpack.c.0.s8 %v1333
          %v1335 = vlaneseq
          %v1336 = vshrl.u32 %v1335, 7
          %v1337 = vsub.s32 %v1334, %v1336
          %v1338 = vrot.slane %v1324, %v1337
          %v1339 = vcombine.high %v1315, 0.0
          %v1340 = vcombine.high %v1322, 0.0
          %v1341 = vcombine.high %v1331, 0.0
          %v1342 = vcombine.high %v1338, 0.0
          %v1343 = vcombine.low %v1232, %v1254
          %v1344 = vcombine.high %v1232, %v1254
          %v1346 = vunpack.c.l.s4 1983009808
          %v1347 = vunpack.c.0.s8 %v1346
          %v1348 = vlaneseq
          %v1349 = vshrl.u32 %v1348, 7
          %v1350 = vsub.s32 %v1347, %v1349
          %v1351 = vrot.slane %v1343, %v1350
          %v1353 = vunpack.c.l.s4 1983009808
          %v1354 = vunpack.c.0.s8 %v1353
          %v1355 = vlaneseq
          %v1356 = vshrl.u32 %v1355, 7
          %v1357 = vsub.s32 %v1354, %v1356
          %v1358 = vrot.slane %v1344, %v1357
          %v1359 = vcombine.low %v1242, %v1266
          %v1360 = vcombine.high %v1242, %v1266
          %v1362 = vunpack.c.l.s4 1983009808
          %v1363 = vunpack.c.0.s8 %v1362
          %v1364 = vlaneseq
          %v1365 = vshrl.u32 %v1364, 7
          %v1366 = vsub.s32 %v1363, %v1365
          %v1367 = vrot.slane %v1359, %v1366
          %v1369 = vunpack.c.l.s4 1983009808
          %v1370 = vunpack.c.0.s8 %v1369
          %v1371 = vlaneseq
          %v1372 = vshrl.u32 %v1371, 7
          %v1373 = vsub.s32 %v1370, %v1372
          %v1374 = vrot.slane %v1360, %v1373
          %v1375 = vcombine.low %v1351, %v1367
          %v1376 = vcombine.high %v1351, %v1367
          %v1378 = vunpack.c.l.s4 1934713408
          %v1379 = vunpack.c.0.s8 %v1378
          %v1380 = vlaneseq
          %v1381 = vshrl.u32 %v1380, 7
          %v1382 = vsub.s32 %v1379, %v1381
          %v1383 = vrot.slane %v1375, %v1382
          %v1385 = vunpack.c.l.s4 1934713408
          %v1386 = vunpack.c.0.s8 %v1385
          %v1387 = vlaneseq
          %v1388 = vshrl.u32 %v1387, 7
          %v1389 = vsub.s32 %v1386, %v1388
          %v1390 = vrot.slane %v1376, %v1389
          %v1391 = vcombine.low %v1358, %v1374
          %v1392 = vcombine.high %v1358, %v1374
          %v1394 = vunpack.c.l.s4 1934713408
          %v1395 = vunpack.c.0.s8 %v1394
          %v1396 = vlaneseq
          %v1397 = vshrl.u32 %v1396, 7
          %v1398 = vsub.s32 %v1395, %v1397
          %v1399 = vrot.slane %v1391, %v1398
          %v1401 = vunpack.c.l.s4 1934713408
          %v1402 = vunpack.c.0.s8 %v1401
          %v1403 = vlaneseq
          %v1404 = vshrl.u32 %v1403, 7
          %v1405 = vsub.s32 %v1402, %v1404
          %v1406 = vrot.slane %v1392, %v1405
          %v1407 = vcombine.high %v1383, 0.0
          %v1408 = vcombine.high %v1390, 0.0
          %v1409 = vcombine.high %v1399, 0.0
          %v1410 = vcombine.high %v1406, 0.0
          %v1411 = vcombine.low %v1233, %v1256
          %v1412 = vcombine.high %v1233, %v1256
          %v1414 = vunpack.c.l.s4 1983009808
          %v1415 = vunpack.c.0.s8 %v1414
          %v1416 = vlaneseq
          %v1417 = vshrl.u32 %v1416, 7
          %v1418 = vsub.s32 %v1415, %v1417
          %v1419 = vrot.slane %v1411, %v1418
          %v1421 = vunpack.c.l.s4 1983009808
          %v1422 = vunpack.c.0.s8 %v1421
          %v1423 = vlaneseq
          %v1424 = vshrl.u32 %v1423, 7
          %v1425 = vsub.s32 %v1422, %v1424
          %v1426 = vrot.slane %v1412, %v1425
          %v1427 = vcombine.low %v1244, %v1268
          %v1428 = vcombine.high %v1244, %v1268
          %v1430 = vunpack.c.l.s4 1983009808
          %v1431 = vunpack.c.0.s8 %v1430
          %v1432 = vlaneseq
          %v1433 = vshrl.u32 %v1432, 7
          %v1434 = vsub.s32 %v1431, %v1433
          %v1435 = vrot.slane %v1427, %v1434
          %v1437 = vunpack.c.l.s4 1983009808
          %v1438 = vunpack.c.0.s8 %v1437
          %v1439 = vlaneseq
          %v1440 = vshrl.u32 %v1439, 7
          %v1441 = vsub.s32 %v1438, %v1440
          %v1442 = vrot.slane %v1428, %v1441
          %v1443 = vcombine.low %v1419, %v1435
          %v1444 = vcombine.high %v1419, %v1435
          %v1446 = vunpack.c.l.s4 1934713408
          %v1447 = vunpack.c.0.s8 %v1446
          %v1448 = vlaneseq
          %v1449 = vshrl.u32 %v1448, 7
          %v1450 = vsub.s32 %v1447, %v1449
          %v1451 = vrot.slane %v1443, %v1450
          %v1453 = vunpack.c.l.s4 1934713408
          %v1454 = vunpack.c.0.s8 %v1453
          %v1455 = vlaneseq
          %v1456 = vshrl.u32 %v1455, 7
          %v1457 = vsub.s32 %v1454, %v1456
          %v1458 = vrot.slane %v1444, %v1457
          %v1459 = vcombine.low %v1426, %v1442
          %v1460 = vcombine.high %v1426, %v1442
          %v1462 = vunpack.c.l.s4 1934713408
          %v1463 = vunpack.c.0.s8 %v1462
          %v1464 = vlaneseq
          %v1465 = vshrl.u32 %v1464, 7
          %v1466 = vsub.s32 %v1463, %v1465
          %v1467 = vrot.slane %v1459, %v1466
          %v1469 = vunpack.c.l.s4 1934713408
          %v1470 = vunpack.c.0.s8 %v1469
          %v1471 = vlaneseq
          %v1472 = vshrl.u32 %v1471, 7
          %v1473 = vsub.s32 %v1470, %v1472
          %v1474 = vrot.slane %v1460, %v1473
          %v1475 = vcombine.high %v1451, 0.0
          %v1476 = vcombine.high %v1458, 0.0
          %v1477 = vcombine.high %v1467, 0.0
          %v1478 = vcombine.high %v1474, 0.0
          %v1479 = vcombine.low %v1234, %v1258
          %v1480 = vcombine.high %v1234, %v1258
          %v1482 = vunpack.c.l.s4 1983009808
          %v1483 = vunpack.c.0.s8 %v1482
          %v1484 = vlaneseq
          %v1485 = vshrl.u32 %v1484, 7
          %v1486 = vsub.s32 %v1483, %v1485
          %v1487 = vrot.slane %v1479, %v1486
          %v1489 = vunpack.c.l.s4 1983009808
          %v1490 = vunpack.c.0.s8 %v1489
          %v1491 = vlaneseq
          %v1492 = vshrl.u32 %v1491, 7
          %v1493 = vsub.s32 %v1490, %v1492
          %v1494 = vrot.slane %v1480, %v1493
          %v1495 = vcombine.low %v1246, %v1270
          %v1496 = vcombine.high %v1246, %v1270
          %v1498 = vunpack.c.l.s4 1983009808
          %v1499 = vunpack.c.0.s8 %v1498
          %v1500 = vlaneseq
          %v1501 = vshrl.u32 %v1500, 7
          %v1502 = vsub.s32 %v1499, %v1501
          %v1503 = vrot.slane %v1495, %v1502
          %v1505 = vunpack.c.l.s4 1983009808
          %v1506 = vunpack.c.0.s8 %v1505
          %v1507 = vlaneseq
          %v1508 = vshrl.u32 %v1507, 7
          %v1509 = vsub.s32 %v1506, %v1508
          %v1510 = vrot.slane %v1496, %v1509
          %v1511 = vcombine.low %v1487, %v1503
          %v1512 = vcombine.high %v1487, %v1503
          %v1514 = vunpack.c.l.s4 1934713408
          %v1515 = vunpack.c.0.s8 %v1514
          %v1516 = vlaneseq
          %v1517 = vshrl.u32 %v1516, 7
          %v1518 = vsub.s32 %v1515, %v1517
          %v1519 = vrot.slane %v1511, %v1518
          %v1521 = vunpack.c.l.s4 1934713408
          %v1522 = vunpack.c.0.s8 %v1521
          %v1523 = vlaneseq
          %v1524 = vshrl.u32 %v1523, 7
          %v1525 = vsub.s32 %v1522, %v1524
          %v1526 = vrot.slane %v1512, %v1525
          %v1527 = vcombine.low %v1494, %v1510
          %v1528 = vcombine.high %v1494, %v1510
          %v1530 = vunpack.c.l.s4 1934713408
          %v1531 = vunpack.c.0.s8 %v1530
          %v1532 = vlaneseq
          %v1533 = vshrl.u32 %v1532, 7
          %v1534 = vsub.s32 %v1531, %v1533
          %v1535 = vrot.slane %v1527, %v1534
          %v1537 = vunpack.c.l.s4 1934713408
          %v1538 = vunpack.c.0.s8 %v1537
          %v1539 = vlaneseq
          %v1540 = vshrl.u32 %v1539, 7
          %v1541 = vsub.s32 %v1538, %v1540
          %v1542 = vrot.slane %v1528, %v1541
          %v1543 = vcombine.high %v1519, 0.0
          %v1544 = vcombine.high %v1526, 0.0
          %v1545 = vcombine.high %v1535, 0.0
          %v1546 = vcombine.high %v1542, 0.0
          %v1547 = vld [vmem:[%s743] sm:$0xff]
          %v1548 = vld [vmem:[%s743 + $0x8] sm:$0xff]
          %v1549 = vld [vmem:[%s743 + $0x10] sm:$0xff]
          %v1550 = vld [vmem:[%s743 + $0x18] sm:$0xff]
          %v1555 = vcombine.high %v1547, %v1547
          %v1557 = vunpack.c.l.s4 1966171168
          %v1558 = vunpack.c.0.s8 %v1557
          %v1559 = vlaneseq
          %v1560 = vshrl.u32 %v1559, 7
          %v1561 = vsub.s32 %v1558, %v1560
          %v1562 = vrot.slane %v1547, %v1561
          %v1564 = vunpack.c.l.s4 1966171168
          %v1565 = vunpack.c.0.s8 %v1564
          %v1566 = vlaneseq
          %v1567 = vshrl.u32 %v1566, 7
          %v1568 = vsub.s32 %v1565, %v1567
          %v1569 = vrot.slane %v1555, %v1568
          %v1570 = vcombine.high %v1562, %v1562
          %v1571 = vcombine.high %v1569, %v1569
          %v1573 = vunpack.c.l.s4 1966171168
          %v1574 = vunpack.c.0.s8 %v1573
          %v1575 = vlaneseq
          %v1576 = vshrl.u32 %v1575, 7
          %v1577 = vsub.s32 %v1574, %v1576
          %v1578 = vrot.slane %v1562, %v1577
          %v1580 = vunpack.c.l.s4 1966171168
          %v1581 = vunpack.c.0.s8 %v1580
          %v1582 = vlaneseq
          %v1583 = vshrl.u32 %v1582, 7
          %v1584 = vsub.s32 %v1581, %v1583
          %v1585 = vrot.slane %v1569, %v1584
          %v1587 = vunpack.c.l.s4 1966171168
          %v1588 = vunpack.c.0.s8 %v1587
          %v1589 = vlaneseq
          %v1590 = vshrl.u32 %v1589, 7
          %v1591 = vsub.s32 %v1588, %v1590
          %v1592 = vrot.slane %v1570, %v1591
          %v1594 = vunpack.c.l.s4 1966171168
          %v1595 = vunpack.c.0.s8 %v1594
          %v1596 = vlaneseq
          %v1597 = vshrl.u32 %v1596, 7
          %v1598 = vsub.s32 %v1595, %v1597
          %v1599 = vrot.slane %v1571, %v1598
          %v1600 = vcombine.high %v1578, %v1578
          %v1601 = vcombine.high %v1585, %v1585
          %v1602 = vcombine.high %v1592, %v1592
          %v1603 = vcombine.high %v1599, %v1599
          %v1604 = vcombine.high %v1548, %v1548
          %v1606 = vunpack.c.l.s4 1966171168
          %v1607 = vunpack.c.0.s8 %v1606
          %v1608 = vlaneseq
          %v1609 = vshrl.u32 %v1608, 7
          %v1610 = vsub.s32 %v1607, %v1609
          %v1611 = vrot.slane %v1548, %v1610
          %v1613 = vunpack.c.l.s4 1966171168
          %v1614 = vunpack.c.0.s8 %v1613
          %v1615 = vlaneseq
          %v1616 = vshrl.u32 %v1615, 7
          %v1617 = vsub.s32 %v1614, %v1616
          %v1618 = vrot.slane %v1604, %v1617
          %v1619 = vcombine.high %v1611, %v1611
          %v1620 = vcombine.high %v1618, %v1618
          %v1622 = vunpack.c.l.s4 1966171168
          %v1623 = vunpack.c.0.s8 %v1622
          %v1624 = vlaneseq
          %v1625 = vshrl.u32 %v1624, 7
          %v1626 = vsub.s32 %v1623, %v1625
          %v1627 = vrot.slane %v1611, %v1626
          %v1629 = vunpack.c.l.s4 1966171168
          %v1630 = vunpack.c.0.s8 %v1629
          %v1631 = vlaneseq
          %v1632 = vshrl.u32 %v1631, 7
          %v1633 = vsub.s32 %v1630, %v1632
          %v1634 = vrot.slane %v1618, %v1633
          %v1636 = vunpack.c.l.s4 1966171168
          %v1637 = vunpack.c.0.s8 %v1636
          %v1638 = vlaneseq
          %v1639 = vshrl.u32 %v1638, 7
          %v1640 = vsub.s32 %v1637, %v1639
          %v1641 = vrot.slane %v1619, %v1640
          %v1643 = vunpack.c.l.s4 1966171168
          %v1644 = vunpack.c.0.s8 %v1643
          %v1645 = vlaneseq
          %v1646 = vshrl.u32 %v1645, 7
          %v1647 = vsub.s32 %v1644, %v1646
          %v1648 = vrot.slane %v1620, %v1647
          %v1649 = vcombine.high %v1627, %v1627
          %v1650 = vcombine.high %v1634, %v1634
          %v1651 = vcombine.high %v1641, %v1641
          %v1652 = vcombine.high %v1648, %v1648
          %v1653 = vcombine.high %v1549, %v1549
          %v1655 = vunpack.c.l.s4 1966171168
          %v1656 = vunpack.c.0.s8 %v1655
          %v1657 = vlaneseq
          %v1658 = vshrl.u32 %v1657, 7
          %v1659 = vsub.s32 %v1656, %v1658
          %v1660 = vrot.slane %v1549, %v1659
          %v1662 = vunpack.c.l.s4 1966171168
          %v1663 = vunpack.c.0.s8 %v1662
          %v1664 = vlaneseq
          %v1665 = vshrl.u32 %v1664, 7
          %v1666 = vsub.s32 %v1663, %v1665
          %v1667 = vrot.slane %v1653, %v1666
          %v1668 = vcombine.high %v1660, %v1660
          %v1669 = vcombine.high %v1667, %v1667
          %v1671 = vunpack.c.l.s4 1966171168
          %v1672 = vunpack.c.0.s8 %v1671
          %v1673 = vlaneseq
          %v1674 = vshrl.u32 %v1673, 7
          %v1675 = vsub.s32 %v1672, %v1674
          %v1676 = vrot.slane %v1660, %v1675
          %v1678 = vunpack.c.l.s4 1966171168
          %v1679 = vunpack.c.0.s8 %v1678
          %v1680 = vlaneseq
          %v1681 = vshrl.u32 %v1680, 7
          %v1682 = vsub.s32 %v1679, %v1681
          %v1683 = vrot.slane %v1667, %v1682
          %v1685 = vunpack.c.l.s4 1966171168
          %v1686 = vunpack.c.0.s8 %v1685
          %v1687 = vlaneseq
          %v1688 = vshrl.u32 %v1687, 7
          %v1689 = vsub.s32 %v1686, %v1688
          %v1690 = vrot.slane %v1668, %v1689
          %v1692 = vunpack.c.l.s4 1966171168
          %v1693 = vunpack.c.0.s8 %v1692
          %v1694 = vlaneseq
          %v1695 = vshrl.u32 %v1694, 7
          %v1696 = vsub.s32 %v1693, %v1695
          %v1697 = vrot.slane %v1669, %v1696
          %v1698 = vcombine.high %v1676, %v1676
          %v1699 = vcombine.high %v1683, %v1683
          %v1700 = vcombine.high %v1690, %v1690
          %v1701 = vcombine.high %v1697, %v1697
          %v1702 = vcombine.high %v1550, %v1550
          %v1704 = vunpack.c.l.s4 1966171168
          %v1705 = vunpack.c.0.s8 %v1704
          %v1706 = vlaneseq
          %v1707 = vshrl.u32 %v1706, 7
          %v1708 = vsub.s32 %v1705, %v1707
          %v1709 = vrot.slane %v1550, %v1708
          %v1711 = vunpack.c.l.s4 1966171168
          %v1712 = vunpack.c.0.s8 %v1711
          %v1713 = vlaneseq
          %v1714 = vshrl.u32 %v1713, 7
          %v1715 = vsub.s32 %v1712, %v1714
          %v1716 = vrot.slane %v1702, %v1715
          %v1717 = vcombine.high %v1709, %v1709
          %v1718 = vcombine.high %v1716, %v1716
          %v1720 = vunpack.c.l.s4 1966171168
          %v1721 = vunpack.c.0.s8 %v1720
          %v1722 = vlaneseq
          %v1723 = vshrl.u32 %v1722, 7
          %v1724 = vsub.s32 %v1721, %v1723
          %v1725 = vrot.slane %v1709, %v1724
          %v1727 = vunpack.c.l.s4 1966171168
          %v1728 = vunpack.c.0.s8 %v1727
          %v1729 = vlaneseq
          %v1730 = vshrl.u32 %v1729, 7
          %v1731 = vsub.s32 %v1728, %v1730
          %v1732 = vrot.slane %v1716, %v1731
          %v1734 = vunpack.c.l.s4 1966171168
          %v1735 = vunpack.c.0.s8 %v1734
          %v1736 = vlaneseq
          %v1737 = vshrl.u32 %v1736, 7
          %v1738 = vsub.s32 %v1735, %v1737
          %v1739 = vrot.slane %v1717, %v1738
          %v1741 = vunpack.c.l.s4 1966171168
          %v1742 = vunpack.c.0.s8 %v1741
          %v1743 = vlaneseq
          %v1744 = vshrl.u32 %v1743, 7
          %v1745 = vsub.s32 %v1742, %v1744
          %v1746 = vrot.slane %v1718, %v1745
          %v1747 = vcombine.high %v1725, %v1725
          %v1748 = vcombine.high %v1732, %v1732
          %v1749 = vcombine.high %v1739, %v1739
          %v1750 = vcombine.high %v1746, %v1746
          %v1751 = vld [vmem:[%s749] sm:$0xff]
          %v1752 = vld [vmem:[%s749 + $0x8] sm:$0xff]
          %v1753 = vld [vmem:[%s749 + $0x10] sm:$0xff]
          %v1754 = vld [vmem:[%s749 + $0x18] sm:$0xff]
          %v1759 = vcombine.high %v1751, %v1751
          %v1761 = vunpack.c.l.s4 1966171168
          %v1762 = vunpack.c.0.s8 %v1761
          %v1763 = vlaneseq
          %v1764 = vshrl.u32 %v1763, 7
          %v1765 = vsub.s32 %v1762, %v1764
          %v1766 = vrot.slane %v1751, %v1765
          %v1768 = vunpack.c.l.s4 1966171168
          %v1769 = vunpack.c.0.s8 %v1768
          %v1770 = vlaneseq
          %v1771 = vshrl.u32 %v1770, 7
          %v1772 = vsub.s32 %v1769, %v1771
          %v1773 = vrot.slane %v1759, %v1772
          %v1774 = vcombine.high %v1766, %v1766
          %v1775 = vcombine.high %v1773, %v1773
          %v1777 = vunpack.c.l.s4 1966171168
          %v1778 = vunpack.c.0.s8 %v1777
          %v1779 = vlaneseq
          %v1780 = vshrl.u32 %v1779, 7
          %v1781 = vsub.s32 %v1778, %v1780
          %v1782 = vrot.slane %v1766, %v1781
          %v1784 = vunpack.c.l.s4 1966171168
          %v1785 = vunpack.c.0.s8 %v1784
          %v1786 = vlaneseq
          %v1787 = vshrl.u32 %v1786, 7
          %v1788 = vsub.s32 %v1785, %v1787
          %v1789 = vrot.slane %v1773, %v1788
          %v1791 = vunpack.c.l.s4 1966171168
          %v1792 = vunpack.c.0.s8 %v1791
          %v1793 = vlaneseq
          %v1794 = vshrl.u32 %v1793, 7
          %v1795 = vsub.s32 %v1792, %v1794
          %v1796 = vrot.slane %v1774, %v1795
          %v1798 = vunpack.c.l.s4 1966171168
          %v1799 = vunpack.c.0.s8 %v1798
          %v1800 = vlaneseq
          %v1801 = vshrl.u32 %v1800, 7
          %v1802 = vsub.s32 %v1799, %v1801
          %v1803 = vrot.slane %v1775, %v1802
          %v1804 = vcombine.high %v1782, %v1782
          %v1805 = vcombine.high %v1789, %v1789
          %v1806 = vcombine.high %v1796, %v1796
          %v1807 = vcombine.high %v1803, %v1803
          %v1808 = vcombine.high %v1752, %v1752
          %v1810 = vunpack.c.l.s4 1966171168
          %v1811 = vunpack.c.0.s8 %v1810
          %v1812 = vlaneseq
          %v1813 = vshrl.u32 %v1812, 7
          %v1814 = vsub.s32 %v1811, %v1813
          %v1815 = vrot.slane %v1752, %v1814
          %v1817 = vunpack.c.l.s4 1966171168
          %v1818 = vunpack.c.0.s8 %v1817
          %v1819 = vlaneseq
          %v1820 = vshrl.u32 %v1819, 7
          %v1821 = vsub.s32 %v1818, %v1820
          %v1822 = vrot.slane %v1808, %v1821
          %v1823 = vcombine.high %v1815, %v1815
          %v1824 = vcombine.high %v1822, %v1822
          %v1826 = vunpack.c.l.s4 1966171168
          %v1827 = vunpack.c.0.s8 %v1826
          %v1828 = vlaneseq
          %v1829 = vshrl.u32 %v1828, 7
          %v1830 = vsub.s32 %v1827, %v1829
          %v1831 = vrot.slane %v1815, %v1830
          %v1833 = vunpack.c.l.s4 1966171168
          %v1834 = vunpack.c.0.s8 %v1833
          %v1835 = vlaneseq
          %v1836 = vshrl.u32 %v1835, 7
          %v1837 = vsub.s32 %v1834, %v1836
          %v1838 = vrot.slane %v1822, %v1837
          %v1840 = vunpack.c.l.s4 1966171168
          %v1841 = vunpack.c.0.s8 %v1840
          %v1842 = vlaneseq
          %v1843 = vshrl.u32 %v1842, 7
          %v1844 = vsub.s32 %v1841, %v1843
          %v1845 = vrot.slane %v1823, %v1844
          %v1847 = vunpack.c.l.s4 1966171168
          %v1848 = vunpack.c.0.s8 %v1847
          %v1849 = vlaneseq
          %v1850 = vshrl.u32 %v1849, 7
          %v1851 = vsub.s32 %v1848, %v1850
          %v1852 = vrot.slane %v1824, %v1851
          %v1853 = vcombine.high %v1831, %v1831
          %v1854 = vcombine.high %v1838, %v1838
          %v1855 = vcombine.high %v1845, %v1845
          %v1856 = vcombine.high %v1852, %v1852
          %v1857 = vcombine.high %v1753, %v1753
          %v1859 = vunpack.c.l.s4 1966171168
          %v1860 = vunpack.c.0.s8 %v1859
          %v1861 = vlaneseq
          %v1862 = vshrl.u32 %v1861, 7
          %v1863 = vsub.s32 %v1860, %v1862
          %v1864 = vrot.slane %v1753, %v1863
          %v1866 = vunpack.c.l.s4 1966171168
          %v1867 = vunpack.c.0.s8 %v1866
          %v1868 = vlaneseq
          %v1869 = vshrl.u32 %v1868, 7
          %v1870 = vsub.s32 %v1867, %v1869
          %v1871 = vrot.slane %v1857, %v1870
          %v1872 = vcombine.high %v1864, %v1864
          %v1873 = vcombine.high %v1871, %v1871
          %v1875 = vunpack.c.l.s4 1966171168
          %v1876 = vunpack.c.0.s8 %v1875
          %v1877 = vlaneseq
          %v1878 = vshrl.u32 %v1877, 7
          %v1879 = vsub.s32 %v1876, %v1878
          %v1880 = vrot.slane %v1864, %v1879
          %v1882 = vunpack.c.l.s4 1966171168
          %v1883 = vunpack.c.0.s8 %v1882
          %v1884 = vlaneseq
          %v1885 = vshrl.u32 %v1884, 7
          %v1886 = vsub.s32 %v1883, %v1885
          %v1887 = vrot.slane %v1871, %v1886
          %v1889 = vunpack.c.l.s4 1966171168
          %v1890 = vunpack.c.0.s8 %v1889
          %v1891 = vlaneseq
          %v1892 = vshrl.u32 %v1891, 7
          %v1893 = vsub.s32 %v1890, %v1892
          %v1894 = vrot.slane %v1872, %v1893
          %v1896 = vunpack.c.l.s4 1966171168
          %v1897 = vunpack.c.0.s8 %v1896
          %v1898 = vlaneseq
          %v1899 = vshrl.u32 %v1898, 7
          %v1900 = vsub.s32 %v1897, %v1899
          %v1901 = vrot.slane %v1873, %v1900
          %v1902 = vcombine.high %v1880, %v1880
          %v1903 = vcombine.high %v1887, %v1887
          %v1904 = vcombine.high %v1894, %v1894
          %v1905 = vcombine.high %v1901, %v1901
          %v1906 = vcombine.high %v1754, %v1754
          %v1908 = vunpack.c.l.s4 1966171168
          %v1909 = vunpack.c.0.s8 %v1908
          %v1910 = vlaneseq
          %v1911 = vshrl.u32 %v1910, 7
          %v1912 = vsub.s32 %v1909, %v1911
          %v1913 = vrot.slane %v1754, %v1912
          %v1915 = vunpack.c.l.s4 1966171168
          %v1916 = vunpack.c.0.s8 %v1915
          %v1917 = vlaneseq
          %v1918 = vshrl.u32 %v1917, 7
          %v1919 = vsub.s32 %v1916, %v1918
          %v1920 = vrot.slane %v1906, %v1919
          %v1921 = vcombine.high %v1913, %v1913
          %v1922 = vcombine.high %v1920, %v1920
          %v1924 = vunpack.c.l.s4 1966171168
          %v1925 = vunpack.c.0.s8 %v1924
          %v1926 = vlaneseq
          %v1927 = vshrl.u32 %v1926, 7
          %v1928 = vsub.s32 %v1925, %v1927
          %v1929 = vrot.slane %v1913, %v1928
          %v1931 = vunpack.c.l.s4 1966171168
          %v1932 = vunpack.c.0.s8 %v1931
          %v1933 = vlaneseq
          %v1934 = vshrl.u32 %v1933, 7
          %v1935 = vsub.s32 %v1932, %v1934
          %v1936 = vrot.slane %v1920, %v1935
          %v1938 = vunpack.c.l.s4 1966171168
          %v1939 = vunpack.c.0.s8 %v1938
          %v1940 = vlaneseq
          %v1941 = vshrl.u32 %v1940, 7
          %v1942 = vsub.s32 %v1939, %v1941
          %v1943 = vrot.slane %v1921, %v1942
          %v1945 = vunpack.c.l.s4 1966171168
          %v1946 = vunpack.c.0.s8 %v1945
          %v1947 = vlaneseq
          %v1948 = vshrl.u32 %v1947, 7
          %v1949 = vsub.s32 %v1946, %v1948
          %v1950 = vrot.slane %v1922, %v1949
          %v1951 = vcombine.high %v1929, %v1929
          %v1952 = vcombine.high %v1936, %v1936
          %v1953 = vcombine.high %v1943, %v1943
          %v1954 = vcombine.high %v1950, %v1950
          %v1955 = vlaneseq
          %v1956 = vshrl.u32 %v1955, 7
          %v1957 = vsub.s32 0, %v1956
          %v1958 = vrot.slane %v1578, %v1957
          %v1959 = vlaneseq
          %v1960 = vshrl.u32 %v1959, 7
          %v1961 = vsub.s32 0, %v1960
          %v1962 = vrot.slane %v1592, %v1961
          %v1963 = vlaneseq
          %v1964 = vshrl.u32 %v1963, 7
          %v1965 = vsub.s32 0, %v1964
          %v1966 = vrot.slane %v1600, %v1965
          %v1967 = vlaneseq
          %v1968 = vshrl.u32 %v1967, 7
          %v1969 = vsub.s32 0, %v1968
          %v1970 = vrot.slane %v1602, %v1969
          %v1971 = vlaneseq
          %v1972 = vshrl.u32 %v1971, 7
          %v1973 = vsub.s32 0, %v1972
          %v1974 = vrot.slane %v1585, %v1973
          %v1975 = vlaneseq
          %v1976 = vshrl.u32 %v1975, 7
          %v1977 = vsub.s32 0, %v1976
          %v1978 = vrot.slane %v1599, %v1977
          %v1979 = vlaneseq
          %v1980 = vshrl.u32 %v1979, 7
          %v1981 = vsub.s32 0, %v1980
          %v1982 = vrot.slane %v1601, %v1981
          %v1983 = vlaneseq
          %v1984 = vshrl.u32 %v1983, 7
          %v1985 = vsub.s32 0, %v1984
          %v1986 = vrot.slane %v1603, %v1985
          %v1987 = vlaneseq
          %v1988 = vshrl.u32 %v1987, 7
          %v1989 = vsub.s32 0, %v1988
          %v1990 = vrot.slane %v1627, %v1989
          %v1991 = vlaneseq
          %v1992 = vshrl.u32 %v1991, 7
          %v1993 = vsub.s32 0, %v1992
          %v1994 = vrot.slane %v1641, %v1993
          %v1995 = vlaneseq
          %v1996 = vshrl.u32 %v1995, 7
          %v1997 = vsub.s32 0, %v1996
          %v1998 = vrot.slane %v1649, %v1997
          %v1999 = vlaneseq
          %v2000 = vshrl.u32 %v1999, 7
          %v2001 = vsub.s32 0, %v2000
          %v2002 = vrot.slane %v1651, %v2001
          %v2003 = vlaneseq
          %v2004 = vshrl.u32 %v2003, 7
          %v2005 = vsub.s32 0, %v2004
          %v2006 = vrot.slane %v1634, %v2005
          %v2007 = vlaneseq
          %v2008 = vshrl.u32 %v2007, 7
          %v2009 = vsub.s32 0, %v2008
          %v2010 = vrot.slane %v1648, %v2009
          %v2011 = vlaneseq
          %v2012 = vshrl.u32 %v2011, 7
          %v2013 = vsub.s32 0, %v2012
          %v2014 = vrot.slane %v1650, %v2013
          %v2015 = vlaneseq
          %v2016 = vshrl.u32 %v2015, 7
          %v2017 = vsub.s32 0, %v2016
          %v2018 = vrot.slane %v1652, %v2017
          %v2019 = vlaneseq
          %v2020 = vshrl.u32 %v2019, 7
          %v2021 = vsub.s32 0, %v2020
          %v2022 = vrot.slane %v1676, %v2021
          %v2023 = vlaneseq
          %v2024 = vshrl.u32 %v2023, 7
          %v2025 = vsub.s32 0, %v2024
          %v2026 = vrot.slane %v1690, %v2025
          %v2027 = vlaneseq
          %v2028 = vshrl.u32 %v2027, 7
          %v2029 = vsub.s32 0, %v2028
          %v2030 = vrot.slane %v1698, %v2029
          %v2031 = vlaneseq
          %v2032 = vshrl.u32 %v2031, 7
          %v2033 = vsub.s32 0, %v2032
          %v2034 = vrot.slane %v1700, %v2033
          %v2035 = vlaneseq
          %v2036 = vshrl.u32 %v2035, 7
          %v2037 = vsub.s32 0, %v2036
          %v2038 = vrot.slane %v1683, %v2037
          %v2039 = vlaneseq
          %v2040 = vshrl.u32 %v2039, 7
          %v2041 = vsub.s32 0, %v2040
          %v2042 = vrot.slane %v1697, %v2041
          %v2043 = vlaneseq
          %v2044 = vshrl.u32 %v2043, 7
          %v2045 = vsub.s32 0, %v2044
          %v2046 = vrot.slane %v1699, %v2045
          %v2047 = vlaneseq
          %v2048 = vshrl.u32 %v2047, 7
          %v2049 = vsub.s32 0, %v2048
          %v2050 = vrot.slane %v1701, %v2049
          %v2051 = vlaneseq
          %v2052 = vshrl.u32 %v2051, 7
          %v2053 = vsub.s32 0, %v2052
          %v2054 = vrot.slane %v1725, %v2053
          %v2055 = vlaneseq
          %v2056 = vshrl.u32 %v2055, 7
          %v2057 = vsub.s32 0, %v2056
          %v2058 = vrot.slane %v1739, %v2057
          %v2059 = vlaneseq
          %v2060 = vshrl.u32 %v2059, 7
          %v2061 = vsub.s32 0, %v2060
          %v2062 = vrot.slane %v1747, %v2061
          %v2063 = vlaneseq
          %v2064 = vshrl.u32 %v2063, 7
          %v2065 = vsub.s32 0, %v2064
          %v2066 = vrot.slane %v1749, %v2065
          %v2067 = vlaneseq
          %v2068 = vshrl.u32 %v2067, 7
          %v2069 = vsub.s32 0, %v2068
          %v2070 = vrot.slane %v1732, %v2069
          %v2071 = vlaneseq
          %v2072 = vshrl.u32 %v2071, 7
          %v2073 = vsub.s32 0, %v2072
          %v2074 = vrot.slane %v1746, %v2073
          %v2075 = vlaneseq
          %v2076 = vshrl.u32 %v2075, 7
          %v2077 = vsub.s32 0, %v2076
          %v2078 = vrot.slane %v1748, %v2077
          %v2079 = vlaneseq
          %v2080 = vshrl.u32 %v2079, 7
          %v2081 = vsub.s32 0, %v2080
          %v2082 = vrot.slane %v1750, %v2081
          %v2115 = vmul.f32 %v1315, %v1958
          %v2116 = vmul.f32 %v1339, %v1962
          %v2117 = vmul.f32 %v1322, %v1966
          %v2118 = vmul.f32 %v1340, %v1970
          %v2119 = vmul.f32 %v1331, %v1974
          %v2120 = vmul.f32 %v1341, %v1978
          %v2121 = vmul.f32 %v1338, %v1982
          %v2122 = vmul.f32 %v1342, %v1986
          %v2123 = vmul.f32 %v1383, %v1990
          %v2124 = vmul.f32 %v1407, %v1994
          %v2125 = vmul.f32 %v1390, %v1998
          %v2126 = vmul.f32 %v1408, %v2002
          %v2127 = vmul.f32 %v1399, %v2006
          %v2128 = vmul.f32 %v1409, %v2010
          %v2129 = vmul.f32 %v1406, %v2014
          %v2130 = vmul.f32 %v1410, %v2018
          %v2131 = vmul.f32 %v1451, %v2022
          %v2132 = vmul.f32 %v1475, %v2026
          %v2133 = vmul.f32 %v1458, %v2030
          %v2134 = vmul.f32 %v1476, %v2034
          %v2135 = vmul.f32 %v1467, %v2038
          %v2136 = vmul.f32 %v1477, %v2042
          %v2137 = vmul.f32 %v1474, %v2046
          %v2138 = vmul.f32 %v1478, %v2050
          %v2139 = vmul.f32 %v1519, %v2054
          %v2140 = vmul.f32 %v1543, %v2058
          %v2141 = vmul.f32 %v1526, %v2062
          %v2142 = vmul.f32 %v1544, %v2066
          %v2143 = vmul.f32 %v1535, %v2070
          %v2144 = vmul.f32 %v1545, %v2074
          %v2145 = vmul.f32 %v1542, %v2078
          %v2146 = vmul.f32 %v1546, %v2082
          %v2147 = vsub.f32 0.0, %v1315
          %v2148 = vsub.f32 0.0, %v1339
          %v2149 = vsub.f32 0.0, %v1322
          %v2150 = vsub.f32 0.0, %v1340
          %v2151 = vsub.f32 0.0, %v1331
          %v2152 = vsub.f32 0.0, %v1341
          %v2153 = vsub.f32 0.0, %v1338
          %v2154 = vsub.f32 0.0, %v1342
          %v2155 = vsub.f32 0.0, %v1383
          %v2156 = vsub.f32 0.0, %v1407
          %v2157 = vsub.f32 0.0, %v1390
          %v2158 = vsub.f32 0.0, %v1408
          %v2159 = vsub.f32 0.0, %v1399
          %v2160 = vsub.f32 0.0, %v1409
          %v2161 = vsub.f32 0.0, %v1406
          %v2162 = vsub.f32 0.0, %v1410
          %v2163 = vsub.f32 0.0, %v1451
          %v2164 = vsub.f32 0.0, %v1475
          %v2165 = vsub.f32 0.0, %v1458
          %v2166 = vsub.f32 0.0, %v1476
          %v2167 = vsub.f32 0.0, %v1467
          %v2168 = vsub.f32 0.0, %v1477
          %v2169 = vsub.f32 0.0, %v1474
          %v2170 = vsub.f32 0.0, %v1478
          %v2171 = vsub.f32 0.0, %v1519
          %v2172 = vsub.f32 0.0, %v1543
          %v2173 = vsub.f32 0.0, %v1526
          %v2174 = vsub.f32 0.0, %v1544
          %v2175 = vsub.f32 0.0, %v1535
          %v2176 = vsub.f32 0.0, %v1545
          %v2177 = vsub.f32 0.0, %v1542
          %v2178 = vsub.f32 0.0, %v1546
          %2211 = vrot.lane.b32.xlu0 %v2147, 120
          %v2212 = vpop.permute.xlu0 %2211
          %2213 = vrot.lane.b32.xlu0 %v2148, 120
          %v2214 = vpop.permute.xlu0 %2213
          %2215 = vrot.lane.b32.xlu0 %v2149, 120
          %v2216 = vpop.permute.xlu0 %2215
          %2217 = vrot.lane.b32.xlu0 %v2150, 120
          %v2218 = vpop.permute.xlu0 %2217
          %2219 = vrot.lane.b32.xlu0 %v2151, 120
          %v2220 = vpop.permute.xlu0 %2219
          %2221 = vrot.lane.b32.xlu0 %v2152, 120
          %v2222 = vpop.permute.xlu0 %2221
          %2223 = vrot.lane.b32.xlu0 %v2153, 120
          %v2224 = vpop.permute.xlu0 %2223
          %2225 = vrot.lane.b32.xlu0 %v2154, 120
          %v2226 = vpop.permute.xlu0 %2225
          %2227 = vrot.lane.b32.xlu0 %v2155, 120
          %v2228 = vpop.permute.xlu0 %2227
          %2229 = vrot.lane.b32.xlu0 %v2156, 120
          %v2230 = vpop.permute.xlu0 %2229
          %2231 = vrot.lane.b32.xlu0 %v2157, 120
          %v2232 = vpop.permute.xlu0 %2231
          %2233 = vrot.lane.b32.xlu0 %v2158, 120
          %v2234 = vpop.permute.xlu0 %2233
          %2235 = vrot.lane.b32.xlu0 %v2159, 120
          %v2236 = vpop.permute.xlu0 %2235
          %2237 = vrot.lane.b32.xlu0 %v2160, 120
          %v2238 = vpop.permute.xlu0 %2237
          %2239 = vrot.lane.b32.xlu0 %v2161, 120
          %v2240 = vpop.permute.xlu0 %2239
          %2241 = vrot.lane.b32.xlu0 %v2162, 120
          %v2242 = vpop.permute.xlu0 %2241
          %2243 = vrot.lane.b32.xlu0 %v2163, 120
          %v2244 = vpop.permute.xlu0 %2243
          %2245 = vrot.lane.b32.xlu0 %v2164, 120
          %v2246 = vpop.permute.xlu0 %2245
          %2247 = vrot.lane.b32.xlu0 %v2165, 120
          %v2248 = vpop.permute.xlu0 %2247
          %2249 = vrot.lane.b32.xlu0 %v2166, 120
          %v2250 = vpop.permute.xlu0 %2249
          %2251 = vrot.lane.b32.xlu0 %v2167, 120
          %v2252 = vpop.permute.xlu0 %2251
          %2253 = vrot.lane.b32.xlu0 %v2168, 120
          %v2254 = vpop.permute.xlu0 %2253
          %2255 = vrot.lane.b32.xlu0 %v2169, 120
          %v2256 = vpop.permute.xlu0 %2255
          %2257 = vrot.lane.b32.xlu0 %v2170, 120
          %v2258 = vpop.permute.xlu0 %2257
          %2259 = vrot.lane.b32.xlu0 %v2171, 120
          %v2260 = vpop.permute.xlu0 %2259
          %2261 = vrot.lane.b32.xlu0 %v2172, 120
          %v2262 = vpop.permute.xlu0 %2261
          %2263 = vrot.lane.b32.xlu0 %v2173, 120
          %v2264 = vpop.permute.xlu0 %2263
          %2265 = vrot.lane.b32.xlu0 %v2174, 120
          %v2266 = vpop.permute.xlu0 %2265
          %2267 = vrot.lane.b32.xlu0 %v2175, 120
          %v2268 = vpop.permute.xlu0 %2267
          %2269 = vrot.lane.b32.xlu0 %v2176, 120
          %v2270 = vpop.permute.xlu0 %2269
          %2271 = vrot.lane.b32.xlu0 %v2177, 120
          %v2272 = vpop.permute.xlu0 %2271
          %2273 = vrot.lane.b32.xlu0 %v2178, 120
          %v2274 = vpop.permute.xlu0 %2273
          %2339 = vrot.lane.b32.xlu0 %v1315, 8
          %v2340 = vpop.permute.xlu0 %2339
          %2341 = vrot.lane.b32.xlu0 %v1339, 8
          %v2342 = vpop.permute.xlu0 %2341
          %2343 = vrot.lane.b32.xlu0 %v1322, 8
          %v2344 = vpop.permute.xlu0 %2343
          %2345 = vrot.lane.b32.xlu0 %v1340, 8
          %v2346 = vpop.permute.xlu0 %2345
          %2347 = vrot.lane.b32.xlu0 %v1331, 8
          %v2348 = vpop.permute.xlu0 %2347
          %2349 = vrot.lane.b32.xlu0 %v1341, 8
          %v2350 = vpop.permute.xlu0 %2349
          %2351 = vrot.lane.b32.xlu0 %v1338, 8
          %v2352 = vpop.permute.xlu0 %2351
          %2353 = vrot.lane.b32.xlu0 %v1342, 8
          %v2354 = vpop.permute.xlu0 %2353
          %2355 = vrot.lane.b32.xlu0 %v1383, 8
          %v2356 = vpop.permute.xlu0 %2355
          %2357 = vrot.lane.b32.xlu0 %v1407, 8
          %v2358 = vpop.permute.xlu0 %2357
          %2359 = vrot.lane.b32.xlu0 %v1390, 8
          %v2360 = vpop.permute.xlu0 %2359
          %2361 = vrot.lane.b32.xlu0 %v1408, 8
          %v2362 = vpop.permute.xlu0 %2361
          %2363 = vrot.lane.b32.xlu0 %v1399, 8
          %v2364 = vpop.permute.xlu0 %2363
          %2365 = vrot.lane.b32.xlu0 %v1409, 8
          %v2366 = vpop.permute.xlu0 %2365
          %2367 = vrot.lane.b32.xlu0 %v1406, 8
          %v2368 = vpop.permute.xlu0 %2367
          %2369 = vrot.lane.b32.xlu0 %v1410, 8
          %v2370 = vpop.permute.xlu0 %2369
          %2371 = vrot.lane.b32.xlu0 %v1451, 8
          %v2372 = vpop.permute.xlu0 %2371
          %2373 = vrot.lane.b32.xlu0 %v1475, 8
          %v2374 = vpop.permute.xlu0 %2373
          %2375 = vrot.lane.b32.xlu0 %v1458, 8
          %v2376 = vpop.permute.xlu0 %2375
          %2377 = vrot.lane.b32.xlu0 %v1476, 8
          %v2378 = vpop.permute.xlu0 %2377
          %2379 = vrot.lane.b32.xlu0 %v1467, 8
          %v2380 = vpop.permute.xlu0 %2379
          %2381 = vrot.lane.b32.xlu0 %v1477, 8
          %v2382 = vpop.permute.xlu0 %2381
          %2383 = vrot.lane.b32.xlu0 %v1474, 8
          %v2384 = vpop.permute.xlu0 %2383
          %2385 = vrot.lane.b32.xlu0 %v1478, 8
          %v2386 = vpop.permute.xlu0 %2385
          %2387 = vrot.lane.b32.xlu0 %v1519, 8
          %v2388 = vpop.permute.xlu0 %2387
          %2389 = vrot.lane.b32.xlu0 %v1543, 8
          %v2390 = vpop.permute.xlu0 %2389
          %2391 = vrot.lane.b32.xlu0 %v1526, 8
          %v2392 = vpop.permute.xlu0 %2391
          %2393 = vrot.lane.b32.xlu0 %v1544, 8
          %v2394 = vpop.permute.xlu0 %2393
          %2395 = vrot.lane.b32.xlu0 %v1535, 8
          %v2396 = vpop.permute.xlu0 %2395
          %2397 = vrot.lane.b32.xlu0 %v1545, 8
          %v2398 = vpop.permute.xlu0 %2397
          %2399 = vrot.lane.b32.xlu0 %v1542, 8
          %v2400 = vpop.permute.xlu0 %2399
          %2401 = vrot.lane.b32.xlu0 %v1546, 8
          %v2402 = vpop.permute.xlu0 %2401
          %vm2435 = vcmask 64512
          %v2436 = vsel %vm2435, %v2212, %v2340
          %v2437 = vsel %vm2435, %v2214, %v2342
          %v2438 = vsel %vm2435, %v2216, %v2344
          %v2439 = vsel %vm2435, %v2218, %v2346
          %v2440 = vsel %vm2435, %v2220, %v2348
          %v2441 = vsel %vm2435, %v2222, %v2350
          %v2442 = vsel %vm2435, %v2224, %v2352
          %v2443 = vsel %vm2435, %v2226, %v2354
          %v2444 = vsel %vm2435, %v2228, %v2356
          %v2445 = vsel %vm2435, %v2230, %v2358
          %v2446 = vsel %vm2435, %v2232, %v2360
          %v2447 = vsel %vm2435, %v2234, %v2362
          %v2448 = vsel %vm2435, %v2236, %v2364
          %v2449 = vsel %vm2435, %v2238, %v2366
          %v2450 = vsel %vm2435, %v2240, %v2368
          %v2451 = vsel %vm2435, %v2242, %v2370
          %v2452 = vsel %vm2435, %v2244, %v2372
          %v2453 = vsel %vm2435, %v2246, %v2374
          %v2454 = vsel %vm2435, %v2248, %v2376
          %v2455 = vsel %vm2435, %v2250, %v2378
          %v2456 = vsel %vm2435, %v2252, %v2380
          %v2457 = vsel %vm2435, %v2254, %v2382
          %v2458 = vsel %vm2435, %v2256, %v2384
          %v2459 = vsel %vm2435, %v2258, %v2386
          %v2460 = vsel %vm2435, %v2260, %v2388
          %v2461 = vsel %vm2435, %v2262, %v2390
          %v2462 = vsel %vm2435, %v2264, %v2392
          %v2463 = vsel %vm2435, %v2266, %v2394
          %v2464 = vsel %vm2435, %v2268, %v2396
          %v2465 = vsel %vm2435, %v2270, %v2398
          %v2466 = vsel %vm2435, %v2272, %v2400
          %v2467 = vsel %vm2435, %v2274, %v2402
          %v2468 = vlaneseq
          %v2469 = vshrl.u32 %v2468, 7
          %v2470 = vsub.s32 0, %v2469
          %v2471 = vrot.slane %v1782, %v2470
          %v2472 = vlaneseq
          %v2473 = vshrl.u32 %v2472, 7
          %v2474 = vsub.s32 0, %v2473
          %v2475 = vrot.slane %v1796, %v2474
          %v2476 = vlaneseq
          %v2477 = vshrl.u32 %v2476, 7
          %v2478 = vsub.s32 0, %v2477
          %v2479 = vrot.slane %v1804, %v2478
          %v2480 = vlaneseq
          %v2481 = vshrl.u32 %v2480, 7
          %v2482 = vsub.s32 0, %v2481
          %v2483 = vrot.slane %v1806, %v2482
          %v2484 = vlaneseq
          %v2485 = vshrl.u32 %v2484, 7
          %v2486 = vsub.s32 0, %v2485
          %v2487 = vrot.slane %v1789, %v2486
          %v2488 = vlaneseq
          %v2489 = vshrl.u32 %v2488, 7
          %v2490 = vsub.s32 0, %v2489
          %v2491 = vrot.slane %v1803, %v2490
          %v2492 = vlaneseq
          %v2493 = vshrl.u32 %v2492, 7
          %v2494 = vsub.s32 0, %v2493
          %v2495 = vrot.slane %v1805, %v2494
          %v2496 = vlaneseq
          %v2497 = vshrl.u32 %v2496, 7
          %v2498 = vsub.s32 0, %v2497
          %v2499 = vrot.slane %v1807, %v2498
          %v2500 = vlaneseq
          %v2501 = vshrl.u32 %v2500, 7
          %v2502 = vsub.s32 0, %v2501
          %v2503 = vrot.slane %v1831, %v2502
          %v2504 = vlaneseq
          %v2505 = vshrl.u32 %v2504, 7
          %v2506 = vsub.s32 0, %v2505
          %v2507 = vrot.slane %v1845, %v2506
          %v2508 = vlaneseq
          %v2509 = vshrl.u32 %v2508, 7
          %v2510 = vsub.s32 0, %v2509
          %v2511 = vrot.slane %v1853, %v2510
          %v2512 = vlaneseq
          %v2513 = vshrl.u32 %v2512, 7
          %v2514 = vsub.s32 0, %v2513
          %v2515 = vrot.slane %v1855, %v2514
          %v2516 = vlaneseq
          %v2517 = vshrl.u32 %v2516, 7
          %v2518 = vsub.s32 0, %v2517
          %v2519 = vrot.slane %v1838, %v2518
          %v2520 = vlaneseq
          %v2521 = vshrl.u32 %v2520, 7
          %v2522 = vsub.s32 0, %v2521
          %v2523 = vrot.slane %v1852, %v2522
          %v2524 = vlaneseq
          %v2525 = vshrl.u32 %v2524, 7
          %v2526 = vsub.s32 0, %v2525
          %v2527 = vrot.slane %v1854, %v2526
          %v2528 = vlaneseq
          %v2529 = vshrl.u32 %v2528, 7
          %v2530 = vsub.s32 0, %v2529
          %v2531 = vrot.slane %v1856, %v2530
          %v2532 = vlaneseq
          %v2533 = vshrl.u32 %v2532, 7
          %v2534 = vsub.s32 0, %v2533
          %v2535 = vrot.slane %v1880, %v2534
          %v2536 = vlaneseq
          %v2537 = vshrl.u32 %v2536, 7
          %v2538 = vsub.s32 0, %v2537
          %v2539 = vrot.slane %v1894, %v2538
          %v2540 = vlaneseq
          %v2541 = vshrl.u32 %v2540, 7
          %v2542 = vsub.s32 0, %v2541
          %v2543 = vrot.slane %v1902, %v2542
          %v2544 = vlaneseq
          %v2545 = vshrl.u32 %v2544, 7
          %v2546 = vsub.s32 0, %v2545
          %v2547 = vrot.slane %v1904, %v2546
          %v2548 = vlaneseq
          %v2549 = vshrl.u32 %v2548, 7
          %v2550 = vsub.s32 0, %v2549
          %v2551 = vrot.slane %v1887, %v2550
          %v2552 = vlaneseq
          %v2553 = vshrl.u32 %v2552, 7
          %v2554 = vsub.s32 0, %v2553
          %v2555 = vrot.slane %v1901, %v2554
          %v2556 = vlaneseq
          %v2557 = vshrl.u32 %v2556, 7
          %v2558 = vsub.s32 0, %v2557
          %v2559 = vrot.slane %v1903, %v2558
          %v2560 = vlaneseq
          %v2561 = vshrl.u32 %v2560, 7
          %v2562 = vsub.s32 0, %v2561
          %v2563 = vrot.slane %v1905, %v2562
          %v2564 = vlaneseq
          %v2565 = vshrl.u32 %v2564, 7
          %v2566 = vsub.s32 0, %v2565
          %v2567 = vrot.slane %v1929, %v2566
          %v2568 = vlaneseq
          %v2569 = vshrl.u32 %v2568, 7
          %v2570 = vsub.s32 0, %v2569
          %v2571 = vrot.slane %v1943, %v2570
          %v2572 = vlaneseq
          %v2573 = vshrl.u32 %v2572, 7
          %v2574 = vsub.s32 0, %v2573
          %v2575 = vrot.slane %v1951, %v2574
          %v2576 = vlaneseq
          %v2577 = vshrl.u32 %v2576, 7
          %v2578 = vsub.s32 0, %v2577
          %v2579 = vrot.slane %v1953, %v2578
          %v2580 = vlaneseq
          %v2581 = vshrl.u32 %v2580, 7
          %v2582 = vsub.s32 0, %v2581
          %v2583 = vrot.slane %v1936, %v2582
          %v2584 = vlaneseq
          %v2585 = vshrl.u32 %v2584, 7
          %v2586 = vsub.s32 0, %v2585
          %v2587 = vrot.slane %v1950, %v2586
          %v2588 = vlaneseq
          %v2589 = vshrl.u32 %v2588, 7
          %v2590 = vsub.s32 0, %v2589
          %v2591 = vrot.slane %v1952, %v2590
          %v2592 = vlaneseq
          %v2593 = vshrl.u32 %v2592, 7
          %v2594 = vsub.s32 0, %v2593
          %v2595 = vrot.slane %v1954, %v2594
          %v2628 = vmul.f32 %v2436, %v2471
          %v2629 = vmul.f32 %v2437, %v2475
          %v2630 = vmul.f32 %v2438, %v2479
          %v2631 = vmul.f32 %v2439, %v2483
          %v2632 = vmul.f32 %v2440, %v2487
          %v2633 = vmul.f32 %v2441, %v2491
          %v2634 = vmul.f32 %v2442, %v2495
          %v2635 = vmul.f32 %v2443, %v2499
          %v2636 = vmul.f32 %v2444, %v2503
          %v2637 = vmul.f32 %v2445, %v2507
          %v2638 = vmul.f32 %v2446, %v2511
          %v2639 = vmul.f32 %v2447, %v2515
          %v2640 = vmul.f32 %v2448, %v2519
          %v2641 = vmul.f32 %v2449, %v2523
          %v2642 = vmul.f32 %v2450, %v2527
          %v2643 = vmul.f32 %v2451, %v2531
          %v2644 = vmul.f32 %v2452, %v2535
          %v2645 = vmul.f32 %v2453, %v2539
          %v2646 = vmul.f32 %v2454, %v2543
          %v2647 = vmul.f32 %v2455, %v2547
          %v2648 = vmul.f32 %v2456, %v2551
          %v2649 = vmul.f32 %v2457, %v2555
          %v2650 = vmul.f32 %v2458, %v2559
          %v2651 = vmul.f32 %v2459, %v2563
          %v2652 = vmul.f32 %v2460, %v2567
          %v2653 = vmul.f32 %v2461, %v2571
          %v2654 = vmul.f32 %v2462, %v2575
          %v2655 = vmul.f32 %v2463, %v2579
          %v2656 = vmul.f32 %v2464, %v2583
          %v2657 = vmul.f32 %v2465, %v2587
          %v2658 = vmul.f32 %v2466, %v2591
          %v2659 = vmul.f32 %v2467, %v2595
          %v2660 = vadd.f32 %v2115, %v2628
          %v2661 = vadd.f32 %v2116, %v2629
          %v2662 = vadd.f32 %v2117, %v2630
          %v2663 = vadd.f32 %v2118, %v2631
          %v2664 = vadd.f32 %v2119, %v2632
          %v2665 = vadd.f32 %v2120, %v2633
          %v2666 = vadd.f32 %v2121, %v2634
          %v2667 = vadd.f32 %v2122, %v2635
          %v2668 = vadd.f32 %v2123, %v2636
          %v2669 = vadd.f32 %v2124, %v2637
          %v2670 = vadd.f32 %v2125, %v2638
          %v2671 = vadd.f32 %v2126, %v2639
          %v2672 = vadd.f32 %v2127, %v2640
          %v2673 = vadd.f32 %v2128, %v2641
          %v2674 = vadd.f32 %v2129, %v2642
          %v2675 = vadd.f32 %v2130, %v2643
          %v2676 = vadd.f32 %v2131, %v2644
          %v2677 = vadd.f32 %v2132, %v2645
          %v2678 = vadd.f32 %v2133, %v2646
          %v2679 = vadd.f32 %v2134, %v2647
          %v2680 = vadd.f32 %v2135, %v2648
          %v2681 = vadd.f32 %v2136, %v2649
          %v2682 = vadd.f32 %v2137, %v2650
          %v2683 = vadd.f32 %v2138, %v2651
          %v2684 = vadd.f32 %v2139, %v2652
          %v2685 = vadd.f32 %v2140, %v2653
          %v2686 = vadd.f32 %v2141, %v2654
          %v2687 = vadd.f32 %v2142, %v2655
          %v2688 = vadd.f32 %v2143, %v2656
          %v2689 = vadd.f32 %v2144, %v2657
          %v2690 = vadd.f32 %v2145, %v2658
          %v2691 = vadd.f32 %v2146, %v2659
          %v2692 = vcombine.low %v2660, %v2662
          %v2694 = vunpack.c.l.s4 1983009808
          %v2695 = vunpack.c.0.s8 %v2694
          %v2696 = vlaneseq
          %v2697 = vshrl.u32 %v2696, 7
          %v2698 = vsub.s32 %v2695, %v2697
          %v2699 = vrot.slane %v2692, %v2698
          %v2700 = vcombine.low %v2661, %v2663
          %v2702 = vunpack.c.l.s4 1983009808
          %v2703 = vunpack.c.0.s8 %v2702
          %v2704 = vlaneseq
          %v2705 = vshrl.u32 %v2704, 7
          %v2706 = vsub.s32 %v2703, %v2705
          %v2707 = vrot.slane %v2700, %v2706
          %v2708 = vcombine.low %v2664, %v2666
          %v2710 = vunpack.c.l.s4 1983009808
          %v2711 = vunpack.c.0.s8 %v2710
          %v2712 = vlaneseq
          %v2713 = vshrl.u32 %v2712, 7
          %v2714 = vsub.s32 %v2711, %v2713
          %v2715 = vrot.slane %v2708, %v2714
          %v2716 = vcombine.low %v2665, %v2667
          %v2718 = vunpack.c.l.s4 1983009808
          %v2719 = vunpack.c.0.s8 %v2718
          %v2720 = vlaneseq
          %v2721 = vshrl.u32 %v2720, 7
          %v2722 = vsub.s32 %v2719, %v2721
          %v2723 = vrot.slane %v2716, %v2722
          %v2724 = vcombine.low %v2699, %v2707
          %v2725 = vcombine.high %v2699, %v2707
          %v2727 = vunpack.c.l.s4 1934713408
          %v2728 = vunpack.c.0.s8 %v2727
          %v2729 = vlaneseq
          %v2730 = vshrl.u32 %v2729, 7
          %v2731 = vsub.s32 %v2728, %v2730
          %v2732 = vrot.slane %v2724, %v2731
          %v2734 = vunpack.c.l.s4 1934713408
          %v2735 = vunpack.c.0.s8 %v2734
          %v2736 = vlaneseq
          %v2737 = vshrl.u32 %v2736, 7
          %v2738 = vsub.s32 %v2735, %v2737
          %v2739 = vrot.slane %v2725, %v2738
          %v2740 = vcombine.low %v2715, %v2723
          %v2741 = vcombine.high %v2715, %v2723
          %v2743 = vunpack.c.l.s4 1934713408
          %v2744 = vunpack.c.0.s8 %v2743
          %v2745 = vlaneseq
          %v2746 = vshrl.u32 %v2745, 7
          %v2747 = vsub.s32 %v2744, %v2746
          %v2748 = vrot.slane %v2740, %v2747
          %v2750 = vunpack.c.l.s4 1934713408
          %v2751 = vunpack.c.0.s8 %v2750
          %v2752 = vlaneseq
          %v2753 = vshrl.u32 %v2752, 7
          %v2754 = vsub.s32 %v2751, %v2753
          %v2755 = vrot.slane %v2741, %v2754
          %v2756 = vcombine.low %v2732, %v2748
          %v2757 = vcombine.high %v2732, %v2748
          %v2758 = vcombine.low %v2739, %v2755
          %v2759 = vcombine.high %v2739, %v2755
          %v2760 = vcombine.low %v2668, %v2670
          %v2762 = vunpack.c.l.s4 1983009808
          %v2763 = vunpack.c.0.s8 %v2762
          %v2764 = vlaneseq
          %v2765 = vshrl.u32 %v2764, 7
          %v2766 = vsub.s32 %v2763, %v2765
          %v2767 = vrot.slane %v2760, %v2766
          %v2768 = vcombine.low %v2669, %v2671
          %v2770 = vunpack.c.l.s4 1983009808
          %v2771 = vunpack.c.0.s8 %v2770
          %v2772 = vlaneseq
          %v2773 = vshrl.u32 %v2772, 7
          %v2774 = vsub.s32 %v2771, %v2773
          %v2775 = vrot.slane %v2768, %v2774
          %v2776 = vcombine.low %v2672, %v2674
          %v2778 = vunpack.c.l.s4 1983009808
          %v2779 = vunpack.c.0.s8 %v2778
          %v2780 = vlaneseq
          %v2781 = vshrl.u32 %v2780, 7
          %v2782 = vsub.s32 %v2779, %v2781
          %v2783 = vrot.slane %v2776, %v2782
          %v2784 = vcombine.low %v2673, %v2675
          %v2786 = vunpack.c.l.s4 1983009808
          %v2787 = vunpack.c.0.s8 %v2786
          %v2788 = vlaneseq
          %v2789 = vshrl.u32 %v2788, 7
          %v2790 = vsub.s32 %v2787, %v2789
          %v2791 = vrot.slane %v2784, %v2790
          %v2792 = vcombine.low %v2767, %v2775
          %v2793 = vcombine.high %v2767, %v2775
          %v2795 = vunpack.c.l.s4 1934713408
          %v2796 = vunpack.c.0.s8 %v2795
          %v2797 = vlaneseq
          %v2798 = vshrl.u32 %v2797, 7
          %v2799 = vsub.s32 %v2796, %v2798
          %v2800 = vrot.slane %v2792, %v2799
          %v2802 = vunpack.c.l.s4 1934713408
          %v2803 = vunpack.c.0.s8 %v2802
          %v2804 = vlaneseq
          %v2805 = vshrl.u32 %v2804, 7
          %v2806 = vsub.s32 %v2803, %v2805
          %v2807 = vrot.slane %v2793, %v2806
          %v2808 = vcombine.low %v2783, %v2791
          %v2809 = vcombine.high %v2783, %v2791
          %v2811 = vunpack.c.l.s4 1934713408
          %v2812 = vunpack.c.0.s8 %v2811
          %v2813 = vlaneseq
          %v2814 = vshrl.u32 %v2813, 7
          %v2815 = vsub.s32 %v2812, %v2814
          %v2816 = vrot.slane %v2808, %v2815
          %v2818 = vunpack.c.l.s4 1934713408
          %v2819 = vunpack.c.0.s8 %v2818
          %v2820 = vlaneseq
          %v2821 = vshrl.u32 %v2820, 7
          %v2822 = vsub.s32 %v2819, %v2821
          %v2823 = vrot.slane %v2809, %v2822
          %v2824 = vcombine.low %v2800, %v2816
          %v2825 = vcombine.high %v2800, %v2816
          %v2826 = vcombine.low %v2807, %v2823
          %v2827 = vcombine.high %v2807, %v2823
          %v2828 = vcombine.low %v2676, %v2678
          %v2830 = vunpack.c.l.s4 1983009808
          %v2831 = vunpack.c.0.s8 %v2830
          %v2832 = vlaneseq
          %v2833 = vshrl.u32 %v2832, 7
          %v2834 = vsub.s32 %v2831, %v2833
          %v2835 = vrot.slane %v2828, %v2834
          %v2836 = vcombine.low %v2677, %v2679
          %v2838 = vunpack.c.l.s4 1983009808
          %v2839 = vunpack.c.0.s8 %v2838
          %v2840 = vlaneseq
          %v2841 = vshrl.u32 %v2840, 7
          %v2842 = vsub.s32 %v2839, %v2841
          %v2843 = vrot.slane %v2836, %v2842
          %v2844 = vcombine.low %v2680, %v2682
          %v2846 = vunpack.c.l.s4 1983009808
          %v2847 = vunpack.c.0.s8 %v2846
          %v2848 = vlaneseq
          %v2849 = vshrl.u32 %v2848, 7
          %v2850 = vsub.s32 %v2847, %v2849
          %v2851 = vrot.slane %v2844, %v2850
          %v2852 = vcombine.low %v2681, %v2683
          %v2854 = vunpack.c.l.s4 1983009808
          %v2855 = vunpack.c.0.s8 %v2854
          %v2856 = vlaneseq
          %v2857 = vshrl.u32 %v2856, 7
          %v2858 = vsub.s32 %v2855, %v2857
          %v2859 = vrot.slane %v2852, %v2858
          %v2860 = vcombine.low %v2835, %v2843
          %v2861 = vcombine.high %v2835, %v2843
          %v2863 = vunpack.c.l.s4 1934713408
          %v2864 = vunpack.c.0.s8 %v2863
          %v2865 = vlaneseq
          %v2866 = vshrl.u32 %v2865, 7
          %v2867 = vsub.s32 %v2864, %v2866
          %v2868 = vrot.slane %v2860, %v2867
          %v2870 = vunpack.c.l.s4 1934713408
          %v2871 = vunpack.c.0.s8 %v2870
          %v2872 = vlaneseq
          %v2873 = vshrl.u32 %v2872, 7
          %v2874 = vsub.s32 %v2871, %v2873
          %v2875 = vrot.slane %v2861, %v2874
          %v2876 = vcombine.low %v2851, %v2859
          %v2877 = vcombine.high %v2851, %v2859
          %v2879 = vunpack.c.l.s4 1934713408
          %v2880 = vunpack.c.0.s8 %v2879
          %v2881 = vlaneseq
          %v2882 = vshrl.u32 %v2881, 7
          %v2883 = vsub.s32 %v2880, %v2882
          %v2884 = vrot.slane %v2876, %v2883
          %v2886 = vunpack.c.l.s4 1934713408
          %v2887 = vunpack.c.0.s8 %v2886
          %v2888 = vlaneseq
          %v2889 = vshrl.u32 %v2888, 7
          %v2890 = vsub.s32 %v2887, %v2889
          %v2891 = vrot.slane %v2877, %v2890
          %v2892 = vcombine.low %v2868, %v2884
          %v2893 = vcombine.high %v2868, %v2884
          %v2894 = vcombine.low %v2875, %v2891
          %v2895 = vcombine.high %v2875, %v2891
          %v2896 = vcombine.low %v2684, %v2686
          %v2898 = vunpack.c.l.s4 1983009808
          %v2899 = vunpack.c.0.s8 %v2898
          %v2900 = vlaneseq
          %v2901 = vshrl.u32 %v2900, 7
          %v2902 = vsub.s32 %v2899, %v2901
          %v2903 = vrot.slane %v2896, %v2902
          %v2904 = vcombine.low %v2685, %v2687
          %v2906 = vunpack.c.l.s4 1983009808
          %v2907 = vunpack.c.0.s8 %v2906
          %v2908 = vlaneseq
          %v2909 = vshrl.u32 %v2908, 7
          %v2910 = vsub.s32 %v2907, %v2909
          %v2911 = vrot.slane %v2904, %v2910
          %v2912 = vcombine.low %v2688, %v2690
          %v2914 = vunpack.c.l.s4 1983009808
          %v2915 = vunpack.c.0.s8 %v2914
          %v2916 = vlaneseq
          %v2917 = vshrl.u32 %v2916, 7
          %v2918 = vsub.s32 %v2915, %v2917
          %v2919 = vrot.slane %v2912, %v2918
          %v2920 = vcombine.low %v2689, %v2691
          %v2922 = vunpack.c.l.s4 1983009808
          %v2923 = vunpack.c.0.s8 %v2922
          %v2924 = vlaneseq
          %v2925 = vshrl.u32 %v2924, 7
          %v2926 = vsub.s32 %v2923, %v2925
          %v2927 = vrot.slane %v2920, %v2926
          %v2928 = vcombine.low %v2903, %v2911
          %v2929 = vcombine.high %v2903, %v2911
          %v2931 = vunpack.c.l.s4 1934713408
          %v2932 = vunpack.c.0.s8 %v2931
          %v2933 = vlaneseq
          %v2934 = vshrl.u32 %v2933, 7
          %v2935 = vsub.s32 %v2932, %v2934
          %v2936 = vrot.slane %v2928, %v2935
          %v2938 = vunpack.c.l.s4 1934713408
          %v2939 = vunpack.c.0.s8 %v2938
          %v2940 = vlaneseq
          %v2941 = vshrl.u32 %v2940, 7
          %v2942 = vsub.s32 %v2939, %v2941
          %v2943 = vrot.slane %v2929, %v2942
          %v2944 = vcombine.low %v2919, %v2927
          %v2945 = vcombine.high %v2919, %v2927
          %v2947 = vunpack.c.l.s4 1934713408
          %v2948 = vunpack.c.0.s8 %v2947
          %v2949 = vlaneseq
          %v2950 = vshrl.u32 %v2949, 7
          %v2951 = vsub.s32 %v2948, %v2950
          %v2952 = vrot.slane %v2944, %v2951
          %v2954 = vunpack.c.l.s4 1934713408
          %v2955 = vunpack.c.0.s8 %v2954
          %v2956 = vlaneseq
          %v2957 = vshrl.u32 %v2956, 7
          %v2958 = vsub.s32 %v2955, %v2957
          %v2959 = vrot.slane %v2945, %v2958
          %v2960 = vcombine.low %v2936, %v2952
          %v2961 = vcombine.high %v2936, %v2952
          %v2962 = vcombine.low %v2943, %v2959
          %v2963 = vcombine.high %v2943, %v2959
          %2968 = vrot.lane.b32.xlu0 %v2757, 16
          %v2969 = vpop.permute.xlu0 %2968
          %2970 = vrot.lane.b32.xlu0 %v2825, 16
          %v2971 = vpop.permute.xlu0 %2970
          %2972 = vrot.lane.b32.xlu0 %v2893, 16
          %v2973 = vpop.permute.xlu0 %2972
          %2974 = vrot.lane.b32.xlu0 %v2961, 16
          %v2975 = vpop.permute.xlu0 %2974
          %2984 = vrot.lane.b32.xlu0 %v2758, 32
          %v2985 = vpop.permute.xlu0 %2984
          %2986 = vrot.lane.b32.xlu0 %v2826, 32
          %v2987 = vpop.permute.xlu0 %2986
          %2988 = vrot.lane.b32.xlu0 %v2894, 32
          %v2989 = vpop.permute.xlu0 %2988
          %2990 = vrot.lane.b32.xlu0 %v2962, 32
          %v2991 = vpop.permute.xlu0 %2990
          %3000 = vrot.lane.b32.xlu0 %v2759, 48
          %v3001 = vpop.permute.xlu0 %3000
          %3002 = vrot.lane.b32.xlu0 %v2827, 48
          %v3003 = vpop.permute.xlu0 %3002
          %3004 = vrot.lane.b32.xlu0 %v2895, 48
          %v3005 = vpop.permute.xlu0 %3004
          %3006 = vrot.lane.b32.xlu0 %v2963, 48
          %v3007 = vpop.permute.xlu0 %3006
          %vm3012 = vcmask 130048
          %v3013 = vsel %vm3012, %v2756, %v2969
          %v3014 = vsel %vm3012, %v2824, %v2971
          %v3015 = vsel %vm3012, %v2892, %v2973
          %v3016 = vsel %vm3012, %v2960, %v2975
          %vm3017 = vcmask 261120
          %v3018 = vsel %vm3017, %v3013, %v2985
          %v3019 = vsel %vm3017, %v3014, %v2987
          %v3020 = vsel %vm3017, %v3015, %v2989
          %v3021 = vsel %vm3017, %v3016, %v2991
          %vm3022 = vcmask 392192
          %v3023 = vsel %vm3022, %v3018, %v3001
          %v3024 = vsel %vm3022, %v3019, %v3003
          %v3025 = vsel %vm3022, %v3020, %v3005
          %v3026 = vsel %vm3022, %v3021, %v3007
          %v3027 = vmul.f32 %v3023, 0.25
          %v3028 = vmul.f32 %v3024, 0.25
          %v3029 = vmul.f32 %v3025, 0.25
          %v3030 = vmul.f32 %v3026, 0.25
          %v3031 = vpack.c.bf16 %v3028, %v3027
          %v3032 = vpack.c.bf16 %v3030, %v3029
          %v3035 = vunpack.c.l.b16 %v3031
          %v3036 = vunpack.c.h.b16 %v3031
          %v3037 = vunpack.c.l.b16 %v3032
          %v3038 = vunpack.c.h.b16 %v3032
          %v3039 = vpack.c.b16 %v3035, %v3035
          %v3040 = vpack.c.b16 %v3036, %v3036
          %v3041 = vpack.c.b16 %v3037, %v3037
          %v3042 = vpack.c.b16 %v3038, %v3038
          %vm3047 = vcmask 519168
          %3048 = vst.msk [vmem:[%s703] sm:$0xf] %vm3047, %v3039
          %3049 = vst.msk [vmem:[%s703 + $0x4] sm:$0xf] %vm3047, %v3040
          %3050 = vst.msk [vmem:[%s703 + $0x8] sm:$0xf] %vm3047, %v3041
          %3051 = vst.msk [vmem:[%s703 + $0xc] sm:$0xf] %vm3047, %v3042
          %v3052 = vld [vmem:[#allocation4] sm:$0xff]
          %v3053 = vld [vmem:[#allocation4 + $0x8] sm:$0xff]
          %v3054 = vld [vmem:[#allocation4 + $0x10] sm:$0xff]
          %v3055 = vld [vmem:[#allocation4 + $0x18] sm:$0xff]
          %v3056 = vld [vmem:[%s7] sm:$0x1]
          %v3058 = vlaneseq
          %v3059 = vshrl.u32 %v3058, 7
          %v3060 = vsub.s32 0, %v3059
          %v3061 = vrot.slane %v3056, %v3060
          %v3063 = vadd.f32 %v3052, %v3061
          %v3064 = vadd.f32 %v3053, %v3061
          %v3065 = vadd.f32 %v3054, %v3061
          %v3066 = vadd.f32 %v3055, %v3061
          %v3067 = vmul.f32 %v3063, %v3063
          %v3068 = vmul.f32 %v3064, %v3064
          %v3069 = vmul.f32 %v3065, %v3065
          %v3070 = vmul.f32 %v3066, %v3066
          %v3071 = vsel %vm923, %v3067, 0.0
          %3072 = vadd.xlane.f32.xlu0 %v3071
          %v3073 = vpop.xlane.xlu0 %3072
          %v3074 = vsel %vm923, %v3068, 0.0
          %3075 = vadd.xlane.f32.xlu0 %v3074
          %v3076 = vpop.xlane.xlu0 %3075
          %v3077 = vsel %vm923, %v3069, 0.0
          %3078 = vadd.xlane.f32.xlu0 %v3077
          %v3079 = vpop.xlane.xlu0 %3078
          %v3080 = vsel %vm923, %v3070, 0.0
          %3081 = vadd.xlane.f32.xlu0 %v3080
          %v3082 = vpop.xlane.xlu0 %3081
          %v3083 = vmul.f32 %v3073, %v1207
          %v3084 = vmul.f32 %v3076, %v1207
          %v3085 = vmul.f32 %v3079, %v1207
          %v3086 = vmul.f32 %v3082, %v1207
          %v3087 = vadd.f32 %v3083, 1e-06
          %v3088 = vadd.f32 %v3084, 1e-06
          %v3089 = vadd.f32 %v3085, 1e-06
          %v3090 = vadd.f32 %v3086, 1e-06
          %v3091 = vrsqrt.pop %v3087
          %v3092 = vrsqrt.pop %v3088
          %v3093 = vrsqrt.pop %v3089
          %v3094 = vrsqrt.pop %v3090
          %v3095 = vmul.f32 %v3063, %v3091
          %v3096 = vmul.f32 %v3064, %v3092
          %v3097 = vmul.f32 %v3065, %v3093
          %v3098 = vmul.f32 %v3066, %v3094
          %v3099 = vld [vmem:[#allocation15] sm:$0x1]
          %v3101 = vlaneseq
          %v3102 = vshrl.u32 %v3101, 7
          %v3103 = vsub.s32 0, %v3102
          %v3104 = vrot.slane %v3099, %v3103
          %v3106 = vmul.f32 %v3095, %v3104
          %v3107 = vmul.f32 %v3096, %v3104
          %v3108 = vmul.f32 %v3097, %v3104
          %v3109 = vmul.f32 %v3098, %v3104
          %3114 = vrot.lane.b32.xlu0 %v3106, 112
          %v3115 = vpop.permute.xlu0 %3114
          %3116 = vrot.lane.b32.xlu0 %v3107, 112
          %v3117 = vpop.permute.xlu0 %3116
          %3118 = vrot.lane.b32.xlu0 %v3108, 112
          %v3119 = vpop.permute.xlu0 %3118
          %3120 = vrot.lane.b32.xlu0 %v3109, 112
          %v3121 = vpop.permute.xlu0 %3120
          %3126 = vrot.lane.b32.xlu0 %v3106, 96
          %v3127 = vpop.permute.xlu0 %3126
          %3128 = vrot.lane.b32.xlu0 %v3107, 96
          %v3129 = vpop.permute.xlu0 %3128
          %3130 = vrot.lane.b32.xlu0 %v3108, 96
          %v3131 = vpop.permute.xlu0 %3130
          %3132 = vrot.lane.b32.xlu0 %v3109, 96
          %v3133 = vpop.permute.xlu0 %3132
          %3138 = vrot.lane.b32.xlu0 %v3106, 80
          %v3139 = vpop.permute.xlu0 %3138
          %3140 = vrot.lane.b32.xlu0 %v3107, 80
          %v3141 = vpop.permute.xlu0 %3140
          %3142 = vrot.lane.b32.xlu0 %v3108, 80
          %v3143 = vpop.permute.xlu0 %3142
          %3144 = vrot.lane.b32.xlu0 %v3109, 80
          %v3145 = vpop.permute.xlu0 %3144
          %v3150 = vcombine.low %v3106, %v3127
          %v3151 = vcombine.high %v3106, %v3127
          %v3153 = vunpack.c.l.s4 1983009808
          %v3154 = vunpack.c.0.s8 %v3153
          %v3155 = vlaneseq
          %v3156 = vshrl.u32 %v3155, 7
          %v3157 = vsub.s32 %v3154, %v3156
          %v3158 = vrot.slane %v3150, %v3157
          %v3160 = vunpack.c.l.s4 1983009808
          %v3161 = vunpack.c.0.s8 %v3160
          %v3162 = vlaneseq
          %v3163 = vshrl.u32 %v3162, 7
          %v3164 = vsub.s32 %v3161, %v3163
          %v3165 = vrot.slane %v3151, %v3164
          %v3166 = vcombine.low %v3115, %v3139
          %v3167 = vcombine.high %v3115, %v3139
          %v3169 = vunpack.c.l.s4 1983009808
          %v3170 = vunpack.c.0.s8 %v3169
          %v3171 = vlaneseq
          %v3172 = vshrl.u32 %v3171, 7
          %v3173 = vsub.s32 %v3170, %v3172
          %v3174 = vrot.slane %v3166, %v3173
          %v3176 = vunpack.c.l.s4 1983009808
          %v3177 = vunpack.c.0.s8 %v3176
          %v3178 = vlaneseq
          %v3179 = vshrl.u32 %v3178, 7
          %v3180 = vsub.s32 %v3177, %v3179
          %v3181 = vrot.slane %v3167, %v3180
          %v3182 = vcombine.low %v3158, %v3174
          %v3183 = vcombine.high %v3158, %v3174
          %v3185 = vunpack.c.l.s4 1934713408
          %v3186 = vunpack.c.0.s8 %v3185
          %v3187 = vlaneseq
          %v3188 = vshrl.u32 %v3187, 7
          %v3189 = vsub.s32 %v3186, %v3188
          %v3190 = vrot.slane %v3182, %v3189
          %v3192 = vunpack.c.l.s4 1934713408
          %v3193 = vunpack.c.0.s8 %v3192
          %v3194 = vlaneseq
          %v3195 = vshrl.u32 %v3194, 7
          %v3196 = vsub.s32 %v3193, %v3195
          %v3197 = vrot.slane %v3183, %v3196
          %v3198 = vcombine.low %v3165, %v3181
          %v3199 = vcombine.high %v3165, %v3181
          %v3201 = vunpack.c.l.s4 1934713408
          %v3202 = vunpack.c.0.s8 %v3201
          %v3203 = vlaneseq
          %v3204 = vshrl.u32 %v3203, 7
          %v3205 = vsub.s32 %v3202, %v3204
          %v3206 = vrot.slane %v3198, %v3205
          %v3208 = vunpack.c.l.s4 1934713408
          %v3209 = vunpack.c.0.s8 %v3208
          %v3210 = vlaneseq
          %v3211 = vshrl.u32 %v3210, 7
          %v3212 = vsub.s32 %v3209, %v3211
          %v3213 = vrot.slane %v3199, %v3212
          %v3214 = vcombine.high %v3190, 0.0
          %v3215 = vcombine.high %v3197, 0.0
          %v3216 = vcombine.high %v3206, 0.0
          %v3217 = vcombine.high %v3213, 0.0
          %v3218 = vcombine.low %v3107, %v3129
          %v3219 = vcombine.high %v3107, %v3129
          %v3221 = vunpack.c.l.s4 1983009808
          %v3222 = vunpack.c.0.s8 %v3221
          %v3223 = vlaneseq
          %v3224 = vshrl.u32 %v3223, 7
          %v3225 = vsub.s32 %v3222, %v3224
          %v3226 = vrot.slane %v3218, %v3225
          %v3228 = vunpack.c.l.s4 1983009808
          %v3229 = vunpack.c.0.s8 %v3228
          %v3230 = vlaneseq
          %v3231 = vshrl.u32 %v3230, 7
          %v3232 = vsub.s32 %v3229, %v3231
          %v3233 = vrot.slane %v3219, %v3232
          %v3234 = vcombine.low %v3117, %v3141
          %v3235 = vcombine.high %v3117, %v3141
          %v3237 = vunpack.c.l.s4 1983009808
          %v3238 = vunpack.c.0.s8 %v3237
          %v3239 = vlaneseq
          %v3240 = vshrl.u32 %v3239, 7
          %v3241 = vsub.s32 %v3238, %v3240
          %v3242 = vrot.slane %v3234, %v3241
          %v3244 = vunpack.c.l.s4 1983009808
          %v3245 = vunpack.c.0.s8 %v3244
          %v3246 = vlaneseq
          %v3247 = vshrl.u32 %v3246, 7
          %v3248 = vsub.s32 %v3245, %v3247
          %v3249 = vrot.slane %v3235, %v3248
          %v3250 = vcombine.low %v3226, %v3242
          %v3251 = vcombine.high %v3226, %v3242
          %v3253 = vunpack.c.l.s4 1934713408
          %v3254 = vunpack.c.0.s8 %v3253
          %v3255 = vlaneseq
          %v3256 = vshrl.u32 %v3255, 7
          %v3257 = vsub.s32 %v3254, %v3256
          %v3258 = vrot.slane %v3250, %v3257
          %v3260 = vunpack.c.l.s4 1934713408
          %v3261 = vunpack.c.0.s8 %v3260
          %v3262 = vlaneseq
          %v3263 = vshrl.u32 %v3262, 7
          %v3264 = vsub.s32 %v3261, %v3263
          %v3265 = vrot.slane %v3251, %v3264
          %v3266 = vcombine.low %v3233, %v3249
          %v3267 = vcombine.high %v3233, %v3249
          %v3269 = vunpack.c.l.s4 1934713408
          %v3270 = vunpack.c.0.s8 %v3269
          %v3271 = vlaneseq
          %v3272 = vshrl.u32 %v3271, 7
          %v3273 = vsub.s32 %v3270, %v3272
          %v3274 = vrot.slane %v3266, %v3273
          %v3276 = vunpack.c.l.s4 1934713408
          %v3277 = vunpack.c.0.s8 %v3276
          %v3278 = vlaneseq
          %v3279 = vshrl.u32 %v3278, 7
          %v3280 = vsub.s32 %v3277, %v3279
          %v3281 = vrot.slane %v3267, %v3280
          %v3282 = vcombine.high %v3258, 0.0
          %v3283 = vcombine.high %v3265, 0.0
          %v3284 = vcombine.high %v3274, 0.0
          %v3285 = vcombine.high %v3281, 0.0
          %v3286 = vcombine.low %v3108, %v3131
          %v3287 = vcombine.high %v3108, %v3131
          %v3289 = vunpack.c.l.s4 1983009808
          %v3290 = vunpack.c.0.s8 %v3289
          %v3291 = vlaneseq
          %v3292 = vshrl.u32 %v3291, 7
          %v3293 = vsub.s32 %v3290, %v3292
          %v3294 = vrot.slane %v3286, %v3293
          %v3296 = vunpack.c.l.s4 1983009808
          %v3297 = vunpack.c.0.s8 %v3296
          %v3298 = vlaneseq
          %v3299 = vshrl.u32 %v3298, 7
          %v3300 = vsub.s32 %v3297, %v3299
          %v3301 = vrot.slane %v3287, %v3300
          %v3302 = vcombine.low %v3119, %v3143
          %v3303 = vcombine.high %v3119, %v3143
          %v3305 = vunpack.c.l.s4 1983009808
          %v3306 = vunpack.c.0.s8 %v3305
          %v3307 = vlaneseq
          %v3308 = vshrl.u32 %v3307, 7
          %v3309 = vsub.s32 %v3306, %v3308
          %v3310 = vrot.slane %v3302, %v3309
          %v3312 = vunpack.c.l.s4 1983009808
          %v3313 = vunpack.c.0.s8 %v3312
          %v3314 = vlaneseq
          %v3315 = vshrl.u32 %v3314, 7
          %v3316 = vsub.s32 %v3313, %v3315
          %v3317 = vrot.slane %v3303, %v3316
          %v3318 = vcombine.low %v3294, %v3310
          %v3319 = vcombine.high %v3294, %v3310
          %v3321 = vunpack.c.l.s4 1934713408
          %v3322 = vunpack.c.0.s8 %v3321
          %v3323 = vlaneseq
          %v3324 = vshrl.u32 %v3323, 7
          %v3325 = vsub.s32 %v3322, %v3324
          %v3326 = vrot.slane %v3318, %v3325
          %v3328 = vunpack.c.l.s4 1934713408
          %v3329 = vunpack.c.0.s8 %v3328
          %v3330 = vlaneseq
          %v3331 = vshrl.u32 %v3330, 7
          %v3332 = vsub.s32 %v3329, %v3331
          %v3333 = vrot.slane %v3319, %v3332
          %v3334 = vcombine.low %v3301, %v3317
          %v3335 = vcombine.high %v3301, %v3317
          %v3337 = vunpack.c.l.s4 1934713408
          %v3338 = vunpack.c.0.s8 %v3337
          %v3339 = vlaneseq
          %v3340 = vshrl.u32 %v3339, 7
          %v3341 = vsub.s32 %v3338, %v3340
          %v3342 = vrot.slane %v3334, %v3341
          %v3344 = vunpack.c.l.s4 1934713408
          %v3345 = vunpack.c.0.s8 %v3344
          %v3346 = vlaneseq
          %v3347 = vshrl.u32 %v3346, 7
          %v3348 = vsub.s32 %v3345, %v3347
          %v3349 = vrot.slane %v3335, %v3348
          %v3350 = vcombine.high %v3326, 0.0
          %v3351 = vcombine.high %v3333, 0.0
          %v3352 = vcombine.high %v3342, 0.0
          %v3353 = vcombine.high %v3349, 0.0
          %v3354 = vcombine.low %v3109, %v3133
          %v3355 = vcombine.high %v3109, %v3133
          %v3357 = vunpack.c.l.s4 1983009808
          %v3358 = vunpack.c.0.s8 %v3357
          %v3359 = vlaneseq
          %v3360 = vshrl.u32 %v3359, 7
          %v3361 = vsub.s32 %v3358, %v3360
          %v3362 = vrot.slane %v3354, %v3361
          %v3364 = vunpack.c.l.s4 1983009808
          %v3365 = vunpack.c.0.s8 %v3364
          %v3366 = vlaneseq
          %v3367 = vshrl.u32 %v3366, 7
          %v3368 = vsub.s32 %v3365, %v3367
          %v3369 = vrot.slane %v3355, %v3368
          %v3370 = vcombine.low %v3121, %v3145
          %v3371 = vcombine.high %v3121, %v3145
          %v3373 = vunpack.c.l.s4 1983009808
          %v3374 = vunpack.c.0.s8 %v3373
          %v3375 = vlaneseq
          %v3376 = vshrl.u32 %v3375, 7
          %v3377 = vsub.s32 %v3374, %v3376
          %v3378 = vrot.slane %v3370, %v3377
          %v3380 = vunpack.c.l.s4 1983009808
          %v3381 = vunpack.c.0.s8 %v3380
          %v3382 = vlaneseq
          %v3383 = vshrl.u32 %v3382, 7
          %v3384 = vsub.s32 %v3381, %v3383
          %v3385 = vrot.slane %v3371, %v3384
          %v3386 = vcombine.low %v3362, %v3378
          %v3387 = vcombine.high %v3362, %v3378
          %v3389 = vunpack.c.l.s4 1934713408
          %v3390 = vunpack.c.0.s8 %v3389
          %v3391 = vlaneseq
          %v3392 = vshrl.u32 %v3391, 7
          %v3393 = vsub.s32 %v3390, %v3392
          %v3394 = vrot.slane %v3386, %v3393
          %v3396 = vunpack.c.l.s4 1934713408
          %v3397 = vunpack.c.0.s8 %v3396
          %v3398 = vlaneseq
          %v3399 = vshrl.u32 %v3398, 7
          %v3400 = vsub.s32 %v3397, %v3399
          %v3401 = vrot.slane %v3387, %v3400
          %v3402 = vcombine.low %v3369, %v3385
          %v3403 = vcombine.high %v3369, %v3385
          %v3405 = vunpack.c.l.s4 1934713408
          %v3406 = vunpack.c.0.s8 %v3405
          %v3407 = vlaneseq
          %v3408 = vshrl.u32 %v3407, 7
          %v3409 = vsub.s32 %v3406, %v3408
          %v3410 = vrot.slane %v3402, %v3409
          %v3412 = vunpack.c.l.s4 1934713408
          %v3413 = vunpack.c.0.s8 %v3412
          %v3414 = vlaneseq
          %v3415 = vshrl.u32 %v3414, 7
          %v3416 = vsub.s32 %v3413, %v3415
          %v3417 = vrot.slane %v3403, %v3416
          %v3418 = vcombine.high %v3394, 0.0
          %v3419 = vcombine.high %v3401, 0.0
          %v3420 = vcombine.high %v3410, 0.0
          %v3421 = vcombine.high %v3417, 0.0
          %v3422 = vld [vmem:[%s743] sm:$0xff]
          %v3423 = vld [vmem:[%s743 + $0x8] sm:$0xff]
          %v3424 = vld [vmem:[%s743 + $0x10] sm:$0xff]
          %v3425 = vld [vmem:[%s743 + $0x18] sm:$0xff]
          %v3430 = vcombine.high %v3422, %v3422
          %v3432 = vunpack.c.l.s4 1966171168
          %v3433 = vunpack.c.0.s8 %v3432
          %v3434 = vlaneseq
          %v3435 = vshrl.u32 %v3434, 7
          %v3436 = vsub.s32 %v3433, %v3435
          %v3437 = vrot.slane %v3422, %v3436
          %v3439 = vunpack.c.l.s4 1966171168
          %v3440 = vunpack.c.0.s8 %v3439
          %v3441 = vlaneseq
          %v3442 = vshrl.u32 %v3441, 7
          %v3443 = vsub.s32 %v3440, %v3442
          %v3444 = vrot.slane %v3430, %v3443
          %v3445 = vcombine.high %v3437, %v3437
          %v3446 = vcombine.high %v3444, %v3444
          %v3448 = vunpack.c.l.s4 1966171168
          %v3449 = vunpack.c.0.s8 %v3448
          %v3450 = vlaneseq
          %v3451 = vshrl.u32 %v3450, 7
          %v3452 = vsub.s32 %v3449, %v3451
          %v3453 = vrot.slane %v3437, %v3452
          %v3455 = vunpack.c.l.s4 1966171168
          %v3456 = vunpack.c.0.s8 %v3455
          %v3457 = vlaneseq
          %v3458 = vshrl.u32 %v3457, 7
          %v3459 = vsub.s32 %v3456, %v3458
          %v3460 = vrot.slane %v3444, %v3459
          %v3462 = vunpack.c.l.s4 1966171168
          %v3463 = vunpack.c.0.s8 %v3462
          %v3464 = vlaneseq
          %v3465 = vshrl.u32 %v3464, 7
          %v3466 = vsub.s32 %v3463, %v3465
          %v3467 = vrot.slane %v3445, %v3466
          %v3469 = vunpack.c.l.s4 1966171168
          %v3470 = vunpack.c.0.s8 %v3469
          %v3471 = vlaneseq
          %v3472 = vshrl.u32 %v3471, 7
          %v3473 = vsub.s32 %v3470, %v3472
          %v3474 = vrot.slane %v3446, %v3473
          %v3475 = vcombine.high %v3453, %v3453
          %v3476 = vcombine.high %v3460, %v3460
          %v3477 = vcombine.high %v3467, %v3467
          %v3478 = vcombine.high %v3474, %v3474
          %v3479 = vcombine.high %v3423, %v3423
          %v3481 = vunpack.c.l.s4 1966171168
          %v3482 = vunpack.c.0.s8 %v3481
          %v3483 = vlaneseq
          %v3484 = vshrl.u32 %v3483, 7
          %v3485 = vsub.s32 %v3482, %v3484
          %v3486 = vrot.slane %v3423, %v3485
          %v3488 = vunpack.c.l.s4 1966171168
          %v3489 = vunpack.c.0.s8 %v3488
          %v3490 = vlaneseq
          %v3491 = vshrl.u32 %v3490, 7
          %v3492 = vsub.s32 %v3489, %v3491
          %v3493 = vrot.slane %v3479, %v3492
          %v3494 = vcombine.high %v3486, %v3486
          %v3495 = vcombine.high %v3493, %v3493
          %v3497 = vunpack.c.l.s4 1966171168
          %v3498 = vunpack.c.0.s8 %v3497
          %v3499 = vlaneseq
          %v3500 = vshrl.u32 %v3499, 7
          %v3501 = vsub.s32 %v3498, %v3500
          %v3502 = vrot.slane %v3486, %v3501
          %v3504 = vunpack.c.l.s4 1966171168
          %v3505 = vunpack.c.0.s8 %v3504
          %v3506 = vlaneseq
          %v3507 = vshrl.u32 %v3506, 7
          %v3508 = vsub.s32 %v3505, %v3507
          %v3509 = vrot.slane %v3493, %v3508
          %v3511 = vunpack.c.l.s4 1966171168
          %v3512 = vunpack.c.0.s8 %v3511
          %v3513 = vlaneseq
          %v3514 = vshrl.u32 %v3513, 7
          %v3515 = vsub.s32 %v3512, %v3514
          %v3516 = vrot.slane %v3494, %v3515
          %v3518 = vunpack.c.l.s4 1966171168
          %v3519 = vunpack.c.0.s8 %v3518
          %v3520 = vlaneseq
          %v3521 = vshrl.u32 %v3520, 7
          %v3522 = vsub.s32 %v3519, %v3521
          %v3523 = vrot.slane %v3495, %v3522
          %v3524 = vcombine.high %v3502, %v3502
          %v3525 = vcombine.high %v3509, %v3509
          %v3526 = vcombine.high %v3516, %v3516
          %v3527 = vcombine.high %v3523, %v3523
          %v3528 = vcombine.high %v3424, %v3424
          %v3530 = vunpack.c.l.s4 1966171168
          %v3531 = vunpack.c.0.s8 %v3530
          %v3532 = vlaneseq
          %v3533 = vshrl.u32 %v3532, 7
          %v3534 = vsub.s32 %v3531, %v3533
          %v3535 = vrot.slane %v3424, %v3534
          %v3537 = vunpack.c.l.s4 1966171168
          %v3538 = vunpack.c.0.s8 %v3537
          %v3539 = vlaneseq
          %v3540 = vshrl.u32 %v3539, 7
          %v3541 = vsub.s32 %v3538, %v3540
          %v3542 = vrot.slane %v3528, %v3541
          %v3543 = vcombine.high %v3535, %v3535
          %v3544 = vcombine.high %v3542, %v3542
          %v3546 = vunpack.c.l.s4 1966171168
          %v3547 = vunpack.c.0.s8 %v3546
          %v3548 = vlaneseq
          %v3549 = vshrl.u32 %v3548, 7
          %v3550 = vsub.s32 %v3547, %v3549
          %v3551 = vrot.slane %v3535, %v3550
          %v3553 = vunpack.c.l.s4 1966171168
          %v3554 = vunpack.c.0.s8 %v3553
          %v3555 = vlaneseq
          %v3556 = vshrl.u32 %v3555, 7
          %v3557 = vsub.s32 %v3554, %v3556
          %v3558 = vrot.slane %v3542, %v3557
          %v3560 = vunpack.c.l.s4 1966171168
          %v3561 = vunpack.c.0.s8 %v3560
          %v3562 = vlaneseq
          %v3563 = vshrl.u32 %v3562, 7
          %v3564 = vsub.s32 %v3561, %v3563
          %v3565 = vrot.slane %v3543, %v3564
          %v3567 = vunpack.c.l.s4 1966171168
          %v3568 = vunpack.c.0.s8 %v3567
          %v3569 = vlaneseq
          %v3570 = vshrl.u32 %v3569, 7
          %v3571 = vsub.s32 %v3568, %v3570
          %v3572 = vrot.slane %v3544, %v3571
          %v3573 = vcombine.high %v3551, %v3551
          %v3574 = vcombine.high %v3558, %v3558
          %v3575 = vcombine.high %v3565, %v3565
          %v3576 = vcombine.high %v3572, %v3572
          %v3577 = vcombine.high %v3425, %v3425
          %v3579 = vunpack.c.l.s4 1966171168
          %v3580 = vunpack.c.0.s8 %v3579
          %v3581 = vlaneseq
          %v3582 = vshrl.u32 %v3581, 7
          %v3583 = vsub.s32 %v3580, %v3582
          %v3584 = vrot.slane %v3425, %v3583
          %v3586 = vunpack.c.l.s4 1966171168
          %v3587 = vunpack.c.0.s8 %v3586
          %v3588 = vlaneseq
          %v3589 = vshrl.u32 %v3588, 7
          %v3590 = vsub.s32 %v3587, %v3589
          %v3591 = vrot.slane %v3577, %v3590
          %v3592 = vcombine.high %v3584, %v3584
          %v3593 = vcombine.high %v3591, %v3591
          %v3595 = vunpack.c.l.s4 1966171168
          %v3596 = vunpack.c.0.s8 %v3595
          %v3597 = vlaneseq
          %v3598 = vshrl.u32 %v3597, 7
          %v3599 = vsub.s32 %v3596, %v3598
          %v3600 = vrot.slane %v3584, %v3599
          %v3602 = vunpack.c.l.s4 1966171168
          %v3603 = vunpack.c.0.s8 %v3602
          %v3604 = vlaneseq
          %v3605 = vshrl.u32 %v3604, 7
          %v3606 = vsub.s32 %v3603, %v3605
          %v3607 = vrot.slane %v3591, %v3606
          %v3609 = vunpack.c.l.s4 1966171168
          %v3610 = vunpack.c.0.s8 %v3609
          %v3611 = vlaneseq
          %v3612 = vshrl.u32 %v3611, 7
          %v3613 = vsub.s32 %v3610, %v3612
          %v3614 = vrot.slane %v3592, %v3613
          %v3616 = vunpack.c.l.s4 1966171168
          %v3617 = vunpack.c.0.s8 %v3616
          %v3618 = vlaneseq
          %v3619 = vshrl.u32 %v3618, 7
          %v3620 = vsub.s32 %v3617, %v3619
          %v3621 = vrot.slane %v3593, %v3620
          %v3622 = vcombine.high %v3600, %v3600
          %v3623 = vcombine.high %v3607, %v3607
          %v3624 = vcombine.high %v3614, %v3614
          %v3625 = vcombine.high %v3621, %v3621
          %v3626 = vld [vmem:[%s749] sm:$0xff]
          %v3627 = vld [vmem:[%s749 + $0x8] sm:$0xff]
          %v3628 = vld [vmem:[%s749 + $0x10] sm:$0xff]
          %v3629 = vld [vmem:[%s749 + $0x18] sm:$0xff]
          %v3634 = vcombine.high %v3626, %v3626
          %v3636 = vunpack.c.l.s4 1966171168
          %v3637 = vunpack.c.0.s8 %v3636
          %v3638 = vlaneseq
          %v3639 = vshrl.u32 %v3638, 7
          %v3640 = vsub.s32 %v3637, %v3639
          %v3641 = vrot.slane %v3626, %v3640
          %v3643 = vunpack.c.l.s4 1966171168
          %v3644 = vunpack.c.0.s8 %v3643
          %v3645 = vlaneseq
          %v3646 = vshrl.u32 %v3645, 7
          %v3647 = vsub.s32 %v3644, %v3646
          %v3648 = vrot.slane %v3634, %v3647
          %v3649 = vcombine.high %v3641, %v3641
          %v3650 = vcombine.high %v3648, %v3648
          %v3652 = vunpack.c.l.s4 1966171168
          %v3653 = vunpack.c.0.s8 %v3652
          %v3654 = vlaneseq
          %v3655 = vshrl.u32 %v3654, 7
          %v3656 = vsub.s32 %v3653, %v3655
          %v3657 = vrot.slane %v3641, %v3656
          %v3659 = vunpack.c.l.s4 1966171168
          %v3660 = vunpack.c.0.s8 %v3659
          %v3661 = vlaneseq
          %v3662 = vshrl.u32 %v3661, 7
          %v3663 = vsub.s32 %v3660, %v3662
          %v3664 = vrot.slane %v3648, %v3663
          %v3666 = vunpack.c.l.s4 1966171168
          %v3667 = vunpack.c.0.s8 %v3666
          %v3668 = vlaneseq
          %v3669 = vshrl.u32 %v3668, 7
          %v3670 = vsub.s32 %v3667, %v3669
          %v3671 = vrot.slane %v3649, %v3670
          %v3673 = vunpack.c.l.s4 1966171168
          %v3674 = vunpack.c.0.s8 %v3673
          %v3675 = vlaneseq
          %v3676 = vshrl.u32 %v3675, 7
          %v3677 = vsub.s32 %v3674, %v3676
          %v3678 = vrot.slane %v3650, %v3677
          %v3679 = vcombine.high %v3657, %v3657
          %v3680 = vcombine.high %v3664, %v3664
          %v3681 = vcombine.high %v3671, %v3671
          %v3682 = vcombine.high %v3678, %v3678
          %v3683 = vcombine.high %v3627, %v3627
          %v3685 = vunpack.c.l.s4 1966171168
          %v3686 = vunpack.c.0.s8 %v3685
          %v3687 = vlaneseq
          %v3688 = vshrl.u32 %v3687, 7
          %v3689 = vsub.s32 %v3686, %v3688
          %v3690 = vrot.slane %v3627, %v3689
          %v3692 = vunpack.c.l.s4 1966171168
          %v3693 = vunpack.c.0.s8 %v3692
          %v3694 = vlaneseq
          %v3695 = vshrl.u32 %v3694, 7
          %v3696 = vsub.s32 %v3693, %v3695
          %v3697 = vrot.slane %v3683, %v3696
          %v3698 = vcombine.high %v3690, %v3690
          %v3699 = vcombine.high %v3697, %v3697
          %v3701 = vunpack.c.l.s4 1966171168
          %v3702 = vunpack.c.0.s8 %v3701
          %v3703 = vlaneseq
          %v3704 = vshrl.u32 %v3703, 7
          %v3705 = vsub.s32 %v3702, %v3704
          %v3706 = vrot.slane %v3690, %v3705
          %v3708 = vunpack.c.l.s4 1966171168
          %v3709 = vunpack.c.0.s8 %v3708
          %v3710 = vlaneseq
          %v3711 = vshrl.u32 %v3710, 7
          %v3712 = vsub.s32 %v3709, %v3711
          %v3713 = vrot.slane %v3697, %v3712
          %v3715 = vunpack.c.l.s4 1966171168
          %v3716 = vunpack.c.0.s8 %v3715
          %v3717 = vlaneseq
          %v3718 = vshrl.u32 %v3717, 7
          %v3719 = vsub.s32 %v3716, %v3718
          %v3720 = vrot.slane %v3698, %v3719
          %v3722 = vunpack.c.l.s4 1966171168
          %v3723 = vunpack.c.0.s8 %v3722
          %v3724 = vlaneseq
          %v3725 = vshrl.u32 %v3724, 7
          %v3726 = vsub.s32 %v3723, %v3725
          %v3727 = vrot.slane %v3699, %v3726
          %v3728 = vcombine.high %v3706, %v3706
          %v3729 = vcombine.high %v3713, %v3713
          %v3730 = vcombine.high %v3720, %v3720
          %v3731 = vcombine.high %v3727, %v3727
          %v3732 = vcombine.high %v3628, %v3628
          %v3734 = vunpack.c.l.s4 1966171168
          %v3735 = vunpack.c.0.s8 %v3734
          %v3736 = vlaneseq
          %v3737 = vshrl.u32 %v3736, 7
          %v3738 = vsub.s32 %v3735, %v3737
          %v3739 = vrot.slane %v3628, %v3738
          %v3741 = vunpack.c.l.s4 1966171168
          %v3742 = vunpack.c.0.s8 %v3741
          %v3743 = vlaneseq
          %v3744 = vshrl.u32 %v3743, 7
          %v3745 = vsub.s32 %v3742, %v3744
          %v3746 = vrot.slane %v3732, %v3745
          %v3747 = vcombine.high %v3739, %v3739
          %v3748 = vcombine.high %v3746, %v3746
          %v3750 = vunpack.c.l.s4 1966171168
          %v3751 = vunpack.c.0.s8 %v3750
          %v3752 = vlaneseq
          %v3753 = vshrl.u32 %v3752, 7
          %v3754 = vsub.s32 %v3751, %v3753
          %v3755 = vrot.slane %v3739, %v3754
          %v3757 = vunpack.c.l.s4 1966171168
          %v3758 = vunpack.c.0.s8 %v3757
          %v3759 = vlaneseq
          %v3760 = vshrl.u32 %v3759, 7
          %v3761 = vsub.s32 %v3758, %v3760
          %v3762 = vrot.slane %v3746, %v3761
          %v3764 = vunpack.c.l.s4 1966171168
          %v3765 = vunpack.c.0.s8 %v3764
          %v3766 = vlaneseq
          %v3767 = vshrl.u32 %v3766, 7
          %v3768 = vsub.s32 %v3765, %v3767
          %v3769 = vrot.slane %v3747, %v3768
          %v3771 = vunpack.c.l.s4 1966171168
          %v3772 = vunpack.c.0.s8 %v3771
          %v3773 = vlaneseq
          %v3774 = vshrl.u32 %v3773, 7
          %v3775 = vsub.s32 %v3772, %v3774
          %v3776 = vrot.slane %v3748, %v3775
          %v3777 = vcombine.high %v3755, %v3755
          %v3778 = vcombine.high %v3762, %v3762
          %v3779 = vcombine.high %v3769, %v3769
          %v3780 = vcombine.high %v3776, %v3776
          %v3781 = vcombine.high %v3629, %v3629
          %v3783 = vunpack.c.l.s4 1966171168
          %v3784 = vunpack.c.0.s8 %v3783
          %v3785 = vlaneseq
          %v3786 = vshrl.u32 %v3785, 7
          %v3787 = vsub.s32 %v3784, %v3786
          %v3788 = vrot.slane %v3629, %v3787
          %v3790 = vunpack.c.l.s4 1966171168
          %v3791 = vunpack.c.0.s8 %v3790
          %v3792 = vlaneseq
          %v3793 = vshrl.u32 %v3792, 7
          %v3794 = vsub.s32 %v3791, %v3793
          %v3795 = vrot.slane %v3781, %v3794
          %v3796 = vcombine.high %v3788, %v3788
          %v3797 = vcombine.high %v3795, %v3795
          %v3799 = vunpack.c.l.s4 1966171168
          %v3800 = vunpack.c.0.s8 %v3799
          %v3801 = vlaneseq
          %v3802 = vshrl.u32 %v3801, 7
          %v3803 = vsub.s32 %v3800, %v3802
          %v3804 = vrot.slane %v3788, %v3803
          %v3806 = vunpack.c.l.s4 1966171168
          %v3807 = vunpack.c.0.s8 %v3806
          %v3808 = vlaneseq
          %v3809 = vshrl.u32 %v3808, 7
          %v3810 = vsub.s32 %v3807, %v3809
          %v3811 = vrot.slane %v3795, %v3810
          %v3813 = vunpack.c.l.s4 1966171168
          %v3814 = vunpack.c.0.s8 %v3813
          %v3815 = vlaneseq
          %v3816 = vshrl.u32 %v3815, 7
          %v3817 = vsub.s32 %v3814, %v3816
          %v3818 = vrot.slane %v3796, %v3817
          %v3820 = vunpack.c.l.s4 1966171168
          %v3821 = vunpack.c.0.s8 %v3820
          %v3822 = vlaneseq
          %v3823 = vshrl.u32 %v3822, 7
          %v3824 = vsub.s32 %v3821, %v3823
          %v3825 = vrot.slane %v3797, %v3824
          %v3826 = vcombine.high %v3804, %v3804
          %v3827 = vcombine.high %v3811, %v3811
          %v3828 = vcombine.high %v3818, %v3818
          %v3829 = vcombine.high %v3825, %v3825
          %v3830 = vlaneseq
          %v3831 = vshrl.u32 %v3830, 7
          %v3832 = vsub.s32 0, %v3831
          %v3833 = vrot.slane %v3453, %v3832
          %v3834 = vlaneseq
          %v3835 = vshrl.u32 %v3834, 7
          %v3836 = vsub.s32 0, %v3835
          %v3837 = vrot.slane %v3467, %v3836
          %v3838 = vlaneseq
          %v3839 = vshrl.u32 %v3838, 7
          %v3840 = vsub.s32 0, %v3839
          %v3841 = vrot.slane %v3475, %v3840
          %v3842 = vlaneseq
          %v3843 = vshrl.u32 %v3842, 7
          %v3844 = vsub.s32 0, %v3843
          %v3845 = vrot.slane %v3477, %v3844
          %v3846 = vlaneseq
          %v3847 = vshrl.u32 %v3846, 7
          %v3848 = vsub.s32 0, %v3847
          %v3849 = vrot.slane %v3460, %v3848
          %v3850 = vlaneseq
          %v3851 = vshrl.u32 %v3850, 7
          %v3852 = vsub.s32 0, %v3851
          %v3853 = vrot.slane %v3474, %v3852
          %v3854 = vlaneseq
          %v3855 = vshrl.u32 %v3854, 7
          %v3856 = vsub.s32 0, %v3855
          %v3857 = vrot.slane %v3476, %v3856
          %v3858 = vlaneseq
          %v3859 = vshrl.u32 %v3858, 7
          %v3860 = vsub.s32 0, %v3859
          %v3861 = vrot.slane %v3478, %v3860
          %v3862 = vlaneseq
          %v3863 = vshrl.u32 %v3862, 7
          %v3864 = vsub.s32 0, %v3863
          %v3865 = vrot.slane %v3502, %v3864
          %v3866 = vlaneseq
          %v3867 = vshrl.u32 %v3866, 7
          %v3868 = vsub.s32 0, %v3867
          %v3869 = vrot.slane %v3516, %v3868
          %v3870 = vlaneseq
          %v3871 = vshrl.u32 %v3870, 7
          %v3872 = vsub.s32 0, %v3871
          %v3873 = vrot.slane %v3524, %v3872
          %v3874 = vlaneseq
          %v3875 = vshrl.u32 %v3874, 7
          %v3876 = vsub.s32 0, %v3875
          %v3877 = vrot.slane %v3526, %v3876
          %v3878 = vlaneseq
          %v3879 = vshrl.u32 %v3878, 7
          %v3880 = vsub.s32 0, %v3879
          %v3881 = vrot.slane %v3509, %v3880
          %v3882 = vlaneseq
          %v3883 = vshrl.u32 %v3882, 7
          %v3884 = vsub.s32 0, %v3883
          %v3885 = vrot.slane %v3523, %v3884
          %v3886 = vlaneseq
          %v3887 = vshrl.u32 %v3886, 7
          %v3888 = vsub.s32 0, %v3887
          %v3889 = vrot.slane %v3525, %v3888
          %v3890 = vlaneseq
          %v3891 = vshrl.u32 %v3890, 7
          %v3892 = vsub.s32 0, %v3891
          %v3893 = vrot.slane %v3527, %v3892
          %v3894 = vlaneseq
          %v3895 = vshrl.u32 %v3894, 7
          %v3896 = vsub.s32 0, %v3895
          %v3897 = vrot.slane %v3551, %v3896
          %v3898 = vlaneseq
          %v3899 = vshrl.u32 %v3898, 7
          %v3900 = vsub.s32 0, %v3899
          %v3901 = vrot.slane %v3565, %v3900
          %v3902 = vlaneseq
          %v3903 = vshrl.u32 %v3902, 7
          %v3904 = vsub.s32 0, %v3903
          %v3905 = vrot.slane %v3573, %v3904
          %v3906 = vlaneseq
          %v3907 = vshrl.u32 %v3906, 7
          %v3908 = vsub.s32 0, %v3907
          %v3909 = vrot.slane %v3575, %v3908
          %v3910 = vlaneseq
          %v3911 = vshrl.u32 %v3910, 7
          %v3912 = vsub.s32 0, %v3911
          %v3913 = vrot.slane %v3558, %v3912
          %v3914 = vlaneseq
          %v3915 = vshrl.u32 %v3914, 7
          %v3916 = vsub.s32 0, %v3915
          %v3917 = vrot.slane %v3572, %v3916
          %v3918 = vlaneseq
          %v3919 = vshrl.u32 %v3918, 7
          %v3920 = vsub.s32 0, %v3919
          %v3921 = vrot.slane %v3574, %v3920
          %v3922 = vlaneseq
          %v3923 = vshrl.u32 %v3922, 7
          %v3924 = vsub.s32 0, %v3923
          %v3925 = vrot.slane %v3576, %v3924
          %v3926 = vlaneseq
          %v3927 = vshrl.u32 %v3926, 7
          %v3928 = vsub.s32 0, %v3927
          %v3929 = vrot.slane %v3600, %v3928
          %v3930 = vlaneseq
          %v3931 = vshrl.u32 %v3930, 7
          %v3932 = vsub.s32 0, %v3931
          %v3933 = vrot.slane %v3614, %v3932
          %v3934 = vlaneseq
          %v3935 = vshrl.u32 %v3934, 7
          %v3936 = vsub.s32 0, %v3935
          %v3937 = vrot.slane %v3622, %v3936
          %v3938 = vlaneseq
          %v3939 = vshrl.u32 %v3938, 7
          %v3940 = vsub.s32 0, %v3939
          %v3941 = vrot.slane %v3624, %v3940
          %v3942 = vlaneseq
          %v3943 = vshrl.u32 %v3942, 7
          %v3944 = vsub.s32 0, %v3943
          %v3945 = vrot.slane %v3607, %v3944
          %v3946 = vlaneseq
          %v3947 = vshrl.u32 %v3946, 7
          %v3948 = vsub.s32 0, %v3947
          %v3949 = vrot.slane %v3621, %v3948
          %v3950 = vlaneseq
          %v3951 = vshrl.u32 %v3950, 7
          %v3952 = vsub.s32 0, %v3951
          %v3953 = vrot.slane %v3623, %v3952
          %v3954 = vlaneseq
          %v3955 = vshrl.u32 %v3954, 7
          %v3956 = vsub.s32 0, %v3955
          %v3957 = vrot.slane %v3625, %v3956
          %v3990 = vmul.f32 %v3190, %v3833
          %v3991 = vmul.f32 %v3214, %v3837
          %v3992 = vmul.f32 %v3197, %v3841
          %v3993 = vmul.f32 %v3215, %v3845
          %v3994 = vmul.f32 %v3206, %v3849
          %v3995 = vmul.f32 %v3216, %v3853
          %v3996 = vmul.f32 %v3213, %v3857
          %v3997 = vmul.f32 %v3217, %v3861
          %v3998 = vmul.f32 %v3258, %v3865
          %v3999 = vmul.f32 %v3282, %v3869
          %v4000 = vmul.f32 %v3265, %v3873
          %v4001 = vmul.f32 %v3283, %v3877
          %v4002 = vmul.f32 %v3274, %v3881
          %v4003 = vmul.f32 %v3284, %v3885
          %v4004 = vmul.f32 %v3281, %v3889
          %v4005 = vmul.f32 %v3285, %v3893
          %v4006 = vmul.f32 %v3326, %v3897
          %v4007 = vmul.f32 %v3350, %v3901
          %v4008 = vmul.f32 %v3333, %v3905
          %v4009 = vmul.f32 %v3351, %v3909
          %v4010 = vmul.f32 %v3342, %v3913
          %v4011 = vmul.f32 %v3352, %v3917
          %v4012 = vmul.f32 %v3349, %v3921
          %v4013 = vmul.f32 %v3353, %v3925
          %v4014 = vmul.f32 %v3394, %v3929
          %v4015 = vmul.f32 %v3418, %v3933
          %v4016 = vmul.f32 %v3401, %v3937
          %v4017 = vmul.f32 %v3419, %v3941
          %v4018 = vmul.f32 %v3410, %v3945
          %v4019 = vmul.f32 %v3420, %v3949
          %v4020 = vmul.f32 %v3417, %v3953
          %v4021 = vmul.f32 %v3421, %v3957
          %v4022 = vsub.f32 0.0, %v3190
          %v4023 = vsub.f32 0.0, %v3214
          %v4024 = vsub.f32 0.0, %v3197
          %v4025 = vsub.f32 0.0, %v3215
          %v4026 = vsub.f32 0.0, %v3206
          %v4027 = vsub.f32 0.0, %v3216
          %v4028 = vsub.f32 0.0, %v3213
          %v4029 = vsub.f32 0.0, %v3217
          %v4030 = vsub.f32 0.0, %v3258
          %v4031 = vsub.f32 0.0, %v3282
          %v4032 = vsub.f32 0.0, %v3265
          %v4033 = vsub.f32 0.0, %v3283
          %v4034 = vsub.f32 0.0, %v3274
          %v4035 = vsub.f32 0.0, %v3284
          %v4036 = vsub.f32 0.0, %v3281
          %v4037 = vsub.f32 0.0, %v3285
          %v4038 = vsub.f32 0.0, %v3326
          %v4039 = vsub.f32 0.0, %v3350
          %v4040 = vsub.f32 0.0, %v3333
          %v4041 = vsub.f32 0.0, %v3351
          %v4042 = vsub.f32 0.0, %v3342
          %v4043 = vsub.f32 0.0, %v3352
          %v4044 = vsub.f32 0.0, %v3349
          %v4045 = vsub.f32 0.0, %v3353
          %v4046 = vsub.f32 0.0, %v3394
          %v4047 = vsub.f32 0.0, %v3418
          %v4048 = vsub.f32 0.0, %v3401
          %v4049 = vsub.f32 0.0, %v3419
          %v4050 = vsub.f32 0.0, %v3410
          %v4051 = vsub.f32 0.0, %v3420
          %v4052 = vsub.f32 0.0, %v3417
          %v4053 = vsub.f32 0.0, %v3421
          %4086 = vrot.lane.b32.xlu0 %v4022, 120
          %v4087 = vpop.permute.xlu0 %4086
          %4088 = vrot.lane.b32.xlu0 %v4023, 120
          %v4089 = vpop.permute.xlu0 %4088
          %4090 = vrot.lane.b32.xlu0 %v4024, 120
          %v4091 = vpop.permute.xlu0 %4090
          %4092 = vrot.lane.b32.xlu0 %v4025, 120
          %v4093 = vpop.permute.xlu0 %4092
          %4094 = vrot.lane.b32.xlu0 %v4026, 120
          %v4095 = vpop.permute.xlu0 %4094
          %4096 = vrot.lane.b32.xlu0 %v4027, 120
          %v4097 = vpop.permute.xlu0 %4096
          %4098 = vrot.lane.b32.xlu0 %v4028, 120
          %v4099 = vpop.permute.xlu0 %4098
          %4100 = vrot.lane.b32.xlu0 %v4029, 120
          %v4101 = vpop.permute.xlu0 %4100
          %4102 = vrot.lane.b32.xlu0 %v4030, 120
          %v4103 = vpop.permute.xlu0 %4102
          %4104 = vrot.lane.b32.xlu0 %v4031, 120
          %v4105 = vpop.permute.xlu0 %4104
          %4106 = vrot.lane.b32.xlu0 %v4032, 120
          %v4107 = vpop.permute.xlu0 %4106
          %4108 = vrot.lane.b32.xlu0 %v4033, 120
          %v4109 = vpop.permute.xlu0 %4108
          %4110 = vrot.lane.b32.xlu0 %v4034, 120
          %v4111 = vpop.permute.xlu0 %4110
          %4112 = vrot.lane.b32.xlu0 %v4035, 120
          %v4113 = vpop.permute.xlu0 %4112
          %4114 = vrot.lane.b32.xlu0 %v4036, 120
          %v4115 = vpop.permute.xlu0 %4114
          %4116 = vrot.lane.b32.xlu0 %v4037, 120
          %v4117 = vpop.permute.xlu0 %4116
          %4118 = vrot.lane.b32.xlu0 %v4038, 120
          %v4119 = vpop.permute.xlu0 %4118
          %4120 = vrot.lane.b32.xlu0 %v4039, 120
          %v4121 = vpop.permute.xlu0 %4120
          %4122 = vrot.lane.b32.xlu0 %v4040, 120
          %v4123 = vpop.permute.xlu0 %4122
          %4124 = vrot.lane.b32.xlu0 %v4041, 120
          %v4125 = vpop.permute.xlu0 %4124
          %4126 = vrot.lane.b32.xlu0 %v4042, 120
          %v4127 = vpop.permute.xlu0 %4126
          %4128 = vrot.lane.b32.xlu0 %v4043, 120
          %v4129 = vpop.permute.xlu0 %4128
          %4130 = vrot.lane.b32.xlu0 %v4044, 120
          %v4131 = vpop.permute.xlu0 %4130
          %4132 = vrot.lane.b32.xlu0 %v4045, 120
          %v4133 = vpop.permute.xlu0 %4132
          %4134 = vrot.lane.b32.xlu0 %v4046, 120
          %v4135 = vpop.permute.xlu0 %4134
          %4136 = vrot.lane.b32.xlu0 %v4047, 120
          %v4137 = vpop.permute.xlu0 %4136
          %4138 = vrot.lane.b32.xlu0 %v4048, 120
          %v4139 = vpop.permute.xlu0 %4138
          %4140 = vrot.lane.b32.xlu0 %v4049, 120
          %v4141 = vpop.permute.xlu0 %4140
          %4142 = vrot.lane.b32.xlu0 %v4050, 120
          %v4143 = vpop.permute.xlu0 %4142
          %4144 = vrot.lane.b32.xlu0 %v4051, 120
          %v4145 = vpop.permute.xlu0 %4144
          %4146 = vrot.lane.b32.xlu0 %v4052, 120
          %v4147 = vpop.permute.xlu0 %4146
          %4148 = vrot.lane.b32.xlu0 %v4053, 120
          %v4149 = vpop.permute.xlu0 %4148
          %4214 = vrot.lane.b32.xlu0 %v3190, 8
          %v4215 = vpop.permute.xlu0 %4214
          %4216 = vrot.lane.b32.xlu0 %v3214, 8
          %v4217 = vpop.permute.xlu0 %4216
          %4218 = vrot.lane.b32.xlu0 %v3197, 8
          %v4219 = vpop.permute.xlu0 %4218
          %4220 = vrot.lane.b32.xlu0 %v3215, 8
          %v4221 = vpop.permute.xlu0 %4220
          %4222 = vrot.lane.b32.xlu0 %v3206, 8
          %v4223 = vpop.permute.xlu0 %4222
          %4224 = vrot.lane.b32.xlu0 %v3216, 8
          %v4225 = vpop.permute.xlu0 %4224
          %4226 = vrot.lane.b32.xlu0 %v3213, 8
          %v4227 = vpop.permute.xlu0 %4226
          %4228 = vrot.lane.b32.xlu0 %v3217, 8
          %v4229 = vpop.permute.xlu0 %4228
          %4230 = vrot.lane.b32.xlu0 %v3258, 8
          %v4231 = vpop.permute.xlu0 %4230
          %4232 = vrot.lane.b32.xlu0 %v3282, 8
          %v4233 = vpop.permute.xlu0 %4232
          %4234 = vrot.lane.b32.xlu0 %v3265, 8
          %v4235 = vpop.permute.xlu0 %4234
          %4236 = vrot.lane.b32.xlu0 %v3283, 8
          %v4237 = vpop.permute.xlu0 %4236
          %4238 = vrot.lane.b32.xlu0 %v3274, 8
          %v4239 = vpop.permute.xlu0 %4238
          %4240 = vrot.lane.b32.xlu0 %v3284, 8
          %v4241 = vpop.permute.xlu0 %4240
          %4242 = vrot.lane.b32.xlu0 %v3281, 8
          %v4243 = vpop.permute.xlu0 %4242
          %4244 = vrot.lane.b32.xlu0 %v3285, 8
          %v4245 = vpop.permute.xlu0 %4244
          %4246 = vrot.lane.b32.xlu0 %v3326, 8
          %v4247 = vpop.permute.xlu0 %4246
          %4248 = vrot.lane.b32.xlu0 %v3350, 8
          %v4249 = vpop.permute.xlu0 %4248
          %4250 = vrot.lane.b32.xlu0 %v3333, 8
          %v4251 = vpop.permute.xlu0 %4250
          %4252 = vrot.lane.b32.xlu0 %v3351, 8
          %v4253 = vpop.permute.xlu0 %4252
          %4254 = vrot.lane.b32.xlu0 %v3342, 8
          %v4255 = vpop.permute.xlu0 %4254
          %4256 = vrot.lane.b32.xlu0 %v3352, 8
          %v4257 = vpop.permute.xlu0 %4256
          %4258 = vrot.lane.b32.xlu0 %v3349, 8
          %v4259 = vpop.permute.xlu0 %4258
          %4260 = vrot.lane.b32.xlu0 %v3353, 8
          %v4261 = vpop.permute.xlu0 %4260
          %4262 = vrot.lane.b32.xlu0 %v3394, 8
          %v4263 = vpop.permute.xlu0 %4262
          %4264 = vrot.lane.b32.xlu0 %v3418, 8
          %v4265 = vpop.permute.xlu0 %4264
          %4266 = vrot.lane.b32.xlu0 %v3401, 8
          %v4267 = vpop.permute.xlu0 %4266
          %4268 = vrot.lane.b32.xlu0 %v3419, 8
          %v4269 = vpop.permute.xlu0 %4268
          %4270 = vrot.lane.b32.xlu0 %v3410, 8
          %v4271 = vpop.permute.xlu0 %4270
          %4272 = vrot.lane.b32.xlu0 %v3420, 8
          %v4273 = vpop.permute.xlu0 %4272
          %4274 = vrot.lane.b32.xlu0 %v3417, 8
          %v4275 = vpop.permute.xlu0 %4274
          %4276 = vrot.lane.b32.xlu0 %v3421, 8
          %v4277 = vpop.permute.xlu0 %4276
          %v4310 = vsel %vm2435, %v4087, %v4215
          %v4311 = vsel %vm2435, %v4089, %v4217
          %v4312 = vsel %vm2435, %v4091, %v4219
          %v4313 = vsel %vm2435, %v4093, %v4221
          %v4314 = vsel %vm2435, %v4095, %v4223
          %v4315 = vsel %vm2435, %v4097, %v4225
          %v4316 = vsel %vm2435, %v4099, %v4227
          %v4317 = vsel %vm2435, %v4101, %v4229
          %v4318 = vsel %vm2435, %v4103, %v4231
          %v4319 = vsel %vm2435, %v4105, %v4233
          %v4320 = vsel %vm2435, %v4107, %v4235
          %v4321 = vsel %vm2435, %v4109, %v4237
          %v4322 = vsel %vm2435, %v4111, %v4239
          %v4323 = vsel %vm2435, %v4113, %v4241
          %v4324 = vsel %vm2435, %v4115, %v4243
          %v4325 = vsel %vm2435, %v4117, %v4245
          %v4326 = vsel %vm2435, %v4119, %v4247
          %v4327 = vsel %vm2435, %v4121, %v4249
          %v4328 = vsel %vm2435, %v4123, %v4251
          %v4329 = vsel %vm2435, %v4125, %v4253
          %v4330 = vsel %vm2435, %v4127, %v4255
          %v4331 = vsel %vm2435, %v4129, %v4257
          %v4332 = vsel %vm2435, %v4131, %v4259
          %v4333 = vsel %vm2435, %v4133, %v4261
          %v4334 = vsel %vm2435, %v4135, %v4263
          %v4335 = vsel %vm2435, %v4137, %v4265
          %v4336 = vsel %vm2435, %v4139, %v4267
          %v4337 = vsel %vm2435, %v4141, %v4269
          %v4338 = vsel %vm2435, %v4143, %v4271
          %v4339 = vsel %vm2435, %v4145, %v4273
          %v4340 = vsel %vm2435, %v4147, %v4275
          %v4341 = vsel %vm2435, %v4149, %v4277
          %v4342 = vlaneseq
          %v4343 = vshrl.u32 %v4342, 7
          %v4344 = vsub.s32 0, %v4343
          %v4345 = vrot.slane %v3657, %v4344
          %v4346 = vlaneseq
          %v4347 = vshrl.u32 %v4346, 7
          %v4348 = vsub.s32 0, %v4347
          %v4349 = vrot.slane %v3671, %v4348
          %v4350 = vlaneseq
          %v4351 = vshrl.u32 %v4350, 7
          %v4352 = vsub.s32 0, %v4351
          %v4353 = vrot.slane %v3679, %v4352
          %v4354 = vlaneseq
          %v4355 = vshrl.u32 %v4354, 7
          %v4356 = vsub.s32 0, %v4355
          %v4357 = vrot.slane %v3681, %v4356
          %v4358 = vlaneseq
          %v4359 = vshrl.u32 %v4358, 7
          %v4360 = vsub.s32 0, %v4359
          %v4361 = vrot.slane %v3664, %v4360
          %v4362 = vlaneseq
          %v4363 = vshrl.u32 %v4362, 7
          %v4364 = vsub.s32 0, %v4363
          %v4365 = vrot.slane %v3678, %v4364
          %v4366 = vlaneseq
          %v4367 = vshrl.u32 %v4366, 7
          %v4368 = vsub.s32 0, %v4367
          %v4369 = vrot.slane %v3680, %v4368
          %v4370 = vlaneseq
          %v4371 = vshrl.u32 %v4370, 7
          %v4372 = vsub.s32 0, %v4371
          %v4373 = vrot.slane %v3682, %v4372
          %v4374 = vlaneseq
          %v4375 = vshrl.u32 %v4374, 7
          %v4376 = vsub.s32 0, %v4375
          %v4377 = vrot.slane %v3706, %v4376
          %v4378 = vlaneseq
          %v4379 = vshrl.u32 %v4378, 7
          %v4380 = vsub.s32 0, %v4379
          %v4381 = vrot.slane %v3720, %v4380
          %v4382 = vlaneseq
          %v4383 = vshrl.u32 %v4382, 7
          %v4384 = vsub.s32 0, %v4383
          %v4385 = vrot.slane %v3728, %v4384
          %v4386 = vlaneseq
          %v4387 = vshrl.u32 %v4386, 7
          %v4388 = vsub.s32 0, %v4387
          %v4389 = vrot.slane %v3730, %v4388
          %v4390 = vlaneseq
          %v4391 = vshrl.u32 %v4390, 7
          %v4392 = vsub.s32 0, %v4391
          %v4393 = vrot.slane %v3713, %v4392
          %v4394 = vlaneseq
          %v4395 = vshrl.u32 %v4394, 7
          %v4396 = vsub.s32 0, %v4395
          %v4397 = vrot.slane %v3727, %v4396
          %v4398 = vlaneseq
          %v4399 = vshrl.u32 %v4398, 7
          %v4400 = vsub.s32 0, %v4399
          %v4401 = vrot.slane %v3729, %v4400
          %v4402 = vlaneseq
          %v4403 = vshrl.u32 %v4402, 7
          %v4404 = vsub.s32 0, %v4403
          %v4405 = vrot.slane %v3731, %v4404
          %v4406 = vlaneseq
          %v4407 = vshrl.u32 %v4406, 7
          %v4408 = vsub.s32 0, %v4407
          %v4409 = vrot.slane %v3755, %v4408
          %v4410 = vlaneseq
          %v4411 = vshrl.u32 %v4410, 7
          %v4412 = vsub.s32 0, %v4411
          %v4413 = vrot.slane %v3769, %v4412
          %v4414 = vlaneseq
          %v4415 = vshrl.u32 %v4414, 7
          %v4416 = vsub.s32 0, %v4415
          %v4417 = vrot.slane %v3777, %v4416
          %v4418 = vlaneseq
          %v4419 = vshrl.u32 %v4418, 7
          %v4420 = vsub.s32 0, %v4419
          %v4421 = vrot.slane %v3779, %v4420
          %v4422 = vlaneseq
          %v4423 = vshrl.u32 %v4422, 7
          %v4424 = vsub.s32 0, %v4423
          %v4425 = vrot.slane %v3762, %v4424
          %v4426 = vlaneseq
          %v4427 = vshrl.u32 %v4426, 7
          %v4428 = vsub.s32 0, %v4427
          %v4429 = vrot.slane %v3776, %v4428
          %v4430 = vlaneseq
          %v4431 = vshrl.u32 %v4430, 7
          %v4432 = vsub.s32 0, %v4431
          %v4433 = vrot.slane %v3778, %v4432
          %v4434 = vlaneseq
          %v4435 = vshrl.u32 %v4434, 7
          %v4436 = vsub.s32 0, %v4435
          %v4437 = vrot.slane %v3780, %v4436
          %v4438 = vlaneseq
          %v4439 = vshrl.u32 %v4438, 7
          %v4440 = vsub.s32 0, %v4439
          %v4441 = vrot.slane %v3804, %v4440
          %v4442 = vlaneseq
          %v4443 = vshrl.u32 %v4442, 7
          %v4444 = vsub.s32 0, %v4443
          %v4445 = vrot.slane %v3818, %v4444
          %v4446 = vlaneseq
          %v4447 = vshrl.u32 %v4446, 7
          %v4448 = vsub.s32 0, %v4447
          %v4449 = vrot.slane %v3826, %v4448
          %v4450 = vlaneseq
          %v4451 = vshrl.u32 %v4450, 7
          %v4452 = vsub.s32 0, %v4451
          %v4453 = vrot.slane %v3828, %v4452
          %v4454 = vlaneseq
          %v4455 = vshrl.u32 %v4454, 7
          %v4456 = vsub.s32 0, %v4455
          %v4457 = vrot.slane %v3811, %v4456
          %v4458 = vlaneseq
          %v4459 = vshrl.u32 %v4458, 7
          %v4460 = vsub.s32 0, %v4459
          %v4461 = vrot.slane %v3825, %v4460
          %v4462 = vlaneseq
          %v4463 = vshrl.u32 %v4462, 7
          %v4464 = vsub.s32 0, %v4463
          %v4465 = vrot.slane %v3827, %v4464
          %v4466 = vlaneseq
          %v4467 = vshrl.u32 %v4466, 7
          %v4468 = vsub.s32 0, %v4467
          %v4469 = vrot.slane %v3829, %v4468
          %v4502 = vmul.f32 %v4310, %v4345
          %v4503 = vmul.f32 %v4311, %v4349
          %v4504 = vmul.f32 %v4312, %v4353
          %v4505 = vmul.f32 %v4313, %v4357
          %v4506 = vmul.f32 %v4314, %v4361
          %v4507 = vmul.f32 %v4315, %v4365
          %v4508 = vmul.f32 %v4316, %v4369
          %v4509 = vmul.f32 %v4317, %v4373
          %v4510 = vmul.f32 %v4318, %v4377
          %v4511 = vmul.f32 %v4319, %v4381
          %v4512 = vmul.f32 %v4320, %v4385
          %v4513 = vmul.f32 %v4321, %v4389
          %v4514 = vmul.f32 %v4322, %v4393
          %v4515 = vmul.f32 %v4323, %v4397
          %v4516 = vmul.f32 %v4324, %v4401
          %v4517 = vmul.f32 %v4325, %v4405
          %v4518 = vmul.f32 %v4326, %v4409
          %v4519 = vmul.f32 %v4327, %v4413
          %v4520 = vmul.f32 %v4328, %v4417
          %v4521 = vmul.f32 %v4329, %v4421
          %v4522 = vmul.f32 %v4330, %v4425
          %v4523 = vmul.f32 %v4331, %v4429
          %v4524 = vmul.f32 %v4332, %v4433
          %v4525 = vmul.f32 %v4333, %v4437
          %v4526 = vmul.f32 %v4334, %v4441
          %v4527 = vmul.f32 %v4335, %v4445
          %v4528 = vmul.f32 %v4336, %v4449
          %v4529 = vmul.f32 %v4337, %v4453
          %v4530 = vmul.f32 %v4338, %v4457
          %v4531 = vmul.f32 %v4339, %v4461
          %v4532 = vmul.f32 %v4340, %v4465
          %v4533 = vmul.f32 %v4341, %v4469
          %v4534 = vadd.f32 %v3990, %v4502
          %v4535 = vadd.f32 %v3991, %v4503
          %v4536 = vadd.f32 %v3992, %v4504
          %v4537 = vadd.f32 %v3993, %v4505
          %v4538 = vadd.f32 %v3994, %v4506
          %v4539 = vadd.f32 %v3995, %v4507
          %v4540 = vadd.f32 %v3996, %v4508
          %v4541 = vadd.f32 %v3997, %v4509
          %v4542 = vadd.f32 %v3998, %v4510
          %v4543 = vadd.f32 %v3999, %v4511
          %v4544 = vadd.f32 %v4000, %v4512
          %v4545 = vadd.f32 %v4001, %v4513
          %v4546 = vadd.f32 %v4002, %v4514
          %v4547 = vadd.f32 %v4003, %v4515
          %v4548 = vadd.f32 %v4004, %v4516
          %v4549 = vadd.f32 %v4005, %v4517
          %v4550 = vadd.f32 %v4006, %v4518
          %v4551 = vadd.f32 %v4007, %v4519
          %v4552 = vadd.f32 %v4008, %v4520
          %v4553 = vadd.f32 %v4009, %v4521
          %v4554 = vadd.f32 %v4010, %v4522
          %v4555 = vadd.f32 %v4011, %v4523
          %v4556 = vadd.f32 %v4012, %v4524
          %v4557 = vadd.f32 %v4013, %v4525
          %v4558 = vadd.f32 %v4014, %v4526
          %v4559 = vadd.f32 %v4015, %v4527
          %v4560 = vadd.f32 %v4016, %v4528
          %v4561 = vadd.f32 %v4017, %v4529
          %v4562 = vadd.f32 %v4018, %v4530
          %v4563 = vadd.f32 %v4019, %v4531
          %v4564 = vadd.f32 %v4020, %v4532
          %v4565 = vadd.f32 %v4021, %v4533
          %v4566 = vcombine.low %v4534, %v4536
          %v4568 = vunpack.c.l.s4 1983009808
          %v4569 = vunpack.c.0.s8 %v4568
          %v4570 = vlaneseq
          %v4571 = vshrl.u32 %v4570, 7
          %v4572 = vsub.s32 %v4569, %v4571
          %v4573 = vrot.slane %v4566, %v4572
          %v4574 = vcombine.low %v4535, %v4537
          %v4576 = vunpack.c.l.s4 1983009808
          %v4577 = vunpack.c.0.s8 %v4576
          %v4578 = vlaneseq
          %v4579 = vshrl.u32 %v4578, 7
          %v4580 = vsub.s32 %v4577, %v4579
          %v4581 = vrot.slane %v4574, %v4580
          %v4582 = vcombine.low %v4538, %v4540
          %v4584 = vunpack.c.l.s4 1983009808
          %v4585 = vunpack.c.0.s8 %v4584
          %v4586 = vlaneseq
          %v4587 = vshrl.u32 %v4586, 7
          %v4588 = vsub.s32 %v4585, %v4587
          %v4589 = vrot.slane %v4582, %v4588
          %v4590 = vcombine.low %v4539, %v4541
          %v4592 = vunpack.c.l.s4 1983009808
          %v4593 = vunpack.c.0.s8 %v4592
          %v4594 = vlaneseq
          %v4595 = vshrl.u32 %v4594, 7
          %v4596 = vsub.s32 %v4593, %v4595
          %v4597 = vrot.slane %v4590, %v4596
          %v4598 = vcombine.low %v4573, %v4581
          %v4599 = vcombine.high %v4573, %v4581
          %v4601 = vunpack.c.l.s4 1934713408
          %v4602 = vunpack.c.0.s8 %v4601
          %v4603 = vlaneseq
          %v4604 = vshrl.u32 %v4603, 7
          %v4605 = vsub.s32 %v4602, %v4604
          %v4606 = vrot.slane %v4598, %v4605
          %v4608 = vunpack.c.l.s4 1934713408
          %v4609 = vunpack.c.0.s8 %v4608
          %v4610 = vlaneseq
          %v4611 = vshrl.u32 %v4610, 7
          %v4612 = vsub.s32 %v4609, %v4611
          %v4613 = vrot.slane %v4599, %v4612
          %v4614 = vcombine.low %v4589, %v4597
          %v4615 = vcombine.high %v4589, %v4597
          %v4617 = vunpack.c.l.s4 1934713408
          %v4618 = vunpack.c.0.s8 %v4617
          %v4619 = vlaneseq
          %v4620 = vshrl.u32 %v4619, 7
          %v4621 = vsub.s32 %v4618, %v4620
          %v4622 = vrot.slane %v4614, %v4621
          %v4624 = vunpack.c.l.s4 1934713408
          %v4625 = vunpack.c.0.s8 %v4624
          %v4626 = vlaneseq
          %v4627 = vshrl.u32 %v4626, 7
          %v4628 = vsub.s32 %v4625, %v4627
          %v4629 = vrot.slane %v4615, %v4628
          %v4630 = vcombine.low %v4606, %v4622
          %v4631 = vcombine.high %v4606, %v4622
          %v4632 = vcombine.low %v4613, %v4629
          %v4633 = vcombine.high %v4613, %v4629
          %v4634 = vcombine.low %v4542, %v4544
          %v4636 = vunpack.c.l.s4 1983009808
          %v4637 = vunpack.c.0.s8 %v4636
          %v4638 = vlaneseq
          %v4639 = vshrl.u32 %v4638, 7
          %v4640 = vsub.s32 %v4637, %v4639
          %v4641 = vrot.slane %v4634, %v4640
          %v4642 = vcombine.low %v4543, %v4545
          %v4644 = vunpack.c.l.s4 1983009808
          %v4645 = vunpack.c.0.s8 %v4644
          %v4646 = vlaneseq
          %v4647 = vshrl.u32 %v4646, 7
          %v4648 = vsub.s32 %v4645, %v4647
          %v4649 = vrot.slane %v4642, %v4648
          %v4650 = vcombine.low %v4546, %v4548
          %v4652 = vunpack.c.l.s4 1983009808
          %v4653 = vunpack.c.0.s8 %v4652
          %v4654 = vlaneseq
          %v4655 = vshrl.u32 %v4654, 7
          %v4656 = vsub.s32 %v4653, %v4655
          %v4657 = vrot.slane %v4650, %v4656
          %v4658 = vcombine.low %v4547, %v4549
          %v4660 = vunpack.c.l.s4 1983009808
          %v4661 = vunpack.c.0.s8 %v4660
          %v4662 = vlaneseq
          %v4663 = vshrl.u32 %v4662, 7
          %v4664 = vsub.s32 %v4661, %v4663
          %v4665 = vrot.slane %v4658, %v4664
          %v4666 = vcombine.low %v4641, %v4649
          %v4667 = vcombine.high %v4641, %v4649
          %v4669 = vunpack.c.l.s4 1934713408
          %v4670 = vunpack.c.0.s8 %v4669
          %v4671 = vlaneseq
          %v4672 = vshrl.u32 %v4671, 7
          %v4673 = vsub.s32 %v4670, %v4672
          %v4674 = vrot.slane %v4666, %v4673
          %v4676 = vunpack.c.l.s4 1934713408
          %v4677 = vunpack.c.0.s8 %v4676
          %v4678 = vlaneseq
          %v4679 = vshrl.u32 %v4678, 7
          %v4680 = vsub.s32 %v4677, %v4679
          %v4681 = vrot.slane %v4667, %v4680
          %v4682 = vcombine.low %v4657, %v4665
          %v4683 = vcombine.high %v4657, %v4665
          %v4685 = vunpack.c.l.s4 1934713408
          %v4686 = vunpack.c.0.s8 %v4685
          %v4687 = vlaneseq
          %v4688 = vshrl.u32 %v4687, 7
          %v4689 = vsub.s32 %v4686, %v4688
          %v4690 = vrot.slane %v4682, %v4689
          %v4692 = vunpack.c.l.s4 1934713408
          %v4693 = vunpack.c.0.s8 %v4692
          %v4694 = vlaneseq
          %v4695 = vshrl.u32 %v4694, 7
          %v4696 = vsub.s32 %v4693, %v4695
          %v4697 = vrot.slane %v4683, %v4696
          %v4698 = vcombine.low %v4674, %v4690
          %v4699 = vcombine.high %v4674, %v4690
          %v4700 = vcombine.low %v4681, %v4697
          %v4701 = vcombine.high %v4681, %v4697
          %v4702 = vcombine.low %v4550, %v4552
          %v4704 = vunpack.c.l.s4 1983009808
          %v4705 = vunpack.c.0.s8 %v4704
          %v4706 = vlaneseq
          %v4707 = vshrl.u32 %v4706, 7
          %v4708 = vsub.s32 %v4705, %v4707
          %v4709 = vrot.slane %v4702, %v4708
          %v4710 = vcombine.low %v4551, %v4553
          %v4712 = vunpack.c.l.s4 1983009808
          %v4713 = vunpack.c.0.s8 %v4712
          %v4714 = vlaneseq
          %v4715 = vshrl.u32 %v4714, 7
          %v4716 = vsub.s32 %v4713, %v4715
          %v4717 = vrot.slane %v4710, %v4716
          %v4718 = vcombine.low %v4554, %v4556
          %v4720 = vunpack.c.l.s4 1983009808
          %v4721 = vunpack.c.0.s8 %v4720
          %v4722 = vlaneseq
          %v4723 = vshrl.u32 %v4722, 7
          %v4724 = vsub.s32 %v4721, %v4723
          %v4725 = vrot.slane %v4718, %v4724
          %v4726 = vcombine.low %v4555, %v4557
          %v4728 = vunpack.c.l.s4 1983009808
          %v4729 = vunpack.c.0.s8 %v4728
          %v4730 = vlaneseq
          %v4731 = vshrl.u32 %v4730, 7
          %v4732 = vsub.s32 %v4729, %v4731
          %v4733 = vrot.slane %v4726, %v4732
          %v4734 = vcombine.low %v4709, %v4717
          %v4735 = vcombine.high %v4709, %v4717
          %v4737 = vunpack.c.l.s4 1934713408
          %v4738 = vunpack.c.0.s8 %v4737
          %v4739 = vlaneseq
          %v4740 = vshrl.u32 %v4739, 7
          %v4741 = vsub.s32 %v4738, %v4740
          %v4742 = vrot.slane %v4734, %v4741
          %v4744 = vunpack.c.l.s4 1934713408
          %v4745 = vunpack.c.0.s8 %v4744
          %v4746 = vlaneseq
          %v4747 = vshrl.u32 %v4746, 7
          %v4748 = vsub.s32 %v4745, %v4747
          %v4749 = vrot.slane %v4735, %v4748
          %v4750 = vcombine.low %v4725, %v4733
          %v4751 = vcombine.high %v4725, %v4733
          %v4753 = vunpack.c.l.s4 1934713408
          %v4754 = vunpack.c.0.s8 %v4753
          %v4755 = vlaneseq
          %v4756 = vshrl.u32 %v4755, 7
          %v4757 = vsub.s32 %v4754, %v4756
          %v4758 = vrot.slane %v4750, %v4757
          %v4760 = vunpack.c.l.s4 1934713408
          %v4761 = vunpack.c.0.s8 %v4760
          %v4762 = vlaneseq
          %v4763 = vshrl.u32 %v4762, 7
          %v4764 = vsub.s32 %v4761, %v4763
          %v4765 = vrot.slane %v4751, %v4764
          %v4766 = vcombine.low %v4742, %v4758
          %v4767 = vcombine.high %v4742, %v4758
          %v4768 = vcombine.low %v4749, %v4765
          %v4769 = vcombine.high %v4749, %v4765
          %v4770 = vcombine.low %v4558, %v4560
          %v4772 = vunpack.c.l.s4 1983009808
          %v4773 = vunpack.c.0.s8 %v4772
          %v4774 = vlaneseq
          %v4775 = vshrl.u32 %v4774, 7
          %v4776 = vsub.s32 %v4773, %v4775
          %v4777 = vrot.slane %v4770, %v4776
          %v4778 = vcombine.low %v4559, %v4561
          %v4780 = vunpack.c.l.s4 1983009808
          %v4781 = vunpack.c.0.s8 %v4780
          %v4782 = vlaneseq
          %v4783 = vshrl.u32 %v4782, 7
          %v4784 = vsub.s32 %v4781, %v4783
          %v4785 = vrot.slane %v4778, %v4784
          %v4786 = vcombine.low %v4562, %v4564
          %v4788 = vunpack.c.l.s4 1983009808
          %v4789 = vunpack.c.0.s8 %v4788
          %v4790 = vlaneseq
          %v4791 = vshrl.u32 %v4790, 7
          %v4792 = vsub.s32 %v4789, %v4791
          %v4793 = vrot.slane %v4786, %v4792
          %v4794 = vcombine.low %v4563, %v4565
          %v4796 = vunpack.c.l.s4 1983009808
          %v4797 = vunpack.c.0.s8 %v4796
          %v4798 = vlaneseq
          %v4799 = vshrl.u32 %v4798, 7
          %v4800 = vsub.s32 %v4797, %v4799
          %v4801 = vrot.slane %v4794, %v4800
          %v4802 = vcombine.low %v4777, %v4785
          %v4803 = vcombine.high %v4777, %v4785
          %v4805 = vunpack.c.l.s4 1934713408
          %v4806 = vunpack.c.0.s8 %v4805
          %v4807 = vlaneseq
          %v4808 = vshrl.u32 %v4807, 7
          %v4809 = vsub.s32 %v4806, %v4808
          %v4810 = vrot.slane %v4802, %v4809
          %v4812 = vunpack.c.l.s4 1934713408
          %v4813 = vunpack.c.0.s8 %v4812
          %v4814 = vlaneseq
          %v4815 = vshrl.u32 %v4814, 7
          %v4816 = vsub.s32 %v4813, %v4815
          %v4817 = vrot.slane %v4803, %v4816
          %v4818 = vcombine.low %v4793, %v4801
          %v4819 = vcombine.high %v4793, %v4801
          %v4821 = vunpack.c.l.s4 1934713408
          %v4822 = vunpack.c.0.s8 %v4821
          %v4823 = vlaneseq
          %v4824 = vshrl.u32 %v4823, 7
          %v4825 = vsub.s32 %v4822, %v4824
          %v4826 = vrot.slane %v4818, %v4825
          %v4828 = vunpack.c.l.s4 1934713408
          %v4829 = vunpack.c.0.s8 %v4828
          %v4830 = vlaneseq
          %v4831 = vshrl.u32 %v4830, 7
          %v4832 = vsub.s32 %v4829, %v4831
          %v4833 = vrot.slane %v4819, %v4832
          %v4834 = vcombine.low %v4810, %v4826
          %v4835 = vcombine.high %v4810, %v4826
          %v4836 = vcombine.low %v4817, %v4833
          %v4837 = vcombine.high %v4817, %v4833
          %4842 = vrot.lane.b32.xlu0 %v4631, 16
          %v4843 = vpop.permute.xlu0 %4842
          %4844 = vrot.lane.b32.xlu0 %v4699, 16
          %v4845 = vpop.permute.xlu0 %4844
          %4846 = vrot.lane.b32.xlu0 %v4767, 16
          %v4847 = vpop.permute.xlu0 %4846
          %4848 = vrot.lane.b32.xlu0 %v4835, 16
          %v4849 = vpop.permute.xlu0 %4848
          %4858 = vrot.lane.b32.xlu0 %v4632, 32
          %v4859 = vpop.permute.xlu0 %4858
          %4860 = vrot.lane.b32.xlu0 %v4700, 32
          %v4861 = vpop.permute.xlu0 %4860
          %4862 = vrot.lane.b32.xlu0 %v4768, 32
          %v4863 = vpop.permute.xlu0 %4862
          %4864 = vrot.lane.b32.xlu0 %v4836, 32
          %v4865 = vpop.permute.xlu0 %4864
          %4874 = vrot.lane.b32.xlu0 %v4633, 48
          %v4875 = vpop.permute.xlu0 %4874
          %4876 = vrot.lane.b32.xlu0 %v4701, 48
          %v4877 = vpop.permute.xlu0 %4876
          %4878 = vrot.lane.b32.xlu0 %v4769, 48
          %v4879 = vpop.permute.xlu0 %4878
          %4880 = vrot.lane.b32.xlu0 %v4837, 48
          %v4881 = vpop.permute.xlu0 %4880
          %v4886 = vsel %vm3012, %v4630, %v4843
          %v4887 = vsel %vm3012, %v4698, %v4845
          %v4888 = vsel %vm3012, %v4766, %v4847
          %v4889 = vsel %vm3012, %v4834, %v4849
          %v4890 = vsel %vm3017, %v4886, %v4859
          %v4891 = vsel %vm3017, %v4887, %v4861
          %v4892 = vsel %vm3017, %v4888, %v4863
          %v4893 = vsel %vm3017, %v4889, %v4865
          %v4894 = vsel %vm3022, %v4890, %v4875
          %v4895 = vsel %vm3022, %v4891, %v4877
          %v4896 = vsel %vm3022, %v4892, %v4879
          %v4897 = vsel %vm3022, %v4893, %v4881
          %v4898 = vpack.c.bf16 %v4895, %v4894
          %v4899 = vpack.c.bf16 %v4897, %v4896
          %v4902 = vunpack.c.l.b16 %v4898
          %v4903 = vunpack.c.h.b16 %v4898
          %v4904 = vunpack.c.l.b16 %v4899
          %v4905 = vunpack.c.h.b16 %v4899
          %v4906 = vpack.c.b16 %v4902, %v4902
          %v4907 = vpack.c.b16 %v4903, %v4903
          %v4908 = vpack.c.b16 %v4904, %v4904
          %v4909 = vpack.c.b16 %v4905, %v4905
          %4914 = vst.msk [vmem:[%s710] sm:$0xf] %vm3047, %v4906
          %4915 = vst.msk [vmem:[%s710 + $0x4] sm:$0xf] %vm3047, %v4907
          %4916 = vst.msk [vmem:[%s710 + $0x8] sm:$0xf] %vm3047, %v4908
          %4917 = vst.msk [vmem:[%s710 + $0xc] sm:$0xf] %vm3047, %v4909
          %v4918 = vld [vmem:[#allocation5] sm:$0xff]
          %v4919 = vld [vmem:[#allocation5 + $0x8] sm:$0xff]
          %v4920 = vld [vmem:[#allocation5 + $0x10] sm:$0xff]
          %v4921 = vld [vmem:[#allocation5 + $0x18] sm:$0xff]
          %v4922 = vld [vmem:[#allocation12] sm:$0x1]
          %v4924 = vlaneseq
          %v4925 = vshrl.u32 %v4924, 7
          %v4926 = vsub.s32 0, %v4925
          %v4927 = vrot.slane %v4922, %v4926
          %v4929 = vadd.f32 %v4918, %v4927
          %v4930 = vadd.f32 %v4919, %v4927
          %v4931 = vadd.f32 %v4920, %v4927
          %v4932 = vadd.f32 %v4921, %v4927
          %v4933 = vpack.c.bf16 %v4930, %v4929
          %v4934 = vpack.c.bf16 %v4932, %v4931
          %v4937 = vunpack.c.l.b16 %v4933
          %v4938 = vunpack.c.h.b16 %v4933
          %v4939 = vunpack.c.l.b16 %v4934
          %v4940 = vunpack.c.h.b16 %v4934
          %v4941 = vpack.c.b16 %v4937, %v4937
          %v4942 = vpack.c.b16 %v4938, %v4938
          %v4943 = vpack.c.b16 %v4939, %v4939
          %v4944 = vpack.c.b16 %v4940, %v4940
          %4949 = vst.msk [vmem:[%s717] sm:$0xf] %vm3047, %v4941
          %4950 = vst.msk [vmem:[%s717 + $0x4] sm:$0xf] %vm3047, %v4942
          %4951 = vst.msk [vmem:[%s717 + $0x8] sm:$0xf] %vm3047, %v4943
          %4952 = vst.msk [vmem:[%s717 + $0xc] sm:$0xf] %vm3047, %v4944
        $region104: #{tpu_custom_call.1} parent=71 // pred_fallthru
          _
        %s4953 = sand.u32 %s383, 1
        %s4954 = scalar_lea.sflag [#allocation8], %s4953
        %s4955 = sand.u32 %s383, 1
        %s4956 = smul.addr %s4955, 16
        %s4957 = scalar_lea.vmem [#allocation17], %s4956
        %s4958 = sand.u32 %s39, 1
        %s4959 = scalar_lea.sflag [#allocation19], %s4958
        %s4960 = sand.u32 %s411, 1
        %s4961 = smul.addr %s4960, 16
        %s4962 = scalar_lea.vmem [#allocation18], %s4961
        %s4963 = sand.u32 %s39, 1
        %s4964 = scalar_lea.sflag [#allocation19], %s4963
        %s4965 = sand.u32 %s439, 1
        %s4966 = smul.addr %s4965, 16
        %s4967 = scalar_lea.vmem [#allocation20], %s4966
        // Predicated region
        $region105: #{tpu_custom_call.1} parent=71 // pred_check
          %p4968 = pneg %p393
        $region106: #{tpu_custom_call.1} parent=71 // pred_check_branch
          %4970 = sbr.rel (%p4968) target = $region108
        $region107: #{tpu_custom_call.1} parent=71 // pred_region
          %s4971 = smul.u32 4, %s45
          %s4973 = ssub.s32 256, 256
          %4974 = vsyncadd %s4954, %s4973
          %s4975 = smul.addr %s44, 4
          %s4976 = sadd.s32 %s4971, %s4975
          %s4977 = smul.addr %s4976, 64
          %s4978 = scalar_lea.hbm %s13, %s4977
          %s4979 = sshll.u32 %s4957, 4
          %s4980 = int_to_ptr.vmem [resolvable:$true] %s4979
          %4985 = dma.vmem_to_hbm [thread:$0]  %s4980, 256, %s4978, %s4954, 64, 64, 4
        $region108: #{tpu_custom_call.1} parent=71 // pred_fallthru
          _
        // Predicated region
        $region109: #{tpu_custom_call.1} parent=71 // pred_check
          %p4986 = pneg %p421
        $region110: #{tpu_custom_call.1} parent=71 // pred_check_branch
          %4988 = sbr.rel (%p4986) target = $region112
        $region111: #{tpu_custom_call.1} parent=71 // pred_region
          %s4989 = smul.u32 4, %s45
          %s4991 = ssub.s32 256, 256
          %4992 = vsyncadd %s4959, %s4991
          %s4993 = smul.addr %s44, 4
          %s4994 = sadd.s32 %s4989, %s4993
          %s4995 = smul.addr %s4994, 64
          %s4996 = scalar_lea.hbm %s14, %s4995
          %s4997 = sshll.u32 %s4962, 4
          %s4998 = int_to_ptr.vmem [resolvable:$true] %s4997
          %5003 = dma.vmem_to_hbm [thread:$0]  %s4998, 256, %s4996, %s4959, 64, 64, 4
        $region112: #{tpu_custom_call.1} parent=71 // pred_fallthru
          _
        // Predicated region
        $region113: #{tpu_custom_call.1} parent=71 // pred_check
          %p5004 = pneg %p449
        $region114: #{tpu_custom_call.1} parent=71 // pred_check_branch
          %5006 = sbr.rel (%p5004) target = $region116
        $region115: #{tpu_custom_call.1} parent=71 // pred_region
          %s5007 = smul.u32 4, %s45
          %s5009 = ssub.s32 256, 256
          %5010 = vsyncadd %s4964, %s5009
          %s5011 = smul.addr %s44, 4
          %s5012 = sadd.s32 %s5007, %s5011
          %s5013 = smul.addr %s5012, 64
          %s5014 = scalar_lea.hbm %s15, %s5013
          %s5015 = sshll.u32 %s4967, 4
          %s5016 = int_to_ptr.vmem [resolvable:$true] %s5015
          %5021 = dma.vmem_to_hbm [thread:$0]  %s5016, 256, %s5014, %s4964, 64, 64, 4
        $region116: #{tpu_custom_call.1} parent=71 // pred_fallthru
          _
      $region72: #{tpu_custom_call.1} parent=5 // pred_fallthru
        _
      %p5022 = scmp.le.s32.totalorder 2, %s34
      // Predicated region
      $region117: #{tpu_custom_call.1} parent=5 // pred_check
        %p5023 = pneg %p5022
      $region118: #{tpu_custom_call.1} parent=5 // pred_check_branch
        %5025 = sbr.rel (%p5023) target = $region120
      $region119: #{tpu_custom_call.1} parent=5 // pred_region
        %s5026 = ssub.s32 %s34, 2
        // Predicated region
        $region121: #{tpu_custom_call.1} parent=119 // pred_check
          %p5027 = pneg %p399
        $region122: #{tpu_custom_call.1} parent=119 // pred_check_branch
          %5029 = sbr.rel (%p5027) target = $region124
        $region123: #{tpu_custom_call.1} parent=119 // pred_region
          %s5030 = sand.u32 %s384, 1
          %s5031 = scalar_lea.sflag [#allocation8], %s5030
          %s5032 = sand.u32 %s384, 1
          %s5033 = smul.addr %s5032, 16
          %s5034 = scalar_lea.vmem [#allocation17], %s5033
          %5035 = dma.done %s5031, 256
        $region124: #{tpu_custom_call.1} parent=119 // pred_fallthru
          _
        // Predicated region
        $region125: #{tpu_custom_call.1} parent=119 // pred_check
          %p5036 = pneg %p427
        $region126: #{tpu_custom_call.1} parent=119 // pred_check_branch
          %5038 = sbr.rel (%p5036) target = $region128
        $region127: #{tpu_custom_call.1} parent=119 // pred_region
          %s5039 = sand.u32 %s40, 1
          %s5040 = scalar_lea.sflag [#allocation19], %s5039
          %s5041 = sand.u32 %s412, 1
          %s5042 = smul.addr %s5041, 16
          %s5043 = scalar_lea.vmem [#allocation18], %s5042
          %5044 = dma.done %s5040, 256
        $region128: #{tpu_custom_call.1} parent=119 // pred_fallthru
          _
        // Predicated region
        $region129: #{tpu_custom_call.1} parent=119 // pred_check
          %p5045 = pneg %p455
        $region130: #{tpu_custom_call.1} parent=119 // pred_check_branch
          %5047 = sbr.rel (%p5045) target = $region132
        $region131: #{tpu_custom_call.1} parent=119 // pred_region
          %s5048 = sand.u32 %s40, 1
          %s5049 = scalar_lea.sflag [#allocation19], %s5048
          %s5050 = sand.u32 %s440, 1
          %s5051 = smul.addr %s5050, 16
          %s5052 = scalar_lea.vmem [#allocation20], %s5051
          %5053 = dma.done %s5049, 256
        $region132: #{tpu_custom_call.1} parent=119 // pred_fallthru
          _
      $region120: #{tpu_custom_call.1} parent=5 // pred_fallthru
        _
    $region6: #{tpu_custom_call.1} parent=1 // loop_footer
      %s38 = sadd.s32 1, %s34
    $region7: #{tpu_custom_call.1} parent=1 // loop_footer_branch
      %33 = sbr.rel target = $region3
    $region8: #{tpu_custom_call.1} parent=1 // loop_exit
      _
    %5054 = vsyncpa [#allocation7], 1
    %s5055 = scalar_lea.sflag [#allocation7], 1
    %5056 = vsyncpa %s5055, 1
    %5057 = vsyncpa [#allocation10], 1
    %5058 = vsyncpa [#allocation13], 1
    %5059 = vsyncpa [#allocation16], 1
    %5060 = vsyncpa [#allocation8], 1
    %s5061 = scalar_lea.sflag [#allocation8], 1
    %5062 = vsyncpa %s5061, 1
    %5063 = vsyncpa [#allocation19], 1
    %s5064 = scalar_lea.sflag [#allocation19], 1
    %5065 = vsyncpa %s5064, 1

</llo_original>
